<compile_context>
chip_gen: v7x
topology: tpu7x:2x2x1
jax: 0.10.0
libtpu: 0.0.40
codegen_flags: <defaults>
</compile_context>

<pallas_src>
import functools
import math

import jax
import jax.numpy as jnp
from jax.experimental import pallas as pl
from jax.experimental.pallas import tpu as pltpu


LEAKY_SLOPE = 0.01  # F.leaky_relu default negative_slope


def _leaky_relu(x):
    return jnp.where(x > 0, x, LEAKY_SLOPE * x)


def ivae_kernel(
    # batch-tiled inputs
    x_ref, y_ref, eps_ref,
    # resident weights / biases (weights bf16, biases f32)
    fc1_w, fc1_b,            # encoder trunk
    head_w, head_b,          # fused block-diag head [[fc21|fc22, 0], [0, l21|l22]]
    l1_w, l1_b,              # prior trunk
    fc3_w, fc3_b, fc4_w, fc4_b,   # decoder
    # outputs
    recon_ref, lat_ref,      # lat = [mu | logvar | mup | logl]
    *, latent_dim,
):
    f32 = jnp.float32
    bf16 = jnp.bfloat16
    L = latent_dim

    # ---- encode trunk: h1 = leaky_relu(fc1(x))
    x = x_ref[...]                                               # bf16 (TB, 784)
    h1 = _leaky_relu(
        jnp.dot(x, fc1_w[...], preferred_element_type=f32) + fc1_b[...]
    )

    # ---- prior trunk: h2 = relu(l1(y))
    y = y_ref[...]                                               # bf16 (TB, 10)
    h2 = jnp.maximum(
        jnp.dot(y, l1_w[...], preferred_element_type=f32) + l1_b[...], 0.0
    )

    # ---- fused heads: [mu|logvar|mup|logl] = [h1|h2] @ blockdiag(enc_w, pri_w)
    h12 = jnp.concatenate([h1.astype(bf16), h2.astype(bf16)], axis=1)  # (TB,600)
    lat = (
        jnp.dot(h12, head_w[...], preferred_element_type=f32) + head_b[...]
    )                                                            # (TB, 4L) f32
    lat_ref[...] = lat                                           # 4L = 128 lanes

    mu = lat[:, :L]
    logvar = lat[:, L:2 * L]

    # ---- reparameterize: z = mu + eps * exp(0.5 * logvar)
    z = mu + eps_ref[...] * jnp.exp(0.5 * logvar)

    # ---- decode(z): sigmoid(fc4(leaky_relu(fc3(z))))
    h3 = _leaky_relu(
        jnp.dot(z.astype(bf16), fc3_w[...], preferred_element_type=f32)
        + fc3_b[...]
    )
    logits = (
        jnp.dot(h3.astype(bf16), fc4_w[...], preferred_element_type=f32)
        + fc4_b[...]
    )
    recon_ref[...] = jax.nn.sigmoid(logits).astype(recon_ref.dtype)   # bf16 store


def pack_params(params, latent_dim):
    """One-time packing of nn.Linear-layout f32 params into kernel layout.

    Hoisted out of the per-call path: transpose (out,in)->(in,out), cast
    weights to bf16, and fuse the four heads into a block-diagonal (600, 4L)
    matrix so the kernel writes [mu|logvar|mup|logl] in one matmul.
    """
    L = latent_dim
    bf16 = jnp.bfloat16
    f32 = jnp.float32

    def wt(name):
        return params[name + "_w"].T.astype(bf16)

    def bt(name):
        return params[name + "_b"].reshape(1, -1).astype(f32)

    head_w = jnp.zeros((600, 4 * L), f32)
    head_w = head_w.at[:400, :2 * L].set(
        jnp.concatenate([params["fc21_w"].T, params["fc22_w"].T], axis=1)
    )
    head_w = head_w.at[400:, 2 * L:].set(
        jnp.concatenate([params["l21_w"].T, params["l22_w"].T], axis=1)
    )
    head_b = jnp.concatenate(
        [bt("fc21"), bt("fc22"), bt("l21"), bt("l22")], axis=1
    )

    return {
        "fc1_w": wt("fc1"), "fc1_b": bt("fc1"),
        "head_w": head_w.astype(bf16), "head_b": head_b,
        "l1_w": wt("l1"), "l1_b": bt("l1"),
        "fc3_w": wt("fc3"), "fc3_b": bt("fc3"),
        "fc4_w": wt("fc4"), "fc4_b": bt("fc4"),
    }


@functools.partial(jax.jit, static_argnames=("latent_dim",))
def ivae_forward(x, y, eps, packed, *, latent_dim):
    """x: (B, 1, 28, 28) or (B, 784); y: (B, 10); eps: (B, latent_dim).

    `packed` comes from pack_params() (computed once, not per call).
    """
    L = latent_dim
    B = x.shape[0]
    bf16 = jnp.bfloat16
    f32 = jnp.float32

    # ---- batch tiling (weights stay VMEM-resident across batch-grid steps)
    def round16(n):
        return max(16, ((n + 15) // 16) * 16)     # bf16 sublane packing is (16,128)

    if B >= 256:
        TB = 256                                   # fills the 256-row MXU on v6e/v7x
    elif B >= 32:
        TB = round16(-(-B // 2))                   # 2 grid steps -> both v7x TCs busy
    else:
        TB = round16(B)                            # single tiny tile
    B_pad = ((B + TB - 1) // TB) * TB
    n_b = B_pad // TB

    x2d = x.reshape(B, 784).astype(bf16)
    y2d = y.astype(bf16)
    eps2d = eps.astype(f32)
    if B_pad != B:
        pad = ((0, B_pad - B), (0, 0))
        x2d = jnp.pad(x2d, pad)
        y2d = jnp.pad(y2d, pad)
        eps2d = jnp.pad(eps2d, pad)

    kernel_inputs = [
        x2d, y2d, eps2d,
        packed["fc1_w"], packed["fc1_b"],
        packed["head_w"], packed["head_b"],
        packed["l1_w"], packed["l1_b"],
        packed["fc3_w"], packed["fc3_b"],
        packed["fc4_w"], packed["fc4_b"],
    ]

    def batch_spec(feat):
        return pl.BlockSpec((TB, feat), lambda b: (b, 0))

    def resident_spec(shape):
        return pl.BlockSpec(shape, lambda b: (0, 0))

    in_specs = [
        batch_spec(784), batch_spec(10), batch_spec(L),
        resident_spec((784, 400)), resident_spec((1, 400)),
        resident_spec((600, 4 * L)), resident_spec((1, 4 * L)),
        resident_spec((10, 200)), resident_spec((1, 200)),
        resident_spec((L, 400)), resident_spec((1, 400)),
        resident_spec((400, 784)), resident_spec((1, 784)),
    ]

    out_shapes = (
        jax.ShapeDtypeStruct((B_pad, 784), bf16),     # recon (bf16 store)
        jax.ShapeDtypeStruct((B_pad, 4 * L), f32),    # [mu|logvar|mup|logl]
    )
    out_specs = [
        pl.BlockSpec((TB, 784), lambda b: (b, 0)),
        pl.BlockSpec((TB, 4 * L), lambda b: (b, 0)),
    ]

    # Advisory cost estimate (all static Python ints — no tracing).
    flops = 2 * B_pad * (784 * 400 + 10 * 200 + 600 * 4 * L + L * 400 + 400 * 784)
    transcendentals = B_pad * (L + 784)               # exp(0.5*logvar) + sigmoid
    bytes_accessed = int(
        sum(a.size * a.dtype.itemsize for a in kernel_inputs)
        + sum(math.prod(s.shape) * s.dtype.itemsize for s in out_shapes)
    )

    grid_spec = pltpu.PrefetchScalarGridSpec(
        num_scalar_prefetch=0,
        grid=(n_b,),
        in_specs=in_specs,
        out_specs=out_specs,
    )

    recon_p, lat_p = pl.pallas_call(
        functools.partial(ivae_kernel, latent_dim=L),
        out_shape=out_shapes,
        grid_spec=grid_spec,
        compiler_params=pltpu.CompilerParams(
            dimension_semantics=("parallel",),   # batch tiles -> both TCs on v7x
            vmem_limit_bytes=32 << 20,           # fits v7x's 64 MiB physical VMEM
        ),
        cost_estimate=pl.CostEstimate(
            flops=flops,
            transcendentals=transcendentals,
            bytes_accessed=bytes_accessed,
        ),
    )(*kernel_inputs)

    recon = recon_p[:B]
    lat = lat_p[:B]
    mu = lat[:, 0 * L:1 * L]
    logvar = lat[:, 1 * L:2 * L]
    mup = lat[:, 2 * L:3 * L]
    logl = lat[:, 3 * L:4 * L]
    return recon, mu, logvar, mup, logl


def init_params(key, latent_dim):
    """Deterministic synthetic parameters matching nn.Linear shapes (out, in)."""
    shapes = {
        "fc1": (400, 784),
        "fc21": (latent_dim, 400),
        "fc22": (latent_dim, 400),
        "fc3": (400, latent_dim),
        "fc4": (784, 400),
        "l1": (200, 10),
        "l21": (latent_dim, 200),
        "l22": (latent_dim, 200),
    }
    params = {}
    for name, (out_f, in_f) in shapes.items():
        key, kw, kb = jax.random.split(key, 3)
        bound = 1.0 / jnp.sqrt(in_f)
        params[name + "_w"] = jax.random.uniform(
            kw, (out_f, in_f), jnp.float32, -bound, bound
        )
        params[name + "_b"] = jax.random.uniform(
            kb, (out_f,), jnp.float32, -bound, bound
        )
    return params


def ref_forward(x, y, eps, params, latent_dim):
    """Pure-JAX f32 reference (matches PyTorch forward semantics)."""
    B = x.shape[0]
    x2 = x.reshape(B, 784)

    def lin(v, name):
        return v @ params[name + "_w"].T + params[name + "_b"]

    h1 = _leaky_relu(lin(x2, "fc1"))
    mu, logvar = lin(h1, "fc21"), lin(h1, "fc22")
    h2 = jnp.maximum(lin(y, "l1"), 0.0)
    mup, logl = lin(h2, "l21"), lin(h2, "l22")
    z = mu + eps * jnp.exp(0.5 * logvar)
    h3 = _leaky_relu(lin(z, "fc3"))
    recon = jax.nn.sigmoid(lin(h3, "fc4"))
    return recon, mu, logvar, mup, logl


if __name__ == "__main__":
    latent_dim = 32
    B = 8

    root = jax.random.PRNGKey(0)
    k_params, k_x, k_y, k_eps = jax.random.split(root, 4)

    params = init_params(k_params, latent_dim)
    packed = pack_params(params, latent_dim)          # one-time, outside forward

    x = jax.random.uniform(k_x, (B, 1, 28, 28), jnp.float32)      # MNIST-like NCHW
    y = jax.nn.one_hot(
        jax.random.randint(k_y, (B,), 0, 10), 10, dtype=jnp.float32
    )
    # TODO(synk): torch.randn_like inside reparameterize has no in-kernel
    # equivalent here; eps is drawn with a deterministic JAX PRNG and passed in.
    eps = jax.random.normal(k_eps, (B, latent_dim), jnp.float32)

    outs = ivae_forward(x, y, eps, packed, latent_dim=latent_dim)
    recon, mu, logvar, mup, logl = jax.block_until_ready(outs)

    assert recon.shape == (B, 784)
    assert mu.shape == (B, latent_dim) and logvar.shape == (B, latent_dim)
    assert mup.shape == (B, latent_dim) and logl.shape == (B, latent_dim)
    assert bool(jnp.all(jnp.isfinite(recon.astype(jnp.float32))))
    assert bool(jnp.all((recon >= 0.0) & (recon <= 1.0)))

    # Loose check vs. f32 reference (bf16 weights/recon introduce ~1e-2 drift).
    r_recon, r_mu, r_logvar, r_mup, r_logl = ref_forward(
        x, y, eps, params, latent_dim
    )
    for got, ref in ((recon.astype(jnp.float32), r_recon), (mu, r_mu),
                     (logvar, r_logvar), (mup, r_mup), (logl, r_logl)):
        assert bool(jnp.max(jnp.abs(got - ref)) < 0.1)

    print("KERNEL_OK")
</pallas_src>

<mosaic_0001>
module attributes {stable_mosaic.version = 11 : i64} {
  func.func @ivae_kernel(%arg0: i32, %arg1: memref<16x784xbf16, #tpu.memory_space<vmem>>, %arg2: memref<16x10xbf16, #tpu.memory_space<vmem>>, %arg3: memref<16x32xf32, #tpu.memory_space<vmem>>, %arg4: memref<784x400xbf16, #tpu.memory_space<vmem>>, %arg5: memref<1x400xf32, #tpu.memory_space<vmem>>, %arg6: memref<600x128xbf16, #tpu.memory_space<vmem>>, %arg7: memref<1x128xf32, #tpu.memory_space<vmem>>, %arg8: memref<10x200xbf16, #tpu.memory_space<vmem>>, %arg9: memref<1x200xf32, #tpu.memory_space<vmem>>, %arg10: memref<32x400xbf16, #tpu.memory_space<vmem>>, %arg11: memref<1x400xf32, #tpu.memory_space<vmem>>, %arg12: memref<400x784xbf16, #tpu.memory_space<vmem>>, %arg13: memref<1x784xf32, #tpu.memory_space<vmem>>, %arg14: memref<16x784xbf16, #tpu.memory_space<vmem>>, %arg15: memref<16x128xf32, #tpu.memory_space<vmem>>) attributes {dimension_semantics = [#tpu.dimension_semantics<parallel>], iteration_bounds = array<i64: 1>, scalar_prefetch = 0 : i64, scratch_operands = 0 : i64, tpu.core_type = #tpu.core_type<tc>, window_params = [{transform_indices = @transform_0, window_bounds = array<i64: 16, 784>}, {transform_indices = @transform_1, window_bounds = array<i64: 16, 10>}, {transform_indices = @transform_2, window_bounds = array<i64: 16, 32>}, {pipeline_mode = #tpu.pipeline_mode<synchronous>, transform_indices = @transform_3, window_bounds = array<i64: 784, 400>}, {pipeline_mode = #tpu.pipeline_mode<synchronous>, transform_indices = @transform_4, window_bounds = array<i64: 1, 400>}, {pipeline_mode = #tpu.pipeline_mode<synchronous>, transform_indices = @transform_5, window_bounds = array<i64: 600, 128>}, {pipeline_mode = #tpu.pipeline_mode<synchronous>, transform_indices = @transform_6, window_bounds = array<i64: 1, 128>}, {pipeline_mode = #tpu.pipeline_mode<synchronous>, transform_indices = @transform_7, window_bounds = array<i64: 10, 200>}, {pipeline_mode = #tpu.pipeline_mode<synchronous>, transform_indices = @transform_8, window_bounds = array<i64: 1, 200>}, {pipeline_mode = #tpu.pipeline_mode<synchronous>, transform_indices = @transform_9, window_bounds = array<i64: 32, 400>}, {pipeline_mode = #tpu.pipeline_mode<synchronous>, transform_indices = @transform_10, window_bounds = array<i64: 1, 400>}, {pipeline_mode = #tpu.pipeline_mode<synchronous>, transform_indices = @transform_11, window_bounds = array<i64: 400, 784>}, {pipeline_mode = #tpu.pipeline_mode<synchronous>, transform_indices = @transform_12, window_bounds = array<i64: 1, 784>}, {transform_indices = @transform_13, window_bounds = array<i64: 16, 784>}, {transform_indices = @transform_14, window_bounds = array<i64: 16, 128>}]} {
    %c0 = arith.constant 0 : index
    %c0_0 = arith.constant 0 : index
    %0 = vector.load %arg1[%c0, %c0_0] : memref<16x784xbf16, #tpu.memory_space<vmem>>, vector<16x784xbf16>
    %c0_1 = arith.constant 0 : index
    %c0_2 = arith.constant 0 : index
    %1 = vector.load %arg4[%c0_1, %c0_2] : memref<784x400xbf16, #tpu.memory_space<vmem>>, vector<784x400xbf16>
    %cst = arith.constant dense<0.000000e+00> : vector<16x400xf32>
    %2 = tpu.matmul %0, %1, %cst {dimension_numbers = #tpu.dot_dimension_numbers<[1], [0], [0], [1], [0, 0, 1, 1], [], []>} : vector<16x784xbf16>, vector<784x400xbf16>, vector<16x400xf32> -> vector<16x400xf32>
    %c0_3 = arith.constant 0 : index
    %c0_4 = arith.constant 0 : index
    %3 = vector.load %arg5[%c0_3, %c0_4] : memref<1x400xf32, #tpu.memory_space<vmem>>, vector<1x400xf32>
    %4 = vector.broadcast %3 : vector<1x400xf32> to vector<16x400xf32>
    %5 = arith.addf %2, %4 : vector<16x400xf32>
    %cst_5 = arith.constant 0.000000e+00 : f32
    %6 = vector.broadcast %cst_5 : f32 to vector<16x400xf32>
    %7 = arith.cmpf ogt, %5, %6 : vector<16x400xf32>
    %cst_6 = arith.constant 0.00999999977 : f32
    %8 = vector.broadcast %cst_6 : f32 to vector<16x400xf32>
    %9 = arith.mulf %8, %5 : vector<16x400xf32>
    %10 = arith.select %7, %5, %9 : vector<16x400xi1>, vector<16x400xf32>
    %c0_7 = arith.constant 0 : index
    %c0_8 = arith.constant 0 : index
    %11 = vector.load %arg2[%c0_7, %c0_8] : memref<16x10xbf16, #tpu.memory_space<vmem>>, vector<16x10xbf16>
    %c0_9 = arith.constant 0 : index
    %c0_10 = arith.constant 0 : index
    %12 = vector.load %arg8[%c0_9, %c0_10] : memref<10x200xbf16, #tpu.memory_space<vmem>>, vector<10x200xbf16>
    %cst_11 = arith.constant dense<0.000000e+00> : vector<16x200xf32>
    %13 = tpu.matmul %11, %12, %cst_11 {dimension_numbers = #tpu.dot_dimension_numbers<[1], [0], [0], [1], [0, 0, 1, 1], [], []>} : vector<16x10xbf16>, vector<10x200xbf16>, vector<16x200xf32> -> vector<16x200xf32>
    %c0_12 = arith.constant 0 : index
    %c0_13 = arith.constant 0 : index
    %14 = vector.load %arg9[%c0_12, %c0_13] : memref<1x200xf32, #tpu.memory_space<vmem>>, vector<1x200xf32>
    %15 = vector.broadcast %14 : vector<1x200xf32> to vector<16x200xf32>
    %16 = arith.addf %13, %15 : vector<16x200xf32>
    %cst_14 = arith.constant 0.000000e+00 : f32
    %17 = vector.broadcast %cst_14 : f32 to vector<16x200xf32>
    %18 = arith.maximumf %16, %17 : vector<16x200xf32>
    %19 = arith.truncf %10 : vector<16x400xf32> to vector<16x400xbf16>
    %20 = arith.truncf %18 : vector<16x200xf32> to vector<16x200xbf16>
    %21 = tpu.concatenate %19, %20 in 1 : vector<16x400xbf16>, vector<16x200xbf16> -> vector<16x600xbf16>
    %c0_15 = arith.constant 0 : index
    %c0_16 = arith.constant 0 : index
    %22 = vector.load %arg6[%c0_15, %c0_16] : memref<600x128xbf16, #tpu.memory_space<vmem>>, vector<600x128xbf16>
    %cst_17 = arith.constant dense<0.000000e+00> : vector<16x128xf32>
    %23 = tpu.matmul %21, %22, %cst_17 {dimension_numbers = #tpu.dot_dimension_numbers<[1], [0], [0], [1], [0, 0, 1, 1], [], []>} : vector<16x600xbf16>, vector<600x128xbf16>, vector<16x128xf32> -> vector<16x128xf32>
    %c0_18 = arith.constant 0 : index
    %c0_19 = arith.constant 0 : index
    %24 = vector.load %arg7[%c0_18, %c0_19] : memref<1x128xf32, #tpu.memory_space<vmem>>, vector<1x128xf32>
    %25 = vector.broadcast %24 : vector<1x128xf32> to vector<16x128xf32>
    %26 = arith.addf %23, %25 : vector<16x128xf32>
    %c0_20 = arith.constant 0 : index
    %c0_21 = arith.constant 0 : index
    %27 = vector.load %arg15[%c0_20, %c0_21] : memref<16x128xf32, #tpu.memory_space<vmem>>, vector<16x128xf32>
    tpu.vector_store %arg15[%c0_20, %c0_21], %26 {strides = array<i32>} : memref<16x128xf32, #tpu.memory_space<vmem>>, vector<16x128xf32>,
    %28 = vector.extract_strided_slice %26 {offsets = [0, 0], sizes = [16, 32], strides = [1, 1]} : vector<16x128xf32> to vector<16x32xf32>
    %29 = vector.extract_strided_slice %26 {offsets = [0, 32], sizes = [16, 32], strides = [1, 1]} : vector<16x128xf32> to vector<16x32xf32>
    %c0_22 = arith.constant 0 : index
    %c0_23 = arith.constant 0 : index
    %30 = vector.load %arg3[%c0_22, %c0_23] : memref<16x32xf32, #tpu.memory_space<vmem>>, vector<16x32xf32>
    %cst_24 = arith.constant 5.000000e-01 : f32
    %31 = vector.broadcast %cst_24 : f32 to vector<16x32xf32>
    %32 = arith.mulf %31, %29 : vector<16x32xf32>
    %33 = math.exp %32 : vector<16x32xf32>
    %34 = arith.mulf %30, %33 : vector<16x32xf32>
    %35 = arith.addf %28, %34 : vector<16x32xf32>
    %36 = arith.truncf %35 : vector<16x32xf32> to vector<16x32xbf16>
    %c0_25 = arith.constant 0 : index
    %c0_26 = arith.constant 0 : index
    %37 = vector.load %arg10[%c0_25, %c0_26] : memref<32x400xbf16, #tpu.memory_space<vmem>>, vector<32x400xbf16>
    %cst_27 = arith.constant dense<0.000000e+00> : vector<16x400xf32>
    %38 = tpu.matmul %36, %37, %cst_27 {dimension_numbers = #tpu.dot_dimension_numbers<[1], [0], [0], [1], [0, 0, 1, 1], [], []>} : vector<16x32xbf16>, vector<32x400xbf16>, vector<16x400xf32> -> vector<16x400xf32>
    %c0_28 = arith.constant 0 : index
    %c0_29 = arith.constant 0 : index
    %39 = vector.load %arg11[%c0_28, %c0_29] : memref<1x400xf32, #tpu.memory_space<vmem>>, vector<1x400xf32>
    %40 = vector.broadcast %39 : vector<1x400xf32> to vector<16x400xf32>
    %41 = arith.addf %38, %40 : vector<16x400xf32>
    %cst_30 = arith.constant 0.000000e+00 : f32
    %42 = vector.broadcast %cst_30 : f32 to vector<16x400xf32>
    %43 = arith.cmpf ogt, %41, %42 : vector<16x400xf32>
    %cst_31 = arith.constant 0.00999999977 : f32
    %44 = vector.broadcast %cst_31 : f32 to vector<16x400xf32>
    %45 = arith.mulf %44, %41 : vector<16x400xf32>
    %46 = arith.select %43, %41, %45 : vector<16x400xi1>, vector<16x400xf32>
    %47 = arith.truncf %46 : vector<16x400xf32> to vector<16x400xbf16>
    %c0_32 = arith.constant 0 : index
    %c0_33 = arith.constant 0 : index
    %48 = vector.load %arg12[%c0_32, %c0_33] : memref<400x784xbf16, #tpu.memory_space<vmem>>, vector<400x784xbf16>
    %cst_34 = arith.constant dense<0.000000e+00> : vector<16x784xf32>
    %49 = tpu.matmul %47, %48, %cst_34 {dimension_numbers = #tpu.dot_dimension_numbers<[1], [0], [0], [1], [0, 0, 1, 1], [], []>} : vector<16x400xbf16>, vector<400x784xbf16>, vector<16x784xf32> -> vector<16x784xf32>
    %c0_35 = arith.constant 0 : index
    %c0_36 = arith.constant 0 : index
    %50 = vector.load %arg13[%c0_35, %c0_36] : memref<1x784xf32, #tpu.memory_space<vmem>>, vector<1x784xf32>
    %51 = vector.broadcast %50 : vector<1x784xf32> to vector<16x784xf32>
    %52 = arith.addf %49, %51 : vector<16x784xf32>
    %53 = arith.negf %52 : vector<16x784xf32>
    %54 = math.exp %53 : vector<16x784xf32>
    %cst_37 = arith.constant 1.000000e+00 : f32
    %55 = vector.broadcast %cst_37 : f32 to vector<16x784xf32>
    %56 = arith.addf %55, %54 : vector<16x784xf32>
    %57 = arith.divf %55, %56 : vector<16x784xf32>
    %58 = arith.truncf %57 : vector<16x784xf32> to vector<16x784xbf16>
    %c0_38 = arith.constant 0 : index
    %c0_39 = arith.constant 0 : index
    %59 = vector.load %arg14[%c0_38, %c0_39] : memref<16x784xbf16, #tpu.memory_space<vmem>>, vector<16x784xbf16>
    tpu.vector_store %arg14[%c0_38, %c0_39], %58 {strides = array<i32>} : memref<16x784xbf16, #tpu.memory_space<vmem>>, vector<16x784xbf16>,
    return
  }
  func.func @transform_0(%arg0: i32) -> (i32, i32) {
    %c0_i32 = arith.constant 0 : i32
    %c0_i32_0 = arith.constant 0 : i32
    return %arg0, %c0_i32 : i32, i32
  }
  func.func @transform_1(%arg0: i32) -> (i32, i32) {
    %c0_i32 = arith.constant 0 : i32
    %c0_i32_0 = arith.constant 0 : i32
    return %arg0, %c0_i32 : i32, i32
  }
  func.func @transform_2(%arg0: i32) -> (i32, i32) {
    %c0_i32 = arith.constant 0 : i32
    %c0_i32_0 = arith.constant 0 : i32
    return %arg0, %c0_i32 : i32, i32
  }
  func.func @transform_3(%arg0: i32) -> (i32, i32) {
    %c0_i32 = arith.constant 0 : i32
    %c0_i32_0 = arith.constant 0 : i32
    %c0_i32_1 = arith.constant 0 : i32
    return %c0_i32, %c0_i32_0 : i32, i32
  }
  func.func @transform_4(%arg0: i32) -> (i32, i32) {
    %c0_i32 = arith.constant 0 : i32
    %c0_i32_0 = arith.constant 0 : i32
    %c0_i32_1 = arith.constant 0 : i32
    return %c0_i32, %c0_i32_0 : i32, i32
  }
  func.func @transform_5(%arg0: i32) -> (i32, i32) {
    %c0_i32 = arith.constant 0 : i32
    %c0_i32_0 = arith.constant 0 : i32
    %c0_i32_1 = arith.constant 0 : i32
    return %c0_i32, %c0_i32_0 : i32, i32
  }
  func.func @transform_6(%arg0: i32) -> (i32, i32) {
    %c0_i32 = arith.constant 0 : i32
    %c0_i32_0 = arith.constant 0 : i32
    %c0_i32_1 = arith.constant 0 : i32
    return %c0_i32, %c0_i32_0 : i32, i32
  }
  func.func @transform_7(%arg0: i32) -> (i32, i32) {
    %c0_i32 = arith.constant 0 : i32
    %c0_i32_0 = arith.constant 0 : i32
    %c0_i32_1 = arith.constant 0 : i32
    return %c0_i32, %c0_i32_0 : i32, i32
  }
  func.func @transform_8(%arg0: i32) -> (i32, i32) {
    %c0_i32 = arith.constant 0 : i32
    %c0_i32_0 = arith.constant 0 : i32
    %c0_i32_1 = arith.constant 0 : i32
    return %c0_i32, %c0_i32_0 : i32, i32
  }
  func.func @transform_9(%arg0: i32) -> (i32, i32) {
    %c0_i32 = arith.constant 0 : i32
    %c0_i32_0 = arith.constant 0 : i32
    %c0_i32_1 = arith.constant 0 : i32
    return %c0_i32, %c0_i32_0 : i32, i32
  }
  func.func @transform_10(%arg0: i32) -> (i32, i32) {
    %c0_i32 = arith.constant 0 : i32
    %c0_i32_0 = arith.constant 0 : i32
    %c0_i32_1 = arith.constant 0 : i32
    return %c0_i32, %c0_i32_0 : i32, i32
  }
  func.func @transform_11(%arg0: i32) -> (i32, i32) {
    %c0_i32 = arith.constant 0 : i32
    %c0_i32_0 = arith.constant 0 : i32
    %c0_i32_1 = arith.constant 0 : i32
    return %c0_i32, %c0_i32_0 : i32, i32
  }
  func.func @transform_12(%arg0: i32) -> (i32, i32) {
    %c0_i32 = arith.constant 0 : i32
    %c0_i32_0 = arith.constant 0 : i32
    %c0_i32_1 = arith.constant 0 : i32
    return %c0_i32, %c0_i32_0 : i32, i32
  }
  func.func @transform_13(%arg0: i32) -> (i32, i32) {
    %c0_i32 = arith.constant 0 : i32
    %c0_i32_0 = arith.constant 0 : i32
    return %arg0, %c0_i32 : i32, i32
  }
  func.func @transform_14(%arg0: i32) -> (i32, i32) {
    %c0_i32 = arith.constant 0 : i32
    %c0_i32_0 = arith.constant 0 : i32
    return %arg0, %c0_i32 : i32, i32
  }
}

</mosaic_0001>

<llo_original>
// kernel: ivae_forward.1
$region0: #{ivae_forward.1}
  #allocation0 [shape = 'u32[]', space=smem, size = 0x4, offset = 0x4, fixed_abs, tag = 'smem constant byte address 0x4 - core index']
  #allocation1 [shape = 'u32[144,128]{1,0:T(1,128)}', space=vmem, size = 0x12000, scoped, tag = 'internal scratch']
  %s0 = inlined_call_operand.vmem [shape: bf16[16,784], index: 0, kind: input, shape index: {}]
  %s1 = inlined_call_operand.vmem [shape: bf16[16,10], index: 1, kind: input, shape index: {}]
  %s2 = inlined_call_operand.vmem [shape: f32[16,32], index: 2, kind: input, shape index: {}]
  %s3 = inlined_call_operand.vmem [shape: bf16[784,400], index: 3, kind: input, shape index: {}]
  %s4 = inlined_call_operand.vmem [shape: f32[1,400], index: 4, kind: input, shape index: {}]
  %s5 = inlined_call_operand.vmem [shape: bf16[600,128], index: 5, kind: input, shape index: {}]
  %s6 = inlined_call_operand.vmem [shape: f32[1,128], index: 6, kind: input, shape index: {}]
  %s7 = inlined_call_operand.vmem [shape: bf16[10,200], index: 7, kind: input, shape index: {}]
  %s8 = inlined_call_operand.vmem [shape: f32[1,200], index: 8, kind: input, shape index: {}]
  %s9 = inlined_call_operand.vmem [shape: bf16[32,400], index: 9, kind: input, shape index: {}]
  %s10 = inlined_call_operand.vmem [shape: f32[1,400], index: 10, kind: input, shape index: {}]
  %s11 = inlined_call_operand.vmem [shape: bf16[400,784], index: 11, kind: input, shape index: {}]
  %s12 = inlined_call_operand.vmem [shape: f32[1,784], index: 12, kind: input, shape index: {}]
  %s13 = inlined_call_operand.vmem [shape: bf16[16,784], index: 13, kind: output, shape index: {0}]
  %s14 = inlined_call_operand.vmem [shape: f32[16,128], index: 14, kind: output, shape index: {1}]
  %15 = xla_tuple %s13, %s14
  %s16 = sld [smem:[#allocation0]]
  $region70: #{ivae_forward.1} parent=0
    _
  %s18 = ssub.s32 1, %s16
  %s19 = scalar_select 0, %s18, %s16
  // Predicated region
  $region2: #{ivae_forward.1} parent=0 // pred_check
    _
  $region3: #{ivae_forward.1} parent=0 // pred_check_branch
    %21 = sbr.rel (0) target = $region5
  $region4: #{ivae_forward.1} parent=0 // pred_region
    _
  $region5: #{ivae_forward.1} parent=0 // pred_fallthru
    _
  // Predicated region
  $region6: #{ivae_forward.1} parent=0 // pred_check
    _
  $region7: #{ivae_forward.1} parent=0 // pred_check_branch
    %23 = sbr.rel (0) target = $region9
  $region8: #{ivae_forward.1} parent=0 // pred_region
    _
  $region9: #{ivae_forward.1} parent=0 // pred_fallthru
    _
  // Predicated region
  $region10: #{ivae_forward.1} parent=0 // pred_check
    _
  $region11: #{ivae_forward.1} parent=0 // pred_check_branch
    %25 = sbr.rel (0) target = $region13
  $region12: #{ivae_forward.1} parent=0 // pred_region
    _
  $region13: #{ivae_forward.1} parent=0 // pred_fallthru
    _
  // Predicated region
  $region14: #{ivae_forward.1} parent=0 // pred_check
    _
  $region15: #{ivae_forward.1} parent=0 // pred_check_branch
    %27 = sbr.rel (0) target = $region17
  $region16: #{ivae_forward.1} parent=0 // pred_region
    _
  $region17: #{ivae_forward.1} parent=0 // pred_fallthru
    _
  // Predicated region
  $region18: #{ivae_forward.1} parent=0 // pred_check
    _
  $region19: #{ivae_forward.1} parent=0 // pred_check_branch
    %29 = sbr.rel (0) target = $region21
  $region20: #{ivae_forward.1} parent=0 // pred_region
    _
  $region21: #{ivae_forward.1} parent=0 // pred_fallthru
    _
  // Predicated region
  $region22: #{ivae_forward.1} parent=0 // pred_check
    _
  $region23: #{ivae_forward.1} parent=0 // pred_check_branch
    %31 = sbr.rel (0) target = $region25
  $region24: #{ivae_forward.1} parent=0 // pred_region
    _
  $region25: #{ivae_forward.1} parent=0 // pred_fallthru
    _
  // Predicated region
  $region26: #{ivae_forward.1} parent=0 // pred_check
    _
  $region27: #{ivae_forward.1} parent=0 // pred_check_branch
    %33 = sbr.rel (0) target = $region29
  $region28: #{ivae_forward.1} parent=0 // pred_region
    _
  $region29: #{ivae_forward.1} parent=0 // pred_fallthru
    _
  // Predicated region
  $region30: #{ivae_forward.1} parent=0 // pred_check
    _
  $region31: #{ivae_forward.1} parent=0 // pred_check_branch
    %35 = sbr.rel (0) target = $region33
  $region32: #{ivae_forward.1} parent=0 // pred_region
    _
  $region33: #{ivae_forward.1} parent=0 // pred_fallthru
    _
  // Predicated region
  $region34: #{ivae_forward.1} parent=0 // pred_check
    _
  $region35: #{ivae_forward.1} parent=0 // pred_check_branch
    %37 = sbr.rel (0) target = $region37
  $region36: #{ivae_forward.1} parent=0 // pred_region
    _
  $region37: #{ivae_forward.1} parent=0 // pred_fallthru
    _
  // Predicated region
  $region38: #{ivae_forward.1} parent=0 // pred_check
    _
  $region39: #{ivae_forward.1} parent=0 // pred_check_branch
    %39 = sbr.rel (0) target = $region41
  $region40: #{ivae_forward.1} parent=0 // pred_region
    _
  $region41: #{ivae_forward.1} parent=0 // pred_fallthru
    _
  // Predicated region
  $region42: #{ivae_forward.1} parent=0 // pred_check
    _
  $region43: #{ivae_forward.1} parent=0 // pred_check_branch
    %41 = sbr.rel (0) target = $region45
  $region44: #{ivae_forward.1} parent=0 // pred_region
    _
  $region45: #{ivae_forward.1} parent=0 // pred_fallthru
    _
  // Predicated region
  $region46: #{ivae_forward.1} parent=0 // pred_check
    _
  $region47: #{ivae_forward.1} parent=0 // pred_check_branch
    %43 = sbr.rel (0) target = $region49
  $region48: #{ivae_forward.1} parent=0 // pred_region
    _
  $region49: #{ivae_forward.1} parent=0 // pred_fallthru
    _
  // Predicated region
  $region50: #{ivae_forward.1} parent=0 // pred_check
    _
  $region51: #{ivae_forward.1} parent=0 // pred_check_branch
    %45 = sbr.rel (0) target = $region53
  $region52: #{ivae_forward.1} parent=0 // pred_region
    _
  $region53: #{ivae_forward.1} parent=0 // pred_fallthru
    _
  %v47 = vld [vmem:[%s0] sm:$0xff]
  %v48 = vld [vmem:[%s0 + $0x8] sm:$0xff]
  %v49 = vld [vmem:[%s0 + $0x10] sm:$0xff]
  %v50 = vld [vmem:[%s0 + $0x18] sm:$0xf]
  %v51 = vld [vmem:[%s0 + $0x1c] sm:$0xff]
  %v52 = vld [vmem:[%s0 + $0x24] sm:$0xff]
  %v53 = vld [vmem:[%s0 + $0x2c] sm:$0xff]
  %v54 = vld [vmem:[%s0 + $0x34] sm:$0xf]
  %v55 = vld [vmem:[%s3] sm:$0xff]
  %v56 = vld [vmem:[%s3 + $0x8] sm:$0xff]
  %v57 = vld [vmem:[%s3 + $0x10] sm:$0xff]
  %v58 = vld [vmem:[%s3 + $0x18] sm:$0xff]
  %v59 = vld [vmem:[%s3 + $0x20] sm:$0xff]
  %v60 = vld [vmem:[%s3 + $0x28] sm:$0xff]
  %v61 = vld [vmem:[%s3 + $0x30] sm:$0xff]
  %v62 = vld [vmem:[%s3 + $0x38] sm:$0xff]
  %v63 = vld [vmem:[%s3 + $0x40] sm:$0xff]
  %v64 = vld [vmem:[%s3 + $0x48] sm:$0xff]
  %v65 = vld [vmem:[%s3 + $0x50] sm:$0xff]
  %v66 = vld [vmem:[%s3 + $0x58] sm:$0xff]
  %v67 = vld [vmem:[%s3 + $0x60] sm:$0xff]
  %v68 = vld [vmem:[%s3 + $0x68] sm:$0xff]
  %v69 = vld [vmem:[%s3 + $0x70] sm:$0xff]
  %v70 = vld [vmem:[%s3 + $0x78] sm:$0xff]
  %v71 = vld [vmem:[%s3 + $0x80] sm:$0xff]
  %v72 = vld [vmem:[%s3 + $0x88] sm:$0xff]
  %v73 = vld [vmem:[%s3 + $0x90] sm:$0xff]
  %v74 = vld [vmem:[%s3 + $0x98] sm:$0xff]
  %v75 = vld [vmem:[%s3 + $0xa0] sm:$0xff]
  %v76 = vld [vmem:[%s3 + $0xa8] sm:$0xff]
  %v77 = vld [vmem:[%s3 + $0xb0] sm:$0xff]
  %v78 = vld [vmem:[%s3 + $0xb8] sm:$0xff]
  %v79 = vld [vmem:[%s3 + $0xc0] sm:$0xff]
  %v80 = vld [vmem:[%s3 + $0xc8] sm:$0xff]
  %v81 = vld [vmem:[%s3 + $0xd0] sm:$0xff]
  %v82 = vld [vmem:[%s3 + $0xd8] sm:$0xff]
  %v83 = vld [vmem:[%s3 + $0xe0] sm:$0xff]
  %v84 = vld [vmem:[%s3 + $0xe8] sm:$0xff]
  %v85 = vld [vmem:[%s3 + $0xf0] sm:$0xff]
  %v86 = vld [vmem:[%s3 + $0xf8] sm:$0xff]
  %v87 = vld [vmem:[%s3 + $0x100] sm:$0xff]
  %v88 = vld [vmem:[%s3 + $0x108] sm:$0xff]
  %v89 = vld [vmem:[%s3 + $0x110] sm:$0xff]
  %v90 = vld [vmem:[%s3 + $0x118] sm:$0xff]
  %v91 = vld [vmem:[%s3 + $0x120] sm:$0xff]
  %v92 = vld [vmem:[%s3 + $0x128] sm:$0xff]
  %v93 = vld [vmem:[%s3 + $0x130] sm:$0xff]
  %v94 = vld [vmem:[%s3 + $0x138] sm:$0xff]
  %v95 = vld [vmem:[%s3 + $0x140] sm:$0xff]
  %v96 = vld [vmem:[%s3 + $0x148] sm:$0xff]
  %v97 = vld [vmem:[%s3 + $0x150] sm:$0xff]
  %v98 = vld [vmem:[%s3 + $0x158] sm:$0xff]
  %v99 = vld [vmem:[%s3 + $0x160] sm:$0xff]
  %v100 = vld [vmem:[%s3 + $0x168] sm:$0xff]
  %v101 = vld [vmem:[%s3 + $0x170] sm:$0xff]
  %v102 = vld [vmem:[%s3 + $0x178] sm:$0xff]
  %v103 = vld [vmem:[%s3 + $0x180] sm:$0xff]
  %v104 = vld [vmem:[%s3 + $0x188] sm:$0xff]
  %v105 = vld [vmem:[%s3 + $0x190] sm:$0xff]
  %v106 = vld [vmem:[%s3 + $0x198] sm:$0xff]
  %v107 = vld [vmem:[%s3 + $0x1a0] sm:$0xff]
  %v108 = vld [vmem:[%s3 + $0x1a8] sm:$0xff]
  %v109 = vld [vmem:[%s3 + $0x1b0] sm:$0xff]
  %v110 = vld [vmem:[%s3 + $0x1b8] sm:$0xff]
  %v111 = vld [vmem:[%s3 + $0x1c0] sm:$0xff]
  %v112 = vld [vmem:[%s3 + $0x1c8] sm:$0xff]
  %v113 = vld [vmem:[%s3 + $0x1d0] sm:$0xff]
  %v114 = vld [vmem:[%s3 + $0x1d8] sm:$0xff]
  %v115 = vld [vmem:[%s3 + $0x1e0] sm:$0xff]
  %v116 = vld [vmem:[%s3 + $0x1e8] sm:$0xff]
  %v117 = vld [vmem:[%s3 + $0x1f0] sm:$0xff]
  %v118 = vld [vmem:[%s3 + $0x1f8] sm:$0xff]
  %v119 = vld [vmem:[%s3 + $0x200] sm:$0xff]
  %v120 = vld [vmem:[%s3 + $0x208] sm:$0xff]
  %v121 = vld [vmem:[%s3 + $0x210] sm:$0xff]
  %v122 = vld [vmem:[%s3 + $0x218] sm:$0xff]
  %v123 = vld [vmem:[%s3 + $0x220] sm:$0xff]
  %v124 = vld [vmem:[%s3 + $0x228] sm:$0xff]
  %v125 = vld [vmem:[%s3 + $0x230] sm:$0xff]
  %v126 = vld [vmem:[%s3 + $0x238] sm:$0xff]
  %v127 = vld [vmem:[%s3 + $0x240] sm:$0xff]
  %v128 = vld [vmem:[%s3 + $0x248] sm:$0xff]
  %v129 = vld [vmem:[%s3 + $0x250] sm:$0xff]
  %v130 = vld [vmem:[%s3 + $0x258] sm:$0xff]
  %v131 = vld [vmem:[%s3 + $0x260] sm:$0xff]
  %v132 = vld [vmem:[%s3 + $0x268] sm:$0xff]
  %v133 = vld [vmem:[%s3 + $0x270] sm:$0xff]
  %v134 = vld [vmem:[%s3 + $0x278] sm:$0xff]
  %v135 = vld [vmem:[%s3 + $0x280] sm:$0xff]
  %v136 = vld [vmem:[%s3 + $0x288] sm:$0xff]
  %v137 = vld [vmem:[%s3 + $0x290] sm:$0xff]
  %v138 = vld [vmem:[%s3 + $0x298] sm:$0xff]
  %v139 = vld [vmem:[%s3 + $0x2a0] sm:$0xff]
  %v140 = vld [vmem:[%s3 + $0x2a8] sm:$0xff]
  %v141 = vld [vmem:[%s3 + $0x2b0] sm:$0xff]
  %v142 = vld [vmem:[%s3 + $0x2b8] sm:$0xff]
  %v143 = vld [vmem:[%s3 + $0x2c0] sm:$0xff]
  %v144 = vld [vmem:[%s3 + $0x2c8] sm:$0xff]
  %v145 = vld [vmem:[%s3 + $0x2d0] sm:$0xff]
  %v146 = vld [vmem:[%s3 + $0x2d8] sm:$0xff]
  %v147 = vld [vmem:[%s3 + $0x2e0] sm:$0xff]
  %v148 = vld [vmem:[%s3 + $0x2e8] sm:$0xff]
  %v149 = vld [vmem:[%s3 + $0x2f0] sm:$0xff]
  %v150 = vld [vmem:[%s3 + $0x2f8] sm:$0xff]
  %v151 = vld [vmem:[%s3 + $0x300] sm:$0xff]
  %v152 = vld [vmem:[%s3 + $0x308] sm:$0xff]
  %v153 = vld [vmem:[%s3 + $0x310] sm:$0xff]
  %v154 = vld [vmem:[%s3 + $0x318] sm:$0xff]
  %v155 = vld [vmem:[%s3 + $0x320] sm:$0xff]
  %v156 = vld [vmem:[%s3 + $0x328] sm:$0xff]
  %v157 = vld [vmem:[%s3 + $0x330] sm:$0xff]
  %v158 = vld [vmem:[%s3 + $0x338] sm:$0xff]
  %v159 = vld [vmem:[%s3 + $0x340] sm:$0xff]
  %v160 = vld [vmem:[%s3 + $0x348] sm:$0xff]
  %v161 = vld [vmem:[%s3 + $0x350] sm:$0xff]
  %v162 = vld [vmem:[%s3 + $0x358] sm:$0xff]
  %v163 = vld [vmem:[%s3 + $0x360] sm:$0xff]
  %v164 = vld [vmem:[%s3 + $0x368] sm:$0xff]
  %v165 = vld [vmem:[%s3 + $0x370] sm:$0xff]
  %v166 = vld [vmem:[%s3 + $0x378] sm:$0xff]
  %v167 = vld [vmem:[%s3 + $0x380] sm:$0xff]
  %v168 = vld [vmem:[%s3 + $0x388] sm:$0xff]
  %v169 = vld [vmem:[%s3 + $0x390] sm:$0xff]
  %v170 = vld [vmem:[%s3 + $0x398] sm:$0xff]
  %v171 = vld [vmem:[%s3 + $0x3a0] sm:$0xff]
  %v172 = vld [vmem:[%s3 + $0x3a8] sm:$0xff]
  %v173 = vld [vmem:[%s3 + $0x3b0] sm:$0xff]
  %v174 = vld [vmem:[%s3 + $0x3b8] sm:$0xff]
  %v175 = vld [vmem:[%s3 + $0x3c0] sm:$0xff]
  %v176 = vld [vmem:[%s3 + $0x3c8] sm:$0xff]
  %v177 = vld [vmem:[%s3 + $0x3d0] sm:$0xff]
  %v178 = vld [vmem:[%s3 + $0x3d8] sm:$0xff]
  %v179 = vld [vmem:[%s3 + $0x3e0] sm:$0xff]
  %v180 = vld [vmem:[%s3 + $0x3e8] sm:$0xff]
  %v181 = vld [vmem:[%s3 + $0x3f0] sm:$0xff]
  %v182 = vld [vmem:[%s3 + $0x3f8] sm:$0xff]
  %v183 = vld [vmem:[%s3 + $0x400] sm:$0xff]
  %v184 = vld [vmem:[%s3 + $0x408] sm:$0xff]
  %v185 = vld [vmem:[%s3 + $0x410] sm:$0xff]
  %v186 = vld [vmem:[%s3 + $0x418] sm:$0xff]
  %v187 = vld [vmem:[%s3 + $0x420] sm:$0xff]
  %v188 = vld [vmem:[%s3 + $0x428] sm:$0xff]
  %v189 = vld [vmem:[%s3 + $0x430] sm:$0xff]
  %v190 = vld [vmem:[%s3 + $0x438] sm:$0xff]
  %v191 = vld [vmem:[%s3 + $0x440] sm:$0xff]
  %v192 = vld [vmem:[%s3 + $0x448] sm:$0xff]
  %v193 = vld [vmem:[%s3 + $0x450] sm:$0xff]
  %v194 = vld [vmem:[%s3 + $0x458] sm:$0xff]
  %v195 = vld [vmem:[%s3 + $0x460] sm:$0xff]
  %v196 = vld [vmem:[%s3 + $0x468] sm:$0xff]
  %v197 = vld [vmem:[%s3 + $0x470] sm:$0xff]
  %v198 = vld [vmem:[%s3 + $0x478] sm:$0xff]
  %v199 = vld [vmem:[%s3 + $0x480] sm:$0xff]
  %v200 = vld [vmem:[%s3 + $0x488] sm:$0xff]
  %v201 = vld [vmem:[%s3 + $0x490] sm:$0xff]
  %v202 = vld [vmem:[%s3 + $0x498] sm:$0xff]
  %v203 = vld [vmem:[%s3 + $0x4a0] sm:$0xff]
  %v204 = vld [vmem:[%s3 + $0x4a8] sm:$0xff]
  %v205 = vld [vmem:[%s3 + $0x4b0] sm:$0xff]
  %v206 = vld [vmem:[%s3 + $0x4b8] sm:$0xff]
  %v207 = vld [vmem:[%s3 + $0x4c0] sm:$0xff]
  %v208 = vld [vmem:[%s3 + $0x4c8] sm:$0xff]
  %v209 = vld [vmem:[%s3 + $0x4d0] sm:$0xff]
  %v210 = vld [vmem:[%s3 + $0x4d8] sm:$0xff]
  %v211 = vld [vmem:[%s3 + $0x4e0] sm:$0xff]
  %v212 = vld [vmem:[%s3 + $0x4e8] sm:$0xff]
  %v213 = vld [vmem:[%s3 + $0x4f0] sm:$0xff]
  %v214 = vld [vmem:[%s3 + $0x4f8] sm:$0xff]
  %v215 = vld [vmem:[%s3 + $0x500] sm:$0xff]
  %v216 = vld [vmem:[%s3 + $0x508] sm:$0xff]
  %v217 = vld [vmem:[%s3 + $0x510] sm:$0xff]
  %v218 = vld [vmem:[%s3 + $0x518] sm:$0xff]
  %v219 = vld [vmem:[%s3 + $0x520] sm:$0xff]
  %v220 = vld [vmem:[%s3 + $0x528] sm:$0xff]
  %v221 = vld [vmem:[%s3 + $0x530] sm:$0xff]
  %v222 = vld [vmem:[%s3 + $0x538] sm:$0xff]
  %v223 = vld [vmem:[%s3 + $0x540] sm:$0xff]
  %v224 = vld [vmem:[%s3 + $0x548] sm:$0xff]
  %v225 = vld [vmem:[%s3 + $0x550] sm:$0xff]
  %v226 = vld [vmem:[%s3 + $0x558] sm:$0xff]
  %v227 = vld [vmem:[%s3 + $0x560] sm:$0xff]
  %v228 = vld [vmem:[%s3 + $0x568] sm:$0xff]
  %v229 = vld [vmem:[%s3 + $0x570] sm:$0xff]
  %v230 = vld [vmem:[%s3 + $0x578] sm:$0xff]
  %v231 = vld [vmem:[%s3 + $0x580] sm:$0xff]
  %v232 = vld [vmem:[%s3 + $0x588] sm:$0xff]
  %v233 = vld [vmem:[%s3 + $0x590] sm:$0xff]
  %v234 = vld [vmem:[%s3 + $0x598] sm:$0xff]
  %v235 = vld [vmem:[%s3 + $0x5a0] sm:$0xff]
  %v236 = vld [vmem:[%s3 + $0x5a8] sm:$0xff]
  %v237 = vld [vmem:[%s3 + $0x5b0] sm:$0xff]
  %v238 = vld [vmem:[%s3 + $0x5b8] sm:$0xff]
  %v239 = vld [vmem:[%s3 + $0x5c0] sm:$0xff]
  %v240 = vld [vmem:[%s3 + $0x5c8] sm:$0xff]
  %v241 = vld [vmem:[%s3 + $0x5d0] sm:$0xff]
  %v242 = vld [vmem:[%s3 + $0x5d8] sm:$0xff]
  %v243 = vld [vmem:[%s3 + $0x5e0] sm:$0xff]
  %v244 = vld [vmem:[%s3 + $0x5e8] sm:$0xff]
  %v245 = vld [vmem:[%s3 + $0x5f0] sm:$0xff]
  %v246 = vld [vmem:[%s3 + $0x5f8] sm:$0xff]
  %v247 = vld [vmem:[%s3 + $0x600] sm:$0xff]
  %v248 = vld [vmem:[%s3 + $0x608] sm:$0xff]
  %v249 = vld [vmem:[%s3 + $0x610] sm:$0xff]
  %v250 = vld [vmem:[%s3 + $0x618] sm:$0xff]
  %v251 = vld [vmem:[%s4] sm:$0xf]
  %v253 = vlaneseq
  %v254 = vshrl.u32 %v253, 7
  %v255 = vsub.s32 0, %v254
  %v256 = vrot.slane %v251, %v255
  %v257 = vlaneseq
  %v258 = vshrl.u32 %v257, 7
  %v259 = vsub.s32 1, %v258
  %v260 = vrot.slane %v251, %v259
  %v261 = vlaneseq
  %v262 = vshrl.u32 %v261, 7
  %v263 = vsub.s32 2, %v262
  %v264 = vrot.slane %v251, %v263
  %v265 = vlaneseq
  %v266 = vshrl.u32 %v265, 7
  %v267 = vsub.s32 3, %v266
  %v268 = vrot.slane %v251, %v267
  %v281 = vunpack.c.l.b16 %v47
  %v282 = vunpack.c.h.b16 %v47
  %v283 = vunpack.c.l.b16 %v48
  %v284 = vunpack.c.h.b16 %v48
  %v285 = vunpack.c.l.b16 %v49
  %v286 = vunpack.c.h.b16 %v49
  %v287 = vunpack.c.l.b16 %v50
  %v288 = vunpack.c.l.b16 %v51
  %v289 = vunpack.c.h.b16 %v51
  %v290 = vunpack.c.l.b16 %v52
  %v291 = vunpack.c.h.b16 %v52
  %v292 = vunpack.c.l.b16 %v53
  %v293 = vunpack.c.h.b16 %v53
  %v294 = vunpack.c.l.b16 %v54
  %v295 = vpack.c.b16 %v288, %v281
  %v296 = vpack.c.b16 %v289, %v282
  %v297 = vpack.c.b16 %v290, %v283
  %v298 = vpack.c.b16 %v291, %v284
  %v299 = vpack.c.b16 %v292, %v285
  %v300 = vpack.c.b16 %v293, %v286
  %v301 = vpack.c.b16 %v294, %v287
  %v504 = vunpack.c.l.b16 %v55
  %v505 = vunpack.c.h.b16 %v55
  %v506 = vunpack.c.l.b16 %v56
  %v507 = vunpack.c.h.b16 %v56
  %v508 = vunpack.c.l.b16 %v57
  %v509 = vunpack.c.h.b16 %v57
  %v510 = vunpack.c.l.b16 %v58
  %v511 = vunpack.c.h.b16 %v58
  %v512 = vunpack.c.l.b16 %v59
  %v513 = vunpack.c.h.b16 %v59
  %v514 = vunpack.c.l.b16 %v60
  %v515 = vunpack.c.h.b16 %v60
  %v516 = vunpack.c.l.b16 %v61
  %v517 = vunpack.c.h.b16 %v61
  %v518 = vunpack.c.l.b16 %v62
  %v519 = vunpack.c.h.b16 %v62
  %v520 = vunpack.c.l.b16 %v63
  %v521 = vunpack.c.h.b16 %v63
  %v522 = vunpack.c.l.b16 %v64
  %v523 = vunpack.c.h.b16 %v64
  %v524 = vunpack.c.l.b16 %v65
  %v525 = vunpack.c.h.b16 %v65
  %v526 = vunpack.c.l.b16 %v66
  %v527 = vunpack.c.h.b16 %v66
  %v528 = vunpack.c.l.b16 %v67
  %v529 = vunpack.c.h.b16 %v67
  %v530 = vunpack.c.l.b16 %v68
  %v531 = vunpack.c.h.b16 %v68
  %v532 = vunpack.c.l.b16 %v69
  %v533 = vunpack.c.h.b16 %v69
  %v534 = vunpack.c.l.b16 %v70
  %v535 = vunpack.c.h.b16 %v70
  %v536 = vunpack.c.l.b16 %v71
  %v537 = vunpack.c.h.b16 %v71
  %v538 = vunpack.c.l.b16 %v72
  %v539 = vunpack.c.h.b16 %v72
  %v540 = vunpack.c.l.b16 %v73
  %v541 = vunpack.c.h.b16 %v73
  %v542 = vunpack.c.l.b16 %v74
  %v543 = vunpack.c.h.b16 %v74
  %v544 = vunpack.c.l.b16 %v75
  %v545 = vunpack.c.h.b16 %v75
  %v546 = vunpack.c.l.b16 %v76
  %v547 = vunpack.c.h.b16 %v76
  %v548 = vunpack.c.l.b16 %v77
  %v549 = vunpack.c.h.b16 %v77
  %v550 = vunpack.c.l.b16 %v78
  %v551 = vunpack.c.h.b16 %v78
  %v552 = vunpack.c.l.b16 %v79
  %v553 = vunpack.c.h.b16 %v79
  %v554 = vunpack.c.l.b16 %v80
  %v555 = vunpack.c.h.b16 %v80
  %v556 = vunpack.c.l.b16 %v81
  %v557 = vunpack.c.h.b16 %v81
  %v558 = vunpack.c.l.b16 %v82
  %v559 = vunpack.c.h.b16 %v82
  %v560 = vunpack.c.l.b16 %v83
  %v561 = vunpack.c.h.b16 %v83
  %v562 = vunpack.c.l.b16 %v84
  %v563 = vunpack.c.h.b16 %v84
  %v564 = vunpack.c.l.b16 %v85
  %v565 = vunpack.c.h.b16 %v85
  %v566 = vunpack.c.l.b16 %v86
  %v567 = vunpack.c.h.b16 %v86
  %v568 = vunpack.c.l.b16 %v87
  %v569 = vunpack.c.h.b16 %v87
  %v570 = vunpack.c.l.b16 %v88
  %v571 = vunpack.c.h.b16 %v88
  %v572 = vunpack.c.l.b16 %v89
  %v573 = vunpack.c.h.b16 %v89
  %v574 = vunpack.c.l.b16 %v90
  %v575 = vunpack.c.h.b16 %v90
  %v576 = vunpack.c.l.b16 %v91
  %v577 = vunpack.c.h.b16 %v91
  %v578 = vunpack.c.l.b16 %v92
  %v579 = vunpack.c.h.b16 %v92
  %v580 = vunpack.c.l.b16 %v93
  %v581 = vunpack.c.h.b16 %v93
  %v582 = vunpack.c.l.b16 %v94
  %v583 = vunpack.c.h.b16 %v94
  %v584 = vunpack.c.l.b16 %v95
  %v585 = vunpack.c.h.b16 %v95
  %v586 = vunpack.c.l.b16 %v96
  %v587 = vunpack.c.h.b16 %v96
  %v588 = vunpack.c.l.b16 %v97
  %v589 = vunpack.c.h.b16 %v97
  %v590 = vunpack.c.l.b16 %v98
  %v591 = vunpack.c.h.b16 %v98
  %v592 = vunpack.c.l.b16 %v99
  %v593 = vunpack.c.h.b16 %v99
  %v594 = vunpack.c.l.b16 %v100
  %v595 = vunpack.c.h.b16 %v100
  %v596 = vunpack.c.l.b16 %v101
  %v597 = vunpack.c.h.b16 %v101
  %v598 = vunpack.c.l.b16 %v102
  %v599 = vunpack.c.h.b16 %v102
  %v600 = vunpack.c.l.b16 %v103
  %v601 = vunpack.c.h.b16 %v103
  %v602 = vunpack.c.l.b16 %v104
  %v603 = vunpack.c.h.b16 %v104
  %v604 = vunpack.c.l.b16 %v105
  %v605 = vunpack.c.h.b16 %v105
  %v606 = vunpack.c.l.b16 %v106
  %v607 = vunpack.c.h.b16 %v106
  %v608 = vunpack.c.l.b16 %v107
  %v609 = vunpack.c.h.b16 %v107
  %v610 = vunpack.c.l.b16 %v108
  %v611 = vunpack.c.h.b16 %v108
  %v612 = vunpack.c.l.b16 %v109
  %v613 = vunpack.c.h.b16 %v109
  %v614 = vunpack.c.l.b16 %v110
  %v615 = vunpack.c.h.b16 %v110
  %v616 = vunpack.c.l.b16 %v111
  %v617 = vunpack.c.h.b16 %v111
  %v618 = vunpack.c.l.b16 %v112
  %v619 = vunpack.c.h.b16 %v112
  %v620 = vunpack.c.l.b16 %v113
  %v621 = vunpack.c.h.b16 %v113
  %v622 = vunpack.c.l.b16 %v114
  %v623 = vunpack.c.h.b16 %v114
  %v624 = vunpack.c.l.b16 %v115
  %v625 = vunpack.c.h.b16 %v115
  %v626 = vunpack.c.l.b16 %v116
  %v627 = vunpack.c.h.b16 %v116
  %v628 = vunpack.c.l.b16 %v117
  %v629 = vunpack.c.h.b16 %v117
  %v630 = vunpack.c.l.b16 %v118
  %v631 = vunpack.c.h.b16 %v118
  %v632 = vunpack.c.l.b16 %v119
  %v633 = vunpack.c.h.b16 %v119
  %v634 = vunpack.c.l.b16 %v120
  %v635 = vunpack.c.h.b16 %v120
  %v636 = vunpack.c.l.b16 %v121
  %v637 = vunpack.c.h.b16 %v121
  %v638 = vunpack.c.l.b16 %v122
  %v639 = vunpack.c.h.b16 %v122
  %v640 = vunpack.c.l.b16 %v123
  %v641 = vunpack.c.h.b16 %v123
  %v642 = vunpack.c.l.b16 %v124
  %v643 = vunpack.c.h.b16 %v124
  %v644 = vunpack.c.l.b16 %v125
  %v645 = vunpack.c.h.b16 %v125
  %v646 = vunpack.c.l.b16 %v126
  %v647 = vunpack.c.h.b16 %v126
  %v648 = vunpack.c.l.b16 %v127
  %v649 = vunpack.c.h.b16 %v127
  %v650 = vunpack.c.l.b16 %v128
  %v651 = vunpack.c.h.b16 %v128
  %v652 = vunpack.c.l.b16 %v129
  %v653 = vunpack.c.h.b16 %v129
  %v654 = vunpack.c.l.b16 %v130
  %v655 = vunpack.c.h.b16 %v130
  %v656 = vunpack.c.l.b16 %v131
  %v657 = vunpack.c.h.b16 %v131
  %v658 = vunpack.c.l.b16 %v132
  %v659 = vunpack.c.h.b16 %v132
  %v660 = vunpack.c.l.b16 %v133
  %v661 = vunpack.c.h.b16 %v133
  %v662 = vunpack.c.l.b16 %v134
  %v663 = vunpack.c.h.b16 %v134
  %v664 = vunpack.c.l.b16 %v135
  %v665 = vunpack.c.h.b16 %v135
  %v666 = vunpack.c.l.b16 %v136
  %v667 = vunpack.c.h.b16 %v136
  %v668 = vunpack.c.l.b16 %v137
  %v669 = vunpack.c.h.b16 %v137
  %v670 = vunpack.c.l.b16 %v138
  %v671 = vunpack.c.h.b16 %v138
  %v672 = vunpack.c.l.b16 %v139
  %v673 = vunpack.c.h.b16 %v139
  %v674 = vunpack.c.l.b16 %v140
  %v675 = vunpack.c.h.b16 %v140
  %v676 = vunpack.c.l.b16 %v141
  %v677 = vunpack.c.h.b16 %v141
  %v678 = vunpack.c.l.b16 %v142
  %v679 = vunpack.c.h.b16 %v142
  %v680 = vunpack.c.l.b16 %v143
  %v681 = vunpack.c.h.b16 %v143
  %v682 = vunpack.c.l.b16 %v144
  %v683 = vunpack.c.h.b16 %v144
  %v684 = vunpack.c.l.b16 %v145
  %v685 = vunpack.c.h.b16 %v145
  %v686 = vunpack.c.l.b16 %v146
  %v687 = vunpack.c.h.b16 %v146
  %v688 = vunpack.c.l.b16 %v147
  %v689 = vunpack.c.h.b16 %v147
  %v690 = vunpack.c.l.b16 %v148
  %v691 = vunpack.c.h.b16 %v148
  %v692 = vunpack.c.l.b16 %v149
  %v693 = vunpack.c.h.b16 %v149
  %v694 = vunpack.c.l.b16 %v150
  %v695 = vunpack.c.h.b16 %v150
  %v696 = vunpack.c.l.b16 %v151
  %v697 = vunpack.c.h.b16 %v151
  %v698 = vunpack.c.l.b16 %v152
  %v699 = vunpack.c.h.b16 %v152
  %v700 = vunpack.c.l.b16 %v153
  %v701 = vunpack.c.h.b16 %v153
  %v702 = vunpack.c.l.b16 %v154
  %v703 = vunpack.c.h.b16 %v154
  %v704 = vunpack.c.l.b16 %v155
  %v705 = vunpack.c.h.b16 %v155
  %v706 = vunpack.c.l.b16 %v156
  %v707 = vunpack.c.h.b16 %v156
  %v708 = vunpack.c.l.b16 %v157
  %v709 = vunpack.c.h.b16 %v157
  %v710 = vunpack.c.l.b16 %v158
  %v711 = vunpack.c.h.b16 %v158
  %v712 = vunpack.c.l.b16 %v159
  %v713 = vunpack.c.h.b16 %v159
  %v714 = vunpack.c.l.b16 %v160
  %v715 = vunpack.c.h.b16 %v160
  %v716 = vunpack.c.l.b16 %v161
  %v717 = vunpack.c.h.b16 %v161
  %v718 = vunpack.c.l.b16 %v162
  %v719 = vunpack.c.h.b16 %v162
  %v720 = vunpack.c.l.b16 %v163
  %v721 = vunpack.c.h.b16 %v163
  %v722 = vunpack.c.l.b16 %v164
  %v723 = vunpack.c.h.b16 %v164
  %v724 = vunpack.c.l.b16 %v165
  %v725 = vunpack.c.h.b16 %v165
  %v726 = vunpack.c.l.b16 %v166
  %v727 = vunpack.c.h.b16 %v166
  %v728 = vunpack.c.l.b16 %v167
  %v729 = vunpack.c.h.b16 %v167
  %v730 = vunpack.c.l.b16 %v168
  %v731 = vunpack.c.h.b16 %v168
  %v732 = vunpack.c.l.b16 %v169
  %v733 = vunpack.c.h.b16 %v169
  %v734 = vunpack.c.l.b16 %v170
  %v735 = vunpack.c.h.b16 %v170
  %v736 = vunpack.c.l.b16 %v171
  %v737 = vunpack.c.h.b16 %v171
  %v738 = vunpack.c.l.b16 %v172
  %v739 = vunpack.c.h.b16 %v172
  %v740 = vunpack.c.l.b16 %v173
  %v741 = vunpack.c.h.b16 %v173
  %v742 = vunpack.c.l.b16 %v174
  %v743 = vunpack.c.h.b16 %v174
  %v744 = vunpack.c.l.b16 %v175
  %v745 = vunpack.c.h.b16 %v175
  %v746 = vunpack.c.l.b16 %v176
  %v747 = vunpack.c.h.b16 %v176
  %v748 = vunpack.c.l.b16 %v177
  %v749 = vunpack.c.h.b16 %v177
  %v750 = vunpack.c.l.b16 %v178
  %v751 = vunpack.c.h.b16 %v178
  %v752 = vunpack.c.l.b16 %v179
  %v753 = vunpack.c.h.b16 %v179
  %v754 = vunpack.c.l.b16 %v180
  %v755 = vunpack.c.h.b16 %v180
  %v756 = vunpack.c.l.b16 %v181
  %v757 = vunpack.c.h.b16 %v181
  %v758 = vunpack.c.l.b16 %v182
  %v759 = vunpack.c.h.b16 %v182
  %v760 = vunpack.c.l.b16 %v183
  %v761 = vunpack.c.h.b16 %v183
  %v762 = vunpack.c.l.b16 %v184
  %v763 = vunpack.c.h.b16 %v184
  %v764 = vunpack.c.l.b16 %v185
  %v765 = vunpack.c.h.b16 %v185
  %v766 = vunpack.c.l.b16 %v186
  %v767 = vunpack.c.h.b16 %v186
  %v768 = vunpack.c.l.b16 %v187
  %v769 = vunpack.c.h.b16 %v187
  %v770 = vunpack.c.l.b16 %v188
  %v771 = vunpack.c.h.b16 %v188
  %v772 = vunpack.c.l.b16 %v189
  %v773 = vunpack.c.h.b16 %v189
  %v774 = vunpack.c.l.b16 %v190
  %v775 = vunpack.c.h.b16 %v190
  %v776 = vunpack.c.l.b16 %v191
  %v777 = vunpack.c.h.b16 %v191
  %v778 = vunpack.c.l.b16 %v192
  %v779 = vunpack.c.h.b16 %v192
  %v780 = vunpack.c.l.b16 %v193
  %v781 = vunpack.c.h.b16 %v193
  %v782 = vunpack.c.l.b16 %v194
  %v783 = vunpack.c.h.b16 %v194
  %v784 = vunpack.c.l.b16 %v195
  %v785 = vunpack.c.h.b16 %v195
  %v786 = vunpack.c.l.b16 %v196
  %v787 = vunpack.c.h.b16 %v196
  %v788 = vunpack.c.l.b16 %v197
  %v789 = vunpack.c.h.b16 %v197
  %v790 = vunpack.c.l.b16 %v198
  %v791 = vunpack.c.h.b16 %v198
  %v792 = vunpack.c.l.b16 %v199
  %v793 = vunpack.c.h.b16 %v199
  %v794 = vunpack.c.l.b16 %v200
  %v795 = vunpack.c.h.b16 %v200
  %v796 = vunpack.c.l.b16 %v201
  %v797 = vunpack.c.h.b16 %v201
  %v798 = vunpack.c.l.b16 %v202
  %v799 = vunpack.c.h.b16 %v202
  %v800 = vunpack.c.l.b16 %v203
  %v801 = vunpack.c.h.b16 %v203
  %v802 = vunpack.c.l.b16 %v204
  %v803 = vunpack.c.h.b16 %v204
  %v804 = vunpack.c.l.b16 %v205
  %v805 = vunpack.c.h.b16 %v205
  %v806 = vunpack.c.l.b16 %v206
  %v807 = vunpack.c.h.b16 %v206
  %v808 = vunpack.c.l.b16 %v207
  %v809 = vunpack.c.h.b16 %v207
  %v810 = vunpack.c.l.b16 %v208
  %v811 = vunpack.c.h.b16 %v208
  %v812 = vunpack.c.l.b16 %v209
  %v813 = vunpack.c.h.b16 %v209
  %v814 = vunpack.c.l.b16 %v210
  %v815 = vunpack.c.h.b16 %v210
  %v816 = vunpack.c.l.b16 %v211
  %v817 = vunpack.c.h.b16 %v211
  %v818 = vunpack.c.l.b16 %v212
  %v819 = vunpack.c.h.b16 %v212
  %v820 = vunpack.c.l.b16 %v213
  %v821 = vunpack.c.h.b16 %v213
  %v822 = vunpack.c.l.b16 %v214
  %v823 = vunpack.c.h.b16 %v214
  %v824 = vunpack.c.l.b16 %v215
  %v825 = vunpack.c.h.b16 %v215
  %v826 = vunpack.c.l.b16 %v216
  %v827 = vunpack.c.h.b16 %v216
  %v828 = vunpack.c.l.b16 %v217
  %v829 = vunpack.c.h.b16 %v217
  %v830 = vunpack.c.l.b16 %v218
  %v831 = vunpack.c.h.b16 %v218
  %v832 = vunpack.c.l.b16 %v219
  %v833 = vunpack.c.h.b16 %v219
  %v834 = vunpack.c.l.b16 %v220
  %v835 = vunpack.c.h.b16 %v220
  %v836 = vunpack.c.l.b16 %v221
  %v837 = vunpack.c.h.b16 %v221
  %v838 = vunpack.c.l.b16 %v222
  %v839 = vunpack.c.h.b16 %v222
  %v840 = vunpack.c.l.b16 %v223
  %v841 = vunpack.c.h.b16 %v223
  %v842 = vunpack.c.l.b16 %v224
  %v843 = vunpack.c.h.b16 %v224
  %v844 = vunpack.c.l.b16 %v225
  %v845 = vunpack.c.h.b16 %v225
  %v846 = vunpack.c.l.b16 %v226
  %v847 = vunpack.c.h.b16 %v226
  %v848 = vunpack.c.l.b16 %v227
  %v849 = vunpack.c.h.b16 %v227
  %v850 = vunpack.c.l.b16 %v228
  %v851 = vunpack.c.h.b16 %v228
  %v852 = vunpack.c.l.b16 %v229
  %v853 = vunpack.c.h.b16 %v229
  %v854 = vunpack.c.l.b16 %v230
  %v855 = vunpack.c.h.b16 %v230
  %v856 = vunpack.c.l.b16 %v231
  %v857 = vunpack.c.h.b16 %v231
  %v858 = vunpack.c.l.b16 %v232
  %v859 = vunpack.c.h.b16 %v232
  %v860 = vunpack.c.l.b16 %v233
  %v861 = vunpack.c.h.b16 %v233
  %v862 = vunpack.c.l.b16 %v234
  %v863 = vunpack.c.h.b16 %v234
  %v864 = vunpack.c.l.b16 %v235
  %v865 = vunpack.c.h.b16 %v235
  %v866 = vunpack.c.l.b16 %v236
  %v867 = vunpack.c.h.b16 %v236
  %v868 = vunpack.c.l.b16 %v237
  %v869 = vunpack.c.h.b16 %v237
  %v870 = vunpack.c.l.b16 %v238
  %v871 = vunpack.c.h.b16 %v238
  %v872 = vunpack.c.l.b16 %v239
  %v873 = vunpack.c.h.b16 %v239
  %v874 = vunpack.c.l.b16 %v240
  %v875 = vunpack.c.h.b16 %v240
  %v876 = vunpack.c.l.b16 %v241
  %v877 = vunpack.c.h.b16 %v241
  %v878 = vunpack.c.l.b16 %v242
  %v879 = vunpack.c.h.b16 %v242
  %v880 = vunpack.c.l.b16 %v243
  %v881 = vunpack.c.h.b16 %v243
  %v882 = vunpack.c.l.b16 %v244
  %v883 = vunpack.c.h.b16 %v244
  %v884 = vunpack.c.l.b16 %v245
  %v885 = vunpack.c.h.b16 %v245
  %v886 = vunpack.c.l.b16 %v246
  %v887 = vunpack.c.h.b16 %v246
  %v888 = vunpack.c.l.b16 %v247
  %v889 = vunpack.c.h.b16 %v247
  %v890 = vunpack.c.l.b16 %v248
  %v891 = vunpack.c.h.b16 %v248
  %v892 = vunpack.c.l.b16 %v249
  %v893 = vunpack.c.h.b16 %v249
  %v894 = vunpack.c.l.b16 %v250
  %v895 = vunpack.c.h.b16 %v250
  %v896 = vpack.c.b16 %v508, %v504
  %v897 = vpack.c.b16 %v509, %v505
  %v898 = vpack.c.b16 %v510, %v506
  %v899 = vpack.c.b16 %v511, %v507
  %v900 = vpack.c.b16 %v516, %v512
  %v901 = vpack.c.b16 %v517, %v513
  %v902 = vpack.c.b16 %v518, %v514
  %v903 = vpack.c.b16 %v519, %v515
  %v904 = vpack.c.b16 %v524, %v520
  %v905 = vpack.c.b16 %v525, %v521
  %v906 = vpack.c.b16 %v526, %v522
  %v907 = vpack.c.b16 %v527, %v523
  %v908 = vpack.c.b16 %v532, %v528
  %v909 = vpack.c.b16 %v533, %v529
  %v910 = vpack.c.b16 %v534, %v530
  %v911 = vpack.c.b16 %v535, %v531
  %v912 = vpack.c.b16 %v540, %v536
  %v913 = vpack.c.b16 %v541, %v537
  %v914 = vpack.c.b16 %v542, %v538
  %v915 = vpack.c.b16 %v543, %v539
  %v916 = vpack.c.b16 %v548, %v544
  %v917 = vpack.c.b16 %v549, %v545
  %v918 = vpack.c.b16 %v550, %v546
  %v919 = vpack.c.b16 %v551, %v547
  %v920 = vpack.c.b16 %v556, %v552
  %v921 = vpack.c.b16 %v557, %v553
  %v922 = vpack.c.b16 %v558, %v554
  %v923 = vpack.c.b16 %v559, %v555
  %v924 = vpack.c.b16 %v564, %v560
  %v925 = vpack.c.b16 %v565, %v561
  %v926 = vpack.c.b16 %v566, %v562
  %v927 = vpack.c.b16 %v567, %v563
  %v928 = vpack.c.b16 %v572, %v568
  %v929 = vpack.c.b16 %v573, %v569
  %v930 = vpack.c.b16 %v574, %v570
  %v931 = vpack.c.b16 %v575, %v571
  %v932 = vpack.c.b16 %v580, %v576
  %v933 = vpack.c.b16 %v581, %v577
  %v934 = vpack.c.b16 %v582, %v578
  %v935 = vpack.c.b16 %v583, %v579
  %v936 = vpack.c.b16 %v588, %v584
  %v937 = vpack.c.b16 %v589, %v585
  %v938 = vpack.c.b16 %v590, %v586
  %v939 = vpack.c.b16 %v591, %v587
  %v940 = vpack.c.b16 %v596, %v592
  %v941 = vpack.c.b16 %v597, %v593
  %v942 = vpack.c.b16 %v598, %v594
  %v943 = vpack.c.b16 %v599, %v595
  %v944 = vpack.c.b16 %v604, %v600
  %v945 = vpack.c.b16 %v605, %v601
  %v946 = vpack.c.b16 %v606, %v602
  %v947 = vpack.c.b16 %v607, %v603
  %v948 = vpack.c.b16 %v612, %v608
  %v949 = vpack.c.b16 %v613, %v609
  %v950 = vpack.c.b16 %v614, %v610
  %v951 = vpack.c.b16 %v615, %v611
  %v952 = vpack.c.b16 %v620, %v616
  %v953 = vpack.c.b16 %v621, %v617
  %v954 = vpack.c.b16 %v622, %v618
  %v955 = vpack.c.b16 %v623, %v619
  %v956 = vpack.c.b16 %v628, %v624
  %v957 = vpack.c.b16 %v629, %v625
  %v958 = vpack.c.b16 %v630, %v626
  %v959 = vpack.c.b16 %v631, %v627
  %v960 = vpack.c.b16 %v636, %v632
  %v961 = vpack.c.b16 %v637, %v633
  %v962 = vpack.c.b16 %v638, %v634
  %v963 = vpack.c.b16 %v639, %v635
  %v964 = vpack.c.b16 %v644, %v640
  %v965 = vpack.c.b16 %v645, %v641
  %v966 = vpack.c.b16 %v646, %v642
  %v967 = vpack.c.b16 %v647, %v643
  %v968 = vpack.c.b16 %v652, %v648
  %v969 = vpack.c.b16 %v653, %v649
  %v970 = vpack.c.b16 %v654, %v650
  %v971 = vpack.c.b16 %v655, %v651
  %v972 = vpack.c.b16 %v660, %v656
  %v973 = vpack.c.b16 %v661, %v657
  %v974 = vpack.c.b16 %v662, %v658
  %v975 = vpack.c.b16 %v663, %v659
  %v976 = vpack.c.b16 %v668, %v664
  %v977 = vpack.c.b16 %v669, %v665
  %v978 = vpack.c.b16 %v670, %v666
  %v979 = vpack.c.b16 %v671, %v667
  %v980 = vpack.c.b16 %v676, %v672
  %v981 = vpack.c.b16 %v677, %v673
  %v982 = vpack.c.b16 %v678, %v674
  %v983 = vpack.c.b16 %v679, %v675
  %v984 = vpack.c.b16 %v684, %v680
  %v985 = vpack.c.b16 %v685, %v681
  %v986 = vpack.c.b16 %v686, %v682
  %v987 = vpack.c.b16 %v687, %v683
  %v988 = vpack.c.b16 %v692, %v688
  %v989 = vpack.c.b16 %v693, %v689
  %v990 = vpack.c.b16 %v694, %v690
  %v991 = vpack.c.b16 %v695, %v691
  %v992 = vpack.c.b16 %v700, %v696
  %v993 = vpack.c.b16 %v701, %v697
  %v994 = vpack.c.b16 %v702, %v698
  %v995 = vpack.c.b16 %v703, %v699
  %v996 = vpack.c.b16 %v708, %v704
  %v997 = vpack.c.b16 %v709, %v705
  %v998 = vpack.c.b16 %v710, %v706
  %v999 = vpack.c.b16 %v711, %v707
  %v1000 = vpack.c.b16 %v716, %v712
  %v1001 = vpack.c.b16 %v717, %v713
  %v1002 = vpack.c.b16 %v718, %v714
  %v1003 = vpack.c.b16 %v719, %v715
  %v1004 = vpack.c.b16 %v724, %v720
  %v1005 = vpack.c.b16 %v725, %v721
  %v1006 = vpack.c.b16 %v726, %v722
  %v1007 = vpack.c.b16 %v727, %v723
  %v1008 = vpack.c.b16 %v732, %v728
  %v1009 = vpack.c.b16 %v733, %v729
  %v1010 = vpack.c.b16 %v734, %v730
  %v1011 = vpack.c.b16 %v735, %v731
  %v1012 = vpack.c.b16 %v740, %v736
  %v1013 = vpack.c.b16 %v741, %v737
  %v1014 = vpack.c.b16 %v742, %v738
  %v1015 = vpack.c.b16 %v743, %v739
  %v1016 = vpack.c.b16 %v748, %v744
  %v1017 = vpack.c.b16 %v749, %v745
  %v1018 = vpack.c.b16 %v750, %v746
  %v1019 = vpack.c.b16 %v751, %v747
  %v1020 = vpack.c.b16 %v756, %v752
  %v1021 = vpack.c.b16 %v757, %v753
  %v1022 = vpack.c.b16 %v758, %v754
  %v1023 = vpack.c.b16 %v759, %v755
  %v1024 = vpack.c.b16 %v764, %v760
  %v1025 = vpack.c.b16 %v765, %v761
  %v1026 = vpack.c.b16 %v766, %v762
  %v1027 = vpack.c.b16 %v767, %v763
  %v1028 = vpack.c.b16 %v772, %v768
  %v1029 = vpack.c.b16 %v773, %v769
  %v1030 = vpack.c.b16 %v774, %v770
  %v1031 = vpack.c.b16 %v775, %v771
  %v1032 = vpack.c.b16 %v780, %v776
  %v1033 = vpack.c.b16 %v781, %v777
  %v1034 = vpack.c.b16 %v782, %v778
  %v1035 = vpack.c.b16 %v783, %v779
  %v1036 = vpack.c.b16 %v788, %v784
  %v1037 = vpack.c.b16 %v789, %v785
  %v1038 = vpack.c.b16 %v790, %v786
  %v1039 = vpack.c.b16 %v791, %v787
  %v1040 = vpack.c.b16 %v796, %v792
  %v1041 = vpack.c.b16 %v797, %v793
  %v1042 = vpack.c.b16 %v798, %v794
  %v1043 = vpack.c.b16 %v799, %v795
  %v1044 = vpack.c.b16 %v804, %v800
  %v1045 = vpack.c.b16 %v805, %v801
  %v1046 = vpack.c.b16 %v806, %v802
  %v1047 = vpack.c.b16 %v807, %v803
  %v1048 = vpack.c.b16 %v812, %v808
  %v1049 = vpack.c.b16 %v813, %v809
  %v1050 = vpack.c.b16 %v814, %v810
  %v1051 = vpack.c.b16 %v815, %v811
  %v1052 = vpack.c.b16 %v820, %v816
  %v1053 = vpack.c.b16 %v821, %v817
  %v1054 = vpack.c.b16 %v822, %v818
  %v1055 = vpack.c.b16 %v823, %v819
  %v1056 = vpack.c.b16 %v828, %v824
  %v1057 = vpack.c.b16 %v829, %v825
  %v1058 = vpack.c.b16 %v830, %v826
  %v1059 = vpack.c.b16 %v831, %v827
  %v1060 = vpack.c.b16 %v836, %v832
  %v1061 = vpack.c.b16 %v837, %v833
  %v1062 = vpack.c.b16 %v838, %v834
  %v1063 = vpack.c.b16 %v839, %v835
  %v1064 = vpack.c.b16 %v844, %v840
  %v1065 = vpack.c.b16 %v845, %v841
  %v1066 = vpack.c.b16 %v846, %v842
  %v1067 = vpack.c.b16 %v847, %v843
  %v1068 = vpack.c.b16 %v852, %v848
  %v1069 = vpack.c.b16 %v853, %v849
  %v1070 = vpack.c.b16 %v854, %v850
  %v1071 = vpack.c.b16 %v855, %v851
  %v1072 = vpack.c.b16 %v860, %v856
  %v1073 = vpack.c.b16 %v861, %v857
  %v1074 = vpack.c.b16 %v862, %v858
  %v1075 = vpack.c.b16 %v863, %v859
  %v1076 = vpack.c.b16 %v868, %v864
  %v1077 = vpack.c.b16 %v869, %v865
  %v1078 = vpack.c.b16 %v870, %v866
  %v1079 = vpack.c.b16 %v871, %v867
  %v1080 = vpack.c.b16 %v876, %v872
  %v1081 = vpack.c.b16 %v877, %v873
  %v1082 = vpack.c.b16 %v878, %v874
  %v1083 = vpack.c.b16 %v879, %v875
  %v1084 = vpack.c.b16 %v884, %v880
  %v1085 = vpack.c.b16 %v885, %v881
  %v1086 = vpack.c.b16 %v886, %v882
  %v1087 = vpack.c.b16 %v887, %v883
  %v1088 = vpack.c.b16 %v892, %v888
  %v1089 = vpack.c.b16 %v893, %v889
  %v1090 = vpack.c.b16 %v894, %v890
  %v1091 = vpack.c.b16 %v895, %v891
  %vm1288 = vcmask 130048
  %v1290 = vsel %vm1288, %v301, 0
  %1292 = vmatprep.subr.bf16.mxu0 %v897
  %1293 = vmatpush1.bf16.msra.mxu0 %v896
  %1294 = vmatprep.subr.bf16.mxu0 %v901
  %1295 = vmatpush1.bf16.msra.mxu0 %v900
  %1296 = vmatprep.subr.bf16.mxu0 %v905
  %1297 = vmatpush1.bf16.msra.mxu0 %v904
  %1298 = vmatprep.subr.bf16.mxu0 %v909
  %1299 = vmatpush1.bf16.msra.mxu0 %v908
  %1300 = vmatprep.subr.bf16.mxu0 %v913
  %1301 = vmatpush1.bf16.msra.mxu0 %v912
  %1302 = vmatprep.subr.bf16.mxu0 %v917
  %1303 = vmatpush1.bf16.msra.mxu0 %v916
  %1304 = vmatprep.subr.bf16.mxu0 %v921
  %1305 = vmatpush1.bf16.msra.mxu0 %v920
  %1306 = vmatprep.subr.bf16.mxu0 %v925
  %1307 = vmatpush1.bf16.msra.mxu0 %v924
  %1308 = vmatprep.subr.bf16.mxu0 %v929
  %1309 = vmatpush1.bf16.msra.mxu0 %v928
  %1310 = vmatprep.subr.bf16.mxu0 %v933
  %1311 = vmatpush1.bf16.msra.mxu0 %v932
  %1312 = vmatprep.subr.bf16.mxu0 %v937
  %1313 = vmatpush1.bf16.msra.mxu0 %v936
  %1314 = vmatprep.subr.bf16.mxu0 %v941
  %1315 = vmatpush1.bf16.msra.mxu0 %v940
  %1316 = vmatprep.subr.bf16.mxu0 %v945
  %1317 = vmatpush1.bf16.msra.mxu0 %v944
  %1318 = vmatprep.subr.bf16.mxu0 %v949
  %1319 = vmatpush1.bf16.msra.mxu0 %v948
  %1320 = vmatprep.subr.bf16.mxu0 %v953
  %1321 = vmatpush1.bf16.msra.mxu0 %v952
  %1322 = vmatprep.subr.bf16.mxu0 %v957
  %1323 = vmatpush1.bf16.msra.mxu0 %v956
  %1324 = vmatprep.mubr.bf16.mxu0 %v296
  %1325 = vmatmul.mubr.bf16.gmra.mrb[0].mxu0 %v295
  %v1326 = vpop.f32.mrb[0].mxu0
  %v1327 = vadd.f32 %v256, %v1326
  %v1328 = vpop.f32.mrb[0].mxu0
  %v1329 = vadd.f32 %v260, %v1328
  %v1330 = vpop.f32.mrb[0].mxu0
  %v1331 = vadd.f32 %v256, %v1330
  %v1332 = vpop.f32.mrb[0].mxu0
  %v1333 = vadd.f32 %v260, %v1332
  %1334 = vdwg.mxu0
  %1335 = vmatprep.subr.bf16.mxu0 %v961
  %1336 = vmatpush1.bf16.msra.mxu0 %v960
  %1337 = vmatprep.subr.bf16.mxu0 %v965
  %1338 = vmatpush1.bf16.msra.mxu0 %v964
  %1339 = vmatprep.subr.bf16.mxu0 %v969
  %1340 = vmatpush1.bf16.msra.mxu0 %v968
  %1341 = vmatprep.subr.bf16.mxu0 %v973
  %1342 = vmatpush1.bf16.msra.mxu0 %v972
  %1343 = vmatprep.subr.bf16.mxu0 %v977
  %1344 = vmatpush1.bf16.msra.mxu0 %v976
  %1345 = vmatprep.subr.bf16.mxu0 %v981
  %1346 = vmatpush1.bf16.msra.mxu0 %v980
  %1347 = vmatprep.subr.bf16.mxu0 %v985
  %1348 = vmatpush1.bf16.msra.mxu0 %v984
  %1349 = vmatprep.subr.bf16.mxu0 %v989
  %1350 = vmatpush1.bf16.msra.mxu0 %v988
  %1351 = vmatprep.subr.bf16.mxu0 %v993
  %1352 = vmatpush1.bf16.msra.mxu0 %v992
  %1353 = vmatprep.subr.bf16.mxu0 %v997
  %1354 = vmatpush1.bf16.msra.mxu0 %v996
  %1355 = vmatprep.subr.bf16.mxu0 %v1001
  %1356 = vmatpush1.bf16.msra.mxu0 %v1000
  %1357 = vmatprep.subr.bf16.mxu0 %v1005
  %1358 = vmatpush1.bf16.msra.mxu0 %v1004
  %1359 = vmatprep.subr.bf16.mxu0 %v1009
  %1360 = vmatpush1.bf16.msra.mxu0 %v1008
  %1361 = vmatprep.subr.bf16.mxu0 %v1013
  %1362 = vmatpush1.bf16.msra.mxu0 %v1012
  %1363 = vmatprep.subr.bf16.mxu0 %v1017
  %1364 = vmatpush1.bf16.msra.mxu0 %v1016
  %1365 = vmatprep.subr.bf16.mxu0 %v1021
  %1366 = vmatpush1.bf16.msra.mxu0 %v1020
  %1367 = vmatprep.mubr.bf16.mxu0 %v298
  %1368 = vmatmul.mubr.bf16.gmra.mrb[0].mxu0 %v297
  %v1369 = vpop.f32.mrb[0].mxu0
  %v1370 = vadd.f32 %v1327, %v1369
  %v1371 = vpop.f32.mrb[0].mxu0
  %v1372 = vadd.f32 %v1329, %v1371
  %v1373 = vpop.f32.mrb[0].mxu0
  %v1374 = vadd.f32 %v1331, %v1373
  %v1375 = vpop.f32.mrb[0].mxu0
  %v1376 = vadd.f32 %v1333, %v1375
  %1377 = vdwg.mxu0
  %1378 = vmatprep.subr.bf16.mxu0 %v1025
  %1379 = vmatpush1.bf16.msra.mxu0 %v1024
  %1380 = vmatprep.subr.bf16.mxu0 %v1029
  %1381 = vmatpush1.bf16.msra.mxu0 %v1028
  %1382 = vmatprep.subr.bf16.mxu0 %v1033
  %1383 = vmatpush1.bf16.msra.mxu0 %v1032
  %1384 = vmatprep.subr.bf16.mxu0 %v1037
  %1385 = vmatpush1.bf16.msra.mxu0 %v1036
  %1386 = vmatprep.subr.bf16.mxu0 %v1041
  %1387 = vmatpush1.bf16.msra.mxu0 %v1040
  %1388 = vmatprep.subr.bf16.mxu0 %v1045
  %1389 = vmatpush1.bf16.msra.mxu0 %v1044
  %1390 = vmatprep.subr.bf16.mxu0 %v1049
  %1391 = vmatpush1.bf16.msra.mxu0 %v1048
  %1392 = vmatprep.subr.bf16.mxu0 %v1053
  %1393 = vmatpush1.bf16.msra.mxu0 %v1052
  %1394 = vmatprep.subr.bf16.mxu0 %v1057
  %1395 = vmatpush1.bf16.msra.mxu0 %v1056
  %1396 = vmatprep.subr.bf16.mxu0 %v1061
  %1397 = vmatpush1.bf16.msra.mxu0 %v1060
  %1398 = vmatprep.subr.bf16.mxu0 %v1065
  %1399 = vmatpush1.bf16.msra.mxu0 %v1064
  %1400 = vmatprep.subr.bf16.mxu0 %v1069
  %1401 = vmatpush1.bf16.msra.mxu0 %v1068
  %1402 = vmatprep.subr.bf16.mxu0 %v1073
  %1403 = vmatpush1.bf16.msra.mxu0 %v1072
  %1404 = vmatprep.subr.bf16.mxu0 %v1077
  %1405 = vmatpush1.bf16.msra.mxu0 %v1076
  %1406 = vmatprep.subr.bf16.mxu0 %v1081
  %1407 = vmatpush1.bf16.msra.mxu0 %v1080
  %1408 = vmatprep.subr.bf16.mxu0 %v1085
  %1409 = vmatpush1.bf16.msra.mxu0 %v1084
  %1410 = vmatprep.mubr.bf16.mxu0 %v300
  %1411 = vmatmul.mubr.bf16.gmra.mrb[0].mxu0 %v299
  %v1412 = vpop.f32.mrb[0].mxu0
  %v1413 = vadd.f32 %v1370, %v1412
  %v1414 = vpop.f32.mrb[0].mxu0
  %v1415 = vadd.f32 %v1372, %v1414
  %v1416 = vpop.f32.mrb[0].mxu0
  %v1417 = vadd.f32 %v1374, %v1416
  %v1418 = vpop.f32.mrb[0].mxu0
  %v1419 = vadd.f32 %v1376, %v1418
  %1420 = vdwg.mxu0
  %1421 = vmatprep.subr.bf16.mxu0 %v1089
  %1422 = vmatpush1.bf16.msra.mxu0 %v1088
  %1423 = vmatprep.subr.bf16.mxu0 0
  %1424 = vmatpush1.bf16.msra.mxu0 0
  %1425 = vmatprep.subr.bf16.mxu0 0
  %1426 = vmatpush1.bf16.msra.mxu0 0
  %1427 = vmatprep.subr.bf16.mxu0 0
  %1428 = vmatpush1.bf16.msra.mxu0 0
  %1429 = vmatprep.subr.bf16.mxu0 0
  %1430 = vmatpush1.bf16.msra.mxu0 0
  %1431 = vmatprep.subr.bf16.mxu0 0
  %1432 = vmatpush1.bf16.msra.mxu0 0
  %1433 = vmatprep.subr.bf16.mxu0 0
  %1434 = vmatpush1.bf16.msra.mxu0 0
  %1435 = vmatprep.subr.bf16.mxu0 0
  %1436 = vmatpush1.bf16.msra.mxu0 0
  %1437 = vmatprep.subr.bf16.mxu0 0
  %1438 = vmatpush1.bf16.msra.mxu0 0
  %1439 = vmatprep.subr.bf16.mxu0 0
  %1440 = vmatpush1.bf16.msra.mxu0 0
  %1441 = vmatprep.subr.bf16.mxu0 0
  %1442 = vmatpush1.bf16.msra.mxu0 0
  %1443 = vmatprep.subr.bf16.mxu0 0
  %1444 = vmatpush1.bf16.msra.mxu0 0
  %1445 = vmatprep.subr.bf16.mxu0 0
  %1446 = vmatpush1.bf16.msra.mxu0 0
  %1447 = vmatprep.subr.bf16.mxu0 0
  %1448 = vmatpush1.bf16.msra.mxu0 0
  %1449 = vmatprep.subr.bf16.mxu0 0
  %1450 = vmatpush1.bf16.msra.mxu0 0
  %1451 = vmatprep.subr.bf16.mxu0 0
  %1452 = vmatpush1.bf16.msra.mxu0 0
  %1453 = vmatprep.mubr.bf16.mxu0 0
  %1454 = vmatmul.mubr.bf16.gmra.mrb[0].mxu0 %v1290
  %v1455 = vpop.f32.mrb[0].mxu0
  %v1456 = vadd.f32 %v1413, %v1455
  %v1457 = vpop.f32.mrb[0].mxu0
  %v1458 = vadd.f32 %v1415, %v1457
  %v1459 = vpop.f32.mrb[0].mxu0
  %v1460 = vadd.f32 %v1417, %v1459
  %v1461 = vpop.f32.mrb[0].mxu0
  %v1462 = vadd.f32 %v1419, %v1461
  %1463 = vdwg.mxu0
  %1464 = vmatprep.subr.bf16.mxu0 %v899
  %1465 = vmatpush1.bf16.msra.mxu0 %v898
  %1466 = vmatprep.subr.bf16.mxu0 %v903
  %1467 = vmatpush1.bf16.msra.mxu0 %v902
  %1468 = vmatprep.subr.bf16.mxu0 %v907
  %1469 = vmatpush1.bf16.msra.mxu0 %v906
  %1470 = vmatprep.subr.bf16.mxu0 %v911
  %1471 = vmatpush1.bf16.msra.mxu0 %v910
  %1472 = vmatprep.subr.bf16.mxu0 %v915
  %1473 = vmatpush1.bf16.msra.mxu0 %v914
  %1474 = vmatprep.subr.bf16.mxu0 %v919
  %1475 = vmatpush1.bf16.msra.mxu0 %v918
  %1476 = vmatprep.subr.bf16.mxu0 %v923
  %1477 = vmatpush1.bf16.msra.mxu0 %v922
  %1478 = vmatprep.subr.bf16.mxu0 %v927
  %1479 = vmatpush1.bf16.msra.mxu0 %v926
  %1480 = vmatprep.subr.bf16.mxu0 %v931
  %1481 = vmatpush1.bf16.msra.mxu0 %v930
  %1482 = vmatprep.subr.bf16.mxu0 %v935
  %1483 = vmatpush1.bf16.msra.mxu0 %v934
  %1484 = vmatprep.subr.bf16.mxu0 %v939
  %1485 = vmatpush1.bf16.msra.mxu0 %v938
  %1486 = vmatprep.subr.bf16.mxu0 %v943
  %1487 = vmatpush1.bf16.msra.mxu0 %v942
  %1488 = vmatprep.subr.bf16.mxu0 %v947
  %1489 = vmatpush1.bf16.msra.mxu0 %v946
  %1490 = vmatprep.subr.bf16.mxu0 %v951
  %1491 = vmatpush1.bf16.msra.mxu0 %v950
  %1492 = vmatprep.subr.bf16.mxu0 %v955
  %1493 = vmatpush1.bf16.msra.mxu0 %v954
  %1494 = vmatprep.subr.bf16.mxu0 %v959
  %1495 = vmatpush1.bf16.msra.mxu0 %v958
  %1496 = vmatprep.mubr.bf16.mxu0 %v296
  %1497 = vmatmul.mubr.bf16.gmra.mrb[0].mxu0 %v295
  %v1498 = vpop.f32.mrb[0].mxu0
  %v1499 = vadd.f32 %v264, %v1498
  %v1500 = vpop.f32.mrb[0].mxu0
  %v1501 = vadd.f32 %v268, %v1500
  %v1502 = vpop.f32.mrb[0].mxu0
  %v1503 = vadd.f32 %v264, %v1502
  %v1504 = vpop.f32.mrb[0].mxu0
  %v1505 = vadd.f32 %v268, %v1504
  %1506 = vdwg.mxu0
  %1507 = vmatprep.subr.bf16.mxu0 %v963
  %1508 = vmatpush1.bf16.msra.mxu0 %v962
  %1509 = vmatprep.subr.bf16.mxu0 %v967
  %1510 = vmatpush1.bf16.msra.mxu0 %v966
  %1511 = vmatprep.subr.bf16.mxu0 %v971
  %1512 = vmatpush1.bf16.msra.mxu0 %v970
  %1513 = vmatprep.subr.bf16.mxu0 %v975
  %1514 = vmatpush1.bf16.msra.mxu0 %v974
  %1515 = vmatprep.subr.bf16.mxu0 %v979
  %1516 = vmatpush1.bf16.msra.mxu0 %v978
  %1517 = vmatprep.subr.bf16.mxu0 %v983
  %1518 = vmatpush1.bf16.msra.mxu0 %v982
  %1519 = vmatprep.subr.bf16.mxu0 %v987
  %1520 = vmatpush1.bf16.msra.mxu0 %v986
  %1521 = vmatprep.subr.bf16.mxu0 %v991
  %1522 = vmatpush1.bf16.msra.mxu0 %v990
  %1523 = vmatprep.subr.bf16.mxu0 %v995
  %1524 = vmatpush1.bf16.msra.mxu0 %v994
  %1525 = vmatprep.subr.bf16.mxu0 %v999
  %1526 = vmatpush1.bf16.msra.mxu0 %v998
  %1527 = vmatprep.subr.bf16.mxu0 %v1003
  %1528 = vmatpush1.bf16.msra.mxu0 %v1002
  %1529 = vmatprep.subr.bf16.mxu0 %v1007
  %1530 = vmatpush1.bf16.msra.mxu0 %v1006
  %1531 = vmatprep.subr.bf16.mxu0 %v1011
  %1532 = vmatpush1.bf16.msra.mxu0 %v1010
  %1533 = vmatprep.subr.bf16.mxu0 %v1015
  %1534 = vmatpush1.bf16.msra.mxu0 %v1014
  %1535 = vmatprep.subr.bf16.mxu0 %v1019
  %1536 = vmatpush1.bf16.msra.mxu0 %v1018
  %1537 = vmatprep.subr.bf16.mxu0 %v1023
  %1538 = vmatpush1.bf16.msra.mxu0 %v1022
  %1539 = vmatprep.mubr.bf16.mxu0 %v298
  %1540 = vmatmul.mubr.bf16.gmra.mrb[0].mxu0 %v297
  %v1541 = vpop.f32.mrb[0].mxu0
  %v1542 = vadd.f32 %v1499, %v1541
  %v1543 = vpop.f32.mrb[0].mxu0
  %v1544 = vadd.f32 %v1501, %v1543
  %v1545 = vpop.f32.mrb[0].mxu0
  %v1546 = vadd.f32 %v1503, %v1545
  %v1547 = vpop.f32.mrb[0].mxu0
  %v1548 = vadd.f32 %v1505, %v1547
  %1549 = vdwg.mxu0
  %1550 = vmatprep.subr.bf16.mxu0 %v1027
  %1551 = vmatpush1.bf16.msra.mxu0 %v1026
  %1552 = vmatprep.subr.bf16.mxu0 %v1031
  %1553 = vmatpush1.bf16.msra.mxu0 %v1030
  %1554 = vmatprep.subr.bf16.mxu0 %v1035
  %1555 = vmatpush1.bf16.msra.mxu0 %v1034
  %1556 = vmatprep.subr.bf16.mxu0 %v1039
  %1557 = vmatpush1.bf16.msra.mxu0 %v1038
  %1558 = vmatprep.subr.bf16.mxu0 %v1043
  %1559 = vmatpush1.bf16.msra.mxu0 %v1042
  %1560 = vmatprep.subr.bf16.mxu0 %v1047
  %1561 = vmatpush1.bf16.msra.mxu0 %v1046
  %1562 = vmatprep.subr.bf16.mxu0 %v1051
  %1563 = vmatpush1.bf16.msra.mxu0 %v1050
  %1564 = vmatprep.subr.bf16.mxu0 %v1055
  %1565 = vmatpush1.bf16.msra.mxu0 %v1054
  %1566 = vmatprep.subr.bf16.mxu0 %v1059
  %1567 = vmatpush1.bf16.msra.mxu0 %v1058
  %1568 = vmatprep.subr.bf16.mxu0 %v1063
  %1569 = vmatpush1.bf16.msra.mxu0 %v1062
  %1570 = vmatprep.subr.bf16.mxu0 %v1067
  %1571 = vmatpush1.bf16.msra.mxu0 %v1066
  %1572 = vmatprep.subr.bf16.mxu0 %v1071
  %1573 = vmatpush1.bf16.msra.mxu0 %v1070
  %1574 = vmatprep.subr.bf16.mxu0 %v1075
  %1575 = vmatpush1.bf16.msra.mxu0 %v1074
  %1576 = vmatprep.subr.bf16.mxu0 %v1079
  %1577 = vmatpush1.bf16.msra.mxu0 %v1078
  %1578 = vmatprep.subr.bf16.mxu0 %v1083
  %1579 = vmatpush1.bf16.msra.mxu0 %v1082
  %1580 = vmatprep.subr.bf16.mxu0 %v1087
  %1581 = vmatpush1.bf16.msra.mxu0 %v1086
  %1582 = vmatprep.mubr.bf16.mxu0 %v300
  %1583 = vmatmul.mubr.bf16.gmra.mrb[0].mxu0 %v299
  %v1584 = vpop.f32.mrb[0].mxu0
  %v1585 = vadd.f32 %v1542, %v1584
  %v1586 = vpop.f32.mrb[0].mxu0
  %v1587 = vadd.f32 %v1544, %v1586
  %v1588 = vpop.f32.mrb[0].mxu0
  %v1589 = vadd.f32 %v1546, %v1588
  %v1590 = vpop.f32.mrb[0].mxu0
  %v1591 = vadd.f32 %v1548, %v1590
  %1592 = vdwg.mxu0
  %1593 = vmatprep.subr.bf16.mxu0 %v1091
  %1594 = vmatpush1.bf16.msra.mxu0 %v1090
  %1595 = vmatprep.subr.bf16.mxu0 0
  %1596 = vmatpush1.bf16.msra.mxu0 0
  %1597 = vmatprep.subr.bf16.mxu0 0
  %1598 = vmatpush1.bf16.msra.mxu0 0
  %1599 = vmatprep.subr.bf16.mxu0 0
  %1600 = vmatpush1.bf16.msra.mxu0 0
  %1601 = vmatprep.subr.bf16.mxu0 0
  %1602 = vmatpush1.bf16.msra.mxu0 0
  %1603 = vmatprep.subr.bf16.mxu0 0
  %1604 = vmatpush1.bf16.msra.mxu0 0
  %1605 = vmatprep.subr.bf16.mxu0 0
  %1606 = vmatpush1.bf16.msra.mxu0 0
  %1607 = vmatprep.subr.bf16.mxu0 0
  %1608 = vmatpush1.bf16.msra.mxu0 0
  %1609 = vmatprep.subr.bf16.mxu0 0
  %1610 = vmatpush1.bf16.msra.mxu0 0
  %1611 = vmatprep.subr.bf16.mxu0 0
  %1612 = vmatpush1.bf16.msra.mxu0 0
  %1613 = vmatprep.subr.bf16.mxu0 0
  %1614 = vmatpush1.bf16.msra.mxu0 0
  %1615 = vmatprep.subr.bf16.mxu0 0
  %1616 = vmatpush1.bf16.msra.mxu0 0
  %1617 = vmatprep.subr.bf16.mxu0 0
  %1618 = vmatpush1.bf16.msra.mxu0 0
  %1619 = vmatprep.subr.bf16.mxu0 0
  %1620 = vmatpush1.bf16.msra.mxu0 0
  %1621 = vmatprep.subr.bf16.mxu0 0
  %1622 = vmatpush1.bf16.msra.mxu0 0
  %1623 = vmatprep.subr.bf16.mxu0 0
  %1624 = vmatpush1.bf16.msra.mxu0 0
  %1625 = vmatprep.mubr.bf16.mxu0 0
  %1626 = vmatmul.mubr.bf16.gmra.mrb[0].mxu0 %v1290
  %v1627 = vpop.f32.mrb[0].mxu0
  %v1628 = vadd.f32 %v1585, %v1627
  %v1629 = vpop.f32.mrb[0].mxu0
  %v1630 = vadd.f32 %v1587, %v1629
  %v1631 = vpop.f32.mrb[0].mxu0
  %v1632 = vadd.f32 %v1589, %v1631
  %v1633 = vpop.f32.mrb[0].mxu0
  %v1634 = vadd.f32 %v1591, %v1633
  %1635 = vdwg.mxu0
  %vm1636 = vcmp.gt.f32.partialorder %v1456, 0.0
  %vm1637 = vcmp.gt.f32.partialorder %v1458, 0.0
  %vm1638 = vcmp.gt.f32.partialorder %v1628, 0.0
  %vm1639 = vcmp.gt.f32.partialorder %v1630, 0.0
  %vm1640 = vcmp.gt.f32.partialorder %v1460, 0.0
  %vm1641 = vcmp.gt.f32.partialorder %v1462, 0.0
  %vm1642 = vcmp.gt.f32.partialorder %v1632, 0.0
  %vm1643 = vcmp.gt.f32.partialorder %v1634, 0.0
  %v1644 = vmul.f32 %v1456, 0.01
  %v1645 = vmul.f32 %v1458, 0.01
  %v1646 = vmul.f32 %v1628, 0.01
  %v1647 = vmul.f32 %v1630, 0.01
  %v1648 = vmul.f32 %v1460, 0.01
  %v1649 = vmul.f32 %v1462, 0.01
  %v1650 = vmul.f32 %v1632, 0.01
  %v1651 = vmul.f32 %v1634, 0.01
  %v1652 = vsel %vm1636, %v1456, %v1644
  %v1653 = vsel %vm1637, %v1458, %v1645
  %v1654 = vsel %vm1638, %v1628, %v1646
  %v1655 = vsel %vm1639, %v1630, %v1647
  %v1656 = vsel %vm1640, %v1460, %v1648
  %v1657 = vsel %vm1641, %v1462, %v1649
  %v1658 = vsel %vm1642, %v1632, %v1650
  %v1659 = vsel %vm1643, %v1634, %v1651
  %v1660 = vld [vmem:[%s1] sm:$0xf]
  %v1661 = vld [vmem:[%s1 + $0x4] sm:$0xf]
  %v1662 = vld [vmem:[%s7] sm:$0xff]
  %v1663 = vld [vmem:[%s7 + $0x8] sm:$0x11]
  %v1664 = vld [vmem:[%s8] sm:$0x3]
  %v1666 = vlaneseq
  %v1667 = vshrl.u32 %v1666, 7
  %v1668 = vsub.s32 0, %v1667
  %v1669 = vrot.slane %v1664, %v1668
  %v1670 = vlaneseq
  %v1671 = vshrl.u32 %v1670, 7
  %v1672 = vsub.s32 1, %v1671
  %v1673 = vrot.slane %v1664, %v1672
  %v1678 = vunpack.c.l.b16 %v1660
  %v1679 = vunpack.c.l.b16 %v1661
  %v1680 = vpack.c.b16 %v1679, %v1678
  %v1683 = vunpack.c.l.b16 %v1662
  %v1684 = vunpack.c.h.b16 %v1662
  %v1685 = vunpack.c.l.b16 %v1663
  %v1686 = vunpack.c.h.b16 %v1663
  %v1687 = vpack.c.b16 %v1685, %v1683
  %v1688 = vpack.c.b16 %v1686, %v1684
  %vm1689 = vcmask 80896
  %v1691 = vsel %vm1689, %v1680, 0
  %vm1693 = vcmask 1044480
  %v1695 = vsel %vm1693, %v1687, 0
  %v1698 = vsel %vm1693, %v1688, 0
  %1700 = vmatprep.subr.bf16.mxu0 %v1698
  %1701 = vmatpush1.bf16.msra.mxu0 %v1695
  %1702 = vmatprep.subr.bf16.mxu0 0
  %1703 = vmatpush1.bf16.msra.mxu0 0
  %1704 = vmatprep.subr.bf16.mxu0 0
  %1705 = vmatpush1.bf16.msra.mxu0 0
  %1706 = vmatprep.subr.bf16.mxu0 0
  %1707 = vmatpush1.bf16.msra.mxu0 0
  %1708 = vmatprep.subr.bf16.mxu0 0
  %1709 = vmatpush1.bf16.msra.mxu0 0
  %1710 = vmatprep.subr.bf16.mxu0 0
  %1711 = vmatpush1.bf16.msra.mxu0 0
  %1712 = vmatprep.subr.bf16.mxu0 0
  %1713 = vmatpush1.bf16.msra.mxu0 0
  %1714 = vmatprep.subr.bf16.mxu0 0
  %1715 = vmatpush1.bf16.msra.mxu0 0
  %1716 = vmatprep.subr.bf16.mxu0 0
  %1717 = vmatpush1.bf16.msra.mxu0 0
  %1718 = vmatprep.subr.bf16.mxu0 0
  %1719 = vmatpush1.bf16.msra.mxu0 0
  %1720 = vmatprep.subr.bf16.mxu0 0
  %1721 = vmatpush1.bf16.msra.mxu0 0
  %1722 = vmatprep.subr.bf16.mxu0 0
  %1723 = vmatpush1.bf16.msra.mxu0 0
  %1724 = vmatprep.subr.bf16.mxu0 0
  %1725 = vmatpush1.bf16.msra.mxu0 0
  %1726 = vmatprep.subr.bf16.mxu0 0
  %1727 = vmatpush1.bf16.msra.mxu0 0
  %1728 = vmatprep.subr.bf16.mxu0 0
  %1729 = vmatpush1.bf16.msra.mxu0 0
  %1730 = vmatprep.subr.bf16.mxu0 0
  %1731 = vmatpush1.bf16.msra.mxu0 0
  %1732 = vmatprep.mubr.bf16.mxu0 0
  %1733 = vmatmul.mubr.bf16.gmra.mrb[0].mxu0 %v1691
  %v1734 = vpop.f32.mrb[0].mxu0
  %v1735 = vadd.f32 %v1669, %v1734
  %v1736 = vpop.f32.mrb[0].mxu0
  %v1737 = vadd.f32 %v1673, %v1736
  %v1738 = vpop.f32.mrb[0].mxu0
  %v1739 = vadd.f32 %v1669, %v1738
  %v1740 = vpop.f32.mrb[0].mxu0
  %v1741 = vadd.f32 %v1673, %v1740
  %1742 = vdwg.mxu0
  %v1743 = vmax.f32 %v1735, 0.0
  %v1744 = vmax.f32 %v1737, 0.0
  %v1745 = vmax.f32 %v1739, 0.0
  %v1746 = vmax.f32 %v1741, 0.0
  %v1747 = vpack.c.bf16 %v1656, %v1652
  %v1748 = vpack.c.bf16 %v1657, %v1653
  %v1749 = vpack.c.bf16 %v1658, %v1654
  %v1750 = vpack.c.bf16 %v1659, %v1655
  %v1751 = vpack.c.bf16 %v1745, %v1743
  %v1752 = vpack.c.bf16 %v1746, %v1744
  %1755 = vrot.lane.b32.xlu0 %v1751, 16
  %v1756 = vpop.permute.xlu0 %1755
  %1757 = vrot.lane.b32.xlu0 %v1752, 16
  %v1758 = vpop.permute.xlu0 %1757
  %vm1759 = vcmask 130048
  %v1760 = vsel %vm1759, %v1756, %v1758
  %v1763 = vsel %vm1288, %v1750, %v1756
  %v1765 = vld [vmem:[%s5] sm:$0xf]
  %v1766 = vld [vmem:[%s5 + $0x4] sm:$0xf]
  %v1767 = vld [vmem:[%s5 + $0x8] sm:$0xf]
  %v1768 = vld [vmem:[%s5 + $0xc] sm:$0xf]
  %v1769 = vld [vmem:[%s5 + $0x10] sm:$0xf]
  %v1770 = vld [vmem:[%s5 + $0x14] sm:$0xf]
  %v1771 = vld [vmem:[%s5 + $0x18] sm:$0xf]
  %v1772 = vld [vmem:[%s5 + $0x1c] sm:$0xf]
  %v1773 = vld [vmem:[%s5 + $0x20] sm:$0xf]
  %v1774 = vld [vmem:[%s5 + $0x24] sm:$0xf]
  %v1775 = vld [vmem:[%s5 + $0x28] sm:$0xf]
  %v1776 = vld [vmem:[%s5 + $0x2c] sm:$0xf]
  %v1777 = vld [vmem:[%s5 + $0x30] sm:$0xf]
  %v1778 = vld [vmem:[%s5 + $0x34] sm:$0xf]
  %v1779 = vld [vmem:[%s5 + $0x38] sm:$0xf]
  %v1780 = vld [vmem:[%s5 + $0x3c] sm:$0xf]
  %v1781 = vld [vmem:[%s5 + $0x40] sm:$0xf]
  %v1782 = vld [vmem:[%s5 + $0x44] sm:$0xf]
  %v1783 = vld [vmem:[%s5 + $0x48] sm:$0xf]
  %v1784 = vld [vmem:[%s5 + $0x4c] sm:$0xf]
  %v1785 = vld [vmem:[%s5 + $0x50] sm:$0xf]
  %v1786 = vld [vmem:[%s5 + $0x54] sm:$0xf]
  %v1787 = vld [vmem:[%s5 + $0x58] sm:$0xf]
  %v1788 = vld [vmem:[%s5 + $0x5c] sm:$0xf]
  %v1789 = vld [vmem:[%s5 + $0x60] sm:$0xf]
  %v1790 = vld [vmem:[%s5 + $0x64] sm:$0xf]
  %v1791 = vld [vmem:[%s5 + $0x68] sm:$0xf]
  %v1792 = vld [vmem:[%s5 + $0x6c] sm:$0xf]
  %v1793 = vld [vmem:[%s5 + $0x70] sm:$0xf]
  %v1794 = vld [vmem:[%s5 + $0x74] sm:$0xf]
  %v1795 = vld [vmem:[%s5 + $0x78] sm:$0xf]
  %v1796 = vld [vmem:[%s5 + $0x7c] sm:$0xf]
  %v1797 = vld [vmem:[%s5 + $0x80] sm:$0xf]
  %v1798 = vld [vmem:[%s5 + $0x84] sm:$0xf]
  %v1799 = vld [vmem:[%s5 + $0x88] sm:$0xf]
  %v1800 = vld [vmem:[%s5 + $0x8c] sm:$0xf]
  %v1801 = vld [vmem:[%s5 + $0x90] sm:$0xf]
  %v1802 = vld [vmem:[%s5 + $0x94] sm:$0xf]
  %v1803 = vld [vmem:[%s5 + $0x98] sm:$0xf]
  %v1804 = vld [vmem:[%s5 + $0x9c] sm:$0xf]
  %v1805 = vld [vmem:[%s5 + $0xa0] sm:$0xf]
  %v1806 = vld [vmem:[%s5 + $0xa4] sm:$0xf]
  %v1807 = vld [vmem:[%s5 + $0xa8] sm:$0xf]
  %v1808 = vld [vmem:[%s5 + $0xac] sm:$0xf]
  %v1809 = vld [vmem:[%s5 + $0xb0] sm:$0xf]
  %v1810 = vld [vmem:[%s5 + $0xb4] sm:$0xf]
  %v1811 = vld [vmem:[%s5 + $0xb8] sm:$0xf]
  %v1812 = vld [vmem:[%s5 + $0xbc] sm:$0xf]
  %v1813 = vld [vmem:[%s5 + $0xc0] sm:$0xf]
  %v1814 = vld [vmem:[%s5 + $0xc4] sm:$0xf]
  %v1815 = vld [vmem:[%s5 + $0xc8] sm:$0xf]
  %v1816 = vld [vmem:[%s5 + $0xcc] sm:$0xf]
  %v1817 = vld [vmem:[%s5 + $0xd0] sm:$0xf]
  %v1818 = vld [vmem:[%s5 + $0xd4] sm:$0xf]
  %v1819 = vld [vmem:[%s5 + $0xd8] sm:$0xf]
  %v1820 = vld [vmem:[%s5 + $0xdc] sm:$0xf]
  %v1821 = vld [vmem:[%s5 + $0xe0] sm:$0xf]
  %v1822 = vld [vmem:[%s5 + $0xe4] sm:$0xf]
  %v1823 = vld [vmem:[%s5 + $0xe8] sm:$0xf]
  %v1824 = vld [vmem:[%s5 + $0xec] sm:$0xf]
  %v1825 = vld [vmem:[%s5 + $0xf0] sm:$0xf]
  %v1826 = vld [vmem:[%s5 + $0xf4] sm:$0xf]
  %v1827 = vld [vmem:[%s5 + $0xf8] sm:$0xf]
  %v1828 = vld [vmem:[%s5 + $0xfc] sm:$0xf]
  %v1829 = vld [vmem:[%s5 + $0x100] sm:$0xf]
  %v1830 = vld [vmem:[%s5 + $0x104] sm:$0xf]
  %v1831 = vld [vmem:[%s5 + $0x108] sm:$0xf]
  %v1832 = vld [vmem:[%s5 + $0x10c] sm:$0xf]
  %v1833 = vld [vmem:[%s5 + $0x110] sm:$0xf]
  %v1834 = vld [vmem:[%s5 + $0x114] sm:$0xf]
  %v1835 = vld [vmem:[%s5 + $0x118] sm:$0xf]
  %v1836 = vld [vmem:[%s5 + $0x11c] sm:$0xf]
  %v1837 = vld [vmem:[%s5 + $0x120] sm:$0xf]
  %v1838 = vld [vmem:[%s5 + $0x124] sm:$0xf]
  %v1839 = vld [vmem:[%s5 + $0x128] sm:$0xf]
  %v1840 = vld [vmem:[%s6] sm:$0x1]
  %v1842 = vlaneseq
  %v1843 = vshrl.u32 %v1842, 7
  %v1844 = vsub.s32 0, %v1843
  %v1845 = vrot.slane %v1840, %v1844
  %v1922 = vunpack.c.l.b16 %v1765
  %v1923 = vunpack.c.l.b16 %v1766
  %v1924 = vunpack.c.l.b16 %v1767
  %v1925 = vunpack.c.l.b16 %v1768
  %v1926 = vunpack.c.l.b16 %v1769
  %v1927 = vunpack.c.l.b16 %v1770
  %v1928 = vunpack.c.l.b16 %v1771
  %v1929 = vunpack.c.l.b16 %v1772
  %v1930 = vunpack.c.l.b16 %v1773
  %v1931 = vunpack.c.l.b16 %v1774
  %v1932 = vunpack.c.l.b16 %v1775
  %v1933 = vunpack.c.l.b16 %v1776
  %v1934 = vunpack.c.l.b16 %v1777
  %v1935 = vunpack.c.l.b16 %v1778
  %v1936 = vunpack.c.l.b16 %v1779
  %v1937 = vunpack.c.l.b16 %v1780
  %v1938 = vunpack.c.l.b16 %v1781
  %v1939 = vunpack.c.l.b16 %v1782
  %v1940 = vunpack.c.l.b16 %v1783
  %v1941 = vunpack.c.l.b16 %v1784
  %v1942 = vunpack.c.l.b16 %v1785
  %v1943 = vunpack.c.l.b16 %v1786
  %v1944 = vunpack.c.l.b16 %v1787
  %v1945 = vunpack.c.l.b16 %v1788
  %v1946 = vunpack.c.l.b16 %v1789
  %v1947 = vunpack.c.l.b16 %v1790
  %v1948 = vunpack.c.l.b16 %v1791
  %v1949 = vunpack.c.l.b16 %v1792
  %v1950 = vunpack.c.l.b16 %v1793
  %v1951 = vunpack.c.l.b16 %v1794
  %v1952 = vunpack.c.l.b16 %v1795
  %v1953 = vunpack.c.l.b16 %v1796
  %v1954 = vunpack.c.l.b16 %v1797
  %v1955 = vunpack.c.l.b16 %v1798
  %v1956 = vunpack.c.l.b16 %v1799
  %v1957 = vunpack.c.l.b16 %v1800
  %v1958 = vunpack.c.l.b16 %v1801
  %v1959 = vunpack.c.l.b16 %v1802
  %v1960 = vunpack.c.l.b16 %v1803
  %v1961 = vunpack.c.l.b16 %v1804
  %v1962 = vunpack.c.l.b16 %v1805
  %v1963 = vunpack.c.l.b16 %v1806
  %v1964 = vunpack.c.l.b16 %v1807
  %v1965 = vunpack.c.l.b16 %v1808
  %v1966 = vunpack.c.l.b16 %v1809
  %v1967 = vunpack.c.l.b16 %v1810
  %v1968 = vunpack.c.l.b16 %v1811
  %v1969 = vunpack.c.l.b16 %v1812
  %v1970 = vunpack.c.l.b16 %v1813
  %v1971 = vunpack.c.l.b16 %v1814
  %v1972 = vunpack.c.l.b16 %v1815
  %v1973 = vunpack.c.l.b16 %v1816
  %v1974 = vunpack.c.l.b16 %v1817
  %v1975 = vunpack.c.l.b16 %v1818
  %v1976 = vunpack.c.l.b16 %v1819
  %v1977 = vunpack.c.l.b16 %v1820
  %v1978 = vunpack.c.l.b16 %v1821
  %v1979 = vunpack.c.l.b16 %v1822
  %v1980 = vunpack.c.l.b16 %v1823
  %v1981 = vunpack.c.l.b16 %v1824
  %v1982 = vunpack.c.l.b16 %v1825
  %v1983 = vunpack.c.l.b16 %v1826
  %v1984 = vunpack.c.l.b16 %v1827
  %v1985 = vunpack.c.l.b16 %v1828
  %v1986 = vunpack.c.l.b16 %v1829
  %v1987 = vunpack.c.l.b16 %v1830
  %v1988 = vunpack.c.l.b16 %v1831
  %v1989 = vunpack.c.l.b16 %v1832
  %v1990 = vunpack.c.l.b16 %v1833
  %v1991 = vunpack.c.l.b16 %v1834
  %v1992 = vunpack.c.l.b16 %v1835
  %v1993 = vunpack.c.l.b16 %v1836
  %v1994 = vunpack.c.l.b16 %v1837
  %v1995 = vunpack.c.l.b16 %v1838
  %v1996 = vunpack.c.l.b16 %v1839
  %v1997 = vpack.c.b16 %v1923, %v1922
  %v1998 = vpack.c.b16 %v1925, %v1924
  %v1999 = vpack.c.b16 %v1927, %v1926
  %v2000 = vpack.c.b16 %v1929, %v1928
  %v2001 = vpack.c.b16 %v1931, %v1930
  %v2002 = vpack.c.b16 %v1933, %v1932
  %v2003 = vpack.c.b16 %v1935, %v1934
  %v2004 = vpack.c.b16 %v1937, %v1936
  %v2005 = vpack.c.b16 %v1939, %v1938
  %v2006 = vpack.c.b16 %v1941, %v1940
  %v2007 = vpack.c.b16 %v1943, %v1942
  %v2008 = vpack.c.b16 %v1945, %v1944
  %v2009 = vpack.c.b16 %v1947, %v1946
  %v2010 = vpack.c.b16 %v1949, %v1948
  %v2011 = vpack.c.b16 %v1951, %v1950
  %v2012 = vpack.c.b16 %v1953, %v1952
  %v2013 = vpack.c.b16 %v1955, %v1954
  %v2014 = vpack.c.b16 %v1957, %v1956
  %v2015 = vpack.c.b16 %v1959, %v1958
  %v2016 = vpack.c.b16 %v1961, %v1960
  %v2017 = vpack.c.b16 %v1963, %v1962
  %v2018 = vpack.c.b16 %v1965, %v1964
  %v2019 = vpack.c.b16 %v1967, %v1966
  %v2020 = vpack.c.b16 %v1969, %v1968
  %v2021 = vpack.c.b16 %v1971, %v1970
  %v2022 = vpack.c.b16 %v1973, %v1972
  %v2023 = vpack.c.b16 %v1975, %v1974
  %v2024 = vpack.c.b16 %v1977, %v1976
  %v2025 = vpack.c.b16 %v1979, %v1978
  %v2026 = vpack.c.b16 %v1981, %v1980
  %v2027 = vpack.c.b16 %v1983, %v1982
  %v2028 = vpack.c.b16 %v1985, %v1984
  %v2029 = vpack.c.b16 %v1987, %v1986
  %v2030 = vpack.c.b16 %v1989, %v1988
  %v2031 = vpack.c.b16 %v1991, %v1990
  %v2032 = vpack.c.b16 %v1993, %v1992
  %v2033 = vpack.c.b16 %v1995, %v1994
  %v2034 = vpack.c.b16 %v1996, %v1996
  %vm2072 = vcmask 719872
  %v2074 = vsel %vm2072, %v1760, 0
  %vm2076 = vcmask 1043456
  %v2078 = vsel %vm2076, %v2034, 0
  %2080 = vmatprep.subr.bf16.mxu0 0
  %2081 = vmatpush1.bf16.msra.mxu0 %v1997
  %2082 = vmatprep.subr.bf16.mxu0 0
  %2083 = vmatpush1.bf16.msra.mxu0 %v1998
  %2084 = vmatprep.subr.bf16.mxu0 0
  %2085 = vmatpush1.bf16.msra.mxu0 %v1999
  %2086 = vmatprep.subr.bf16.mxu0 0
  %2087 = vmatpush1.bf16.msra.mxu0 %v2000
  %2088 = vmatprep.subr.bf16.mxu0 0
  %2089 = vmatpush1.bf16.msra.mxu0 %v2001
  %2090 = vmatprep.subr.bf16.mxu0 0
  %2091 = vmatpush1.bf16.msra.mxu0 %v2002
  %2092 = vmatprep.subr.bf16.mxu0 0
  %2093 = vmatpush1.bf16.msra.mxu0 %v2003
  %2094 = vmatprep.subr.bf16.mxu0 0
  %2095 = vmatpush1.bf16.msra.mxu0 %v2004
  %2096 = vmatprep.subr.bf16.mxu0 0
  %2097 = vmatpush1.bf16.msra.mxu0 %v2005
  %2098 = vmatprep.subr.bf16.mxu0 0
  %2099 = vmatpush1.bf16.msra.mxu0 %v2006
  %2100 = vmatprep.subr.bf16.mxu0 0
  %2101 = vmatpush1.bf16.msra.mxu0 %v2007
  %2102 = vmatprep.subr.bf16.mxu0 0
  %2103 = vmatpush1.bf16.msra.mxu0 %v2008
  %2104 = vmatprep.subr.bf16.mxu0 0
  %2105 = vmatpush1.bf16.msra.mxu0 %v2009
  %2106 = vmatprep.subr.bf16.mxu0 0
  %2107 = vmatpush1.bf16.msra.mxu0 %v2010
  %2108 = vmatprep.subr.bf16.mxu0 0
  %2109 = vmatpush1.bf16.msra.mxu0 %v2011
  %2110 = vmatprep.subr.bf16.mxu0 0
  %2111 = vmatpush1.bf16.msra.mxu0 %v2012
  %2112 = vmatprep.mubr.bf16.mxu0 %v1748
  %2113 = vmatmul.mubr.bf16.gmra.mrb[0].mxu0 %v1747
  %v2114 = vpop.f32.mrb[0].mxu0
  %v2115 = vadd.f32 %v1845, %v2114
  %v2116 = vpop.f32.mrb[0].mxu0
  %v2117 = vpop.f32.mrb[0].mxu0
  %v2118 = vadd.f32 %v1845, %v2117
  %v2119 = vpop.f32.mrb[0].mxu0
  %2120 = vdwg.mxu0
  %2121 = vmatprep.subr.bf16.mxu0 0
  %2122 = vmatpush1.bf16.msra.mxu0 %v2013
  %2123 = vmatprep.subr.bf16.mxu0 0
  %2124 = vmatpush1.bf16.msra.mxu0 %v2014
  %2125 = vmatprep.subr.bf16.mxu0 0
  %2126 = vmatpush1.bf16.msra.mxu0 %v2015
  %2127 = vmatprep.subr.bf16.mxu0 0
  %2128 = vmatpush1.bf16.msra.mxu0 %v2016
  %2129 = vmatprep.subr.bf16.mxu0 0
  %2130 = vmatpush1.bf16.msra.mxu0 %v2017
  %2131 = vmatprep.subr.bf16.mxu0 0
  %2132 = vmatpush1.bf16.msra.mxu0 %v2018
  %2133 = vmatprep.subr.bf16.mxu0 0
  %2134 = vmatpush1.bf16.msra.mxu0 %v2019
  %2135 = vmatprep.subr.bf16.mxu0 0
  %2136 = vmatpush1.bf16.msra.mxu0 %v2020
  %2137 = vmatprep.subr.bf16.mxu0 0
  %2138 = vmatpush1.bf16.msra.mxu0 %v2021
  %2139 = vmatprep.subr.bf16.mxu0 0
  %2140 = vmatpush1.bf16.msra.mxu0 %v2022
  %2141 = vmatprep.subr.bf16.mxu0 0
  %2142 = vmatpush1.bf16.msra.mxu0 %v2023
  %2143 = vmatprep.subr.bf16.mxu0 0
  %2144 = vmatpush1.bf16.msra.mxu0 %v2024
  %2145 = vmatprep.subr.bf16.mxu0 0
  %2146 = vmatpush1.bf16.msra.mxu0 %v2025
  %2147 = vmatprep.subr.bf16.mxu0 0
  %2148 = vmatpush1.bf16.msra.mxu0 %v2026
  %2149 = vmatprep.subr.bf16.mxu0 0
  %2150 = vmatpush1.bf16.msra.mxu0 %v2027
  %2151 = vmatprep.subr.bf16.mxu0 0
  %2152 = vmatpush1.bf16.msra.mxu0 %v2028
  %2153 = vmatprep.mubr.bf16.mxu0 %v1763
  %2154 = vmatmul.mubr.bf16.gmra.mrb[0].mxu0 %v1749
  %v2155 = vpop.f32.mrb[0].mxu0
  %v2156 = vadd.f32 %v2115, %v2155
  %v2157 = vpop.f32.mrb[0].mxu0
  %v2158 = vpop.f32.mrb[0].mxu0
  %v2159 = vadd.f32 %v2118, %v2158
  %v2160 = vpop.f32.mrb[0].mxu0
  %2161 = vdwg.mxu0
  %2162 = vmatprep.subr.bf16.mxu0 0
  %2163 = vmatpush1.bf16.msra.mxu0 %v2029
  %2164 = vmatprep.subr.bf16.mxu0 0
  %2165 = vmatpush1.bf16.msra.mxu0 %v2030
  %2166 = vmatprep.subr.bf16.mxu0 0
  %2167 = vmatpush1.bf16.msra.mxu0 %v2031
  %2168 = vmatprep.subr.bf16.mxu0 0
  %2169 = vmatpush1.bf16.msra.mxu0 %v2032
  %2170 = vmatprep.subr.bf16.mxu0 0
  %2171 = vmatpush1.bf16.msra.mxu0 %v2033
  %2172 = vmatprep.subr.bf16.mxu0 0
  %2173 = vmatpush1.bf16.msra.mxu0 %v2078
  %2174 = vmatprep.subr.bf16.mxu0 0
  %2175 = vmatpush1.bf16.msra.mxu0 0
  %2176 = vmatprep.subr.bf16.mxu0 0
  %2177 = vmatpush1.bf16.msra.mxu0 0
  %2178 = vmatprep.subr.bf16.mxu0 0
  %2179 = vmatpush1.bf16.msra.mxu0 0
  %2180 = vmatprep.subr.bf16.mxu0 0
  %2181 = vmatpush1.bf16.msra.mxu0 0
  %2182 = vmatprep.subr.bf16.mxu0 0
  %2183 = vmatpush1.bf16.msra.mxu0 0
  %2184 = vmatprep.subr.bf16.mxu0 0
  %2185 = vmatpush1.bf16.msra.mxu0 0
  %2186 = vmatprep.subr.bf16.mxu0 0
  %2187 = vmatpush1.bf16.msra.mxu0 0
  %2188 = vmatprep.subr.bf16.mxu0 0
  %2189 = vmatpush1.bf16.msra.mxu0 0
  %2190 = vmatprep.subr.bf16.mxu0 0
  %2191 = vmatpush1.bf16.msra.mxu0 0
  %2192 = vmatprep.subr.bf16.mxu0 0
  %2193 = vmatpush1.bf16.msra.mxu0 0
  %2194 = vmatprep.mubr.bf16.mxu0 0
  %2195 = vmatmul.mubr.bf16.gmra.mrb[0].mxu0 %v2074
  %v2196 = vpop.f32.mrb[0].mxu0
  %v2197 = vadd.f32 %v2156, %v2196
  %v2198 = vpop.f32.mrb[0].mxu0
  %v2199 = vpop.f32.mrb[0].mxu0
  %v2200 = vadd.f32 %v2159, %v2199
  %v2201 = vpop.f32.mrb[0].mxu0
  %2202 = vdwg.mxu0
  %2203 = vst [vmem:[%s14] sm:$0xff] %v2197
  %2204 = vst [vmem:[%s14 + $0x8] sm:$0xff] %v2200
  %v2205 = vld [vmem:[%s2] sm:$0xff]
  %v2206 = vld [vmem:[%s2 + $0x8] sm:$0xff]
  %v2207 = vmul.f32 %v2197, 0.5
  %v2208 = vmul.f32 %v2200, 0.5
  %v2209 = vmul.f32 %v2207, 1.442695
  %v2210 = vpow.pop %v2209
  %v2211 = vmul.f32 %v2208, 1.442695
  %v2212 = vpow.pop %v2211
  %2215 = vrot.lane.b32.xlu0 %v2210, 96
  %v2216 = vpop.permute.xlu0 %2215
  %2217 = vrot.lane.b32.xlu0 %v2212, 96
  %v2218 = vpop.permute.xlu0 %2217
  %v2221 = vmul.f32 %v2205, %v2216
  %v2222 = vmul.f32 %v2206, %v2218
  %v2223 = vadd.f32 %v2197, %v2221
  %v2224 = vadd.f32 %v2200, %v2222
  %v2225 = vpack.c.bf16 %v2224, %v2223
  %v2226 = vld [vmem:[%s9] sm:$0xff]
  %v2227 = vld [vmem:[%s9 + $0x8] sm:$0xff]
  %v2228 = vld [vmem:[%s9 + $0x10] sm:$0xff]
  %v2229 = vld [vmem:[%s9 + $0x18] sm:$0xff]
  %v2230 = vld [vmem:[%s9 + $0x20] sm:$0xff]
  %v2231 = vld [vmem:[%s9 + $0x28] sm:$0xff]
  %v2232 = vld [vmem:[%s9 + $0x30] sm:$0xff]
  %v2233 = vld [vmem:[%s9 + $0x38] sm:$0xff]
  %v2234 = vld [vmem:[%s10] sm:$0xf]
  %v2236 = vlaneseq
  %v2237 = vshrl.u32 %v2236, 7
  %v2238 = vsub.s32 0, %v2237
  %v2239 = vrot.slane %v2234, %v2238
  %v2240 = vlaneseq
  %v2241 = vshrl.u32 %v2240, 7
  %v2242 = vsub.s32 1, %v2241
  %v2243 = vrot.slane %v2234, %v2242
  %v2244 = vlaneseq
  %v2245 = vshrl.u32 %v2244, 7
  %v2246 = vsub.s32 2, %v2245
  %v2247 = vrot.slane %v2234, %v2246
  %v2248 = vlaneseq
  %v2249 = vshrl.u32 %v2248, 7
  %v2250 = vsub.s32 3, %v2249
  %v2251 = vrot.slane %v2234, %v2250
  %v2264 = vunpack.c.l.b16 %v2226
  %v2265 = vunpack.c.h.b16 %v2226
  %v2266 = vunpack.c.l.b16 %v2227
  %v2267 = vunpack.c.h.b16 %v2227
  %v2268 = vunpack.c.l.b16 %v2228
  %v2269 = vunpack.c.h.b16 %v2228
  %v2270 = vunpack.c.l.b16 %v2229
  %v2271 = vunpack.c.h.b16 %v2229
  %v2272 = vunpack.c.l.b16 %v2230
  %v2273 = vunpack.c.h.b16 %v2230
  %v2274 = vunpack.c.l.b16 %v2231
  %v2275 = vunpack.c.h.b16 %v2231
  %v2276 = vunpack.c.l.b16 %v2232
  %v2277 = vunpack.c.h.b16 %v2232
  %v2278 = vunpack.c.l.b16 %v2233
  %v2279 = vunpack.c.h.b16 %v2233
  %v2280 = vpack.c.b16 %v2268, %v2264
  %v2281 = vpack.c.b16 %v2269, %v2265
  %v2282 = vpack.c.b16 %v2270, %v2266
  %v2283 = vpack.c.b16 %v2271, %v2267
  %v2284 = vpack.c.b16 %v2276, %v2272
  %v2285 = vpack.c.b16 %v2277, %v2273
  %v2286 = vpack.c.b16 %v2278, %v2274
  %v2287 = vpack.c.b16 %v2279, %v2275
  %vm2296 = vcmask 261120
  %v2298 = vsel %vm2296, %v2225, 0
  %2300 = vmatprep.subr.bf16.mxu0 %v2281
  %2301 = vmatpush1.bf16.msra.mxu0 %v2280
  %2302 = vmatprep.subr.bf16.mxu0 %v2285
  %2303 = vmatpush1.bf16.msra.mxu0 %v2284
  %2304 = vmatprep.subr.bf16.mxu0 0
  %2305 = vmatpush1.bf16.msra.mxu0 0
  %2306 = vmatprep.subr.bf16.mxu0 0
  %2307 = vmatpush1.bf16.msra.mxu0 0
  %2308 = vmatprep.subr.bf16.mxu0 0
  %2309 = vmatpush1.bf16.msra.mxu0 0
  %2310 = vmatprep.subr.bf16.mxu0 0
  %2311 = vmatpush1.bf16.msra.mxu0 0
  %2312 = vmatprep.subr.bf16.mxu0 0
  %2313 = vmatpush1.bf16.msra.mxu0 0
  %2314 = vmatprep.subr.bf16.mxu0 0
  %2315 = vmatpush1.bf16.msra.mxu0 0
  %2316 = vmatprep.subr.bf16.mxu0 0
  %2317 = vmatpush1.bf16.msra.mxu0 0
  %2318 = vmatprep.subr.bf16.mxu0 0
  %2319 = vmatpush1.bf16.msra.mxu0 0
  %2320 = vmatprep.subr.bf16.mxu0 0
  %2321 = vmatpush1.bf16.msra.mxu0 0
  %2322 = vmatprep.subr.bf16.mxu0 0
  %2323 = vmatpush1.bf16.msra.mxu0 0
  %2324 = vmatprep.subr.bf16.mxu0 0
  %2325 = vmatpush1.bf16.msra.mxu0 0
  %2326 = vmatprep.subr.bf16.mxu0 0
  %2327 = vmatpush1.bf16.msra.mxu0 0
  %2328 = vmatprep.subr.bf16.mxu0 0
  %2329 = vmatpush1.bf16.msra.mxu0 0
  %2330 = vmatprep.subr.bf16.mxu0 0
  %2331 = vmatpush1.bf16.msra.mxu0 0
  %2332 = vmatprep.mubr.bf16.mxu0 0
  %2333 = vmatmul.mubr.bf16.gmra.mrb[0].mxu0 %v2298
  %v2334 = vpop.f32.mrb[0].mxu0
  %v2335 = vadd.f32 %v2239, %v2334
  %v2336 = vpop.f32.mrb[0].mxu0
  %v2337 = vadd.f32 %v2243, %v2336
  %v2338 = vpop.f32.mrb[0].mxu0
  %v2339 = vadd.f32 %v2239, %v2338
  %v2340 = vpop.f32.mrb[0].mxu0
  %v2341 = vadd.f32 %v2243, %v2340
  %2342 = vdwg.mxu0
  %2343 = vmatprep.subr.bf16.mxu0 %v2283
  %2344 = vmatpush1.bf16.msra.mxu0 %v2282
  %2345 = vmatprep.subr.bf16.mxu0 %v2287
  %2346 = vmatpush1.bf16.msra.mxu0 %v2286
  %2347 = vmatprep.subr.bf16.mxu0 0
  %2348 = vmatpush1.bf16.msra.mxu0 0
  %2349 = vmatprep.subr.bf16.mxu0 0
  %2350 = vmatpush1.bf16.msra.mxu0 0
  %2351 = vmatprep.subr.bf16.mxu0 0
  %2352 = vmatpush1.bf16.msra.mxu0 0
  %2353 = vmatprep.subr.bf16.mxu0 0
  %2354 = vmatpush1.bf16.msra.mxu0 0
  %2355 = vmatprep.subr.bf16.mxu0 0
  %2356 = vmatpush1.bf16.msra.mxu0 0
  %2357 = vmatprep.subr.bf16.mxu0 0
  %2358 = vmatpush1.bf16.msra.mxu0 0
  %2359 = vmatprep.subr.bf16.mxu0 0
  %2360 = vmatpush1.bf16.msra.mxu0 0
  %2361 = vmatprep.subr.bf16.mxu0 0
  %2362 = vmatpush1.bf16.msra.mxu0 0
  %2363 = vmatprep.subr.bf16.mxu0 0
  %2364 = vmatpush1.bf16.msra.mxu0 0
  %2365 = vmatprep.subr.bf16.mxu0 0
  %2366 = vmatpush1.bf16.msra.mxu0 0
  %2367 = vmatprep.subr.bf16.mxu0 0
  %2368 = vmatpush1.bf16.msra.mxu0 0
  %2369 = vmatprep.subr.bf16.mxu0 0
  %2370 = vmatpush1.bf16.msra.mxu0 0
  %2371 = vmatprep.subr.bf16.mxu0 0
  %2372 = vmatpush1.bf16.msra.mxu0 0
  %2373 = vmatprep.subr.bf16.mxu0 0
  %2374 = vmatpush1.bf16.msra.mxu0 0
  %2375 = vmatprep.mubr.bf16.mxu0 0
  %2376 = vmatmul.mubr.bf16.gmra.mrb[0].mxu0 %v2298
  %v2377 = vpop.f32.mrb[0].mxu0
  %v2378 = vadd.f32 %v2247, %v2377
  %v2379 = vpop.f32.mrb[0].mxu0
  %v2380 = vadd.f32 %v2251, %v2379
  %v2381 = vpop.f32.mrb[0].mxu0
  %v2382 = vadd.f32 %v2247, %v2381
  %v2383 = vpop.f32.mrb[0].mxu0
  %v2384 = vadd.f32 %v2251, %v2383
  %2385 = vdwg.mxu0
  %vm2386 = vcmp.gt.f32.partialorder %v2335, 0.0
  %vm2387 = vcmp.gt.f32.partialorder %v2337, 0.0
  %vm2388 = vcmp.gt.f32.partialorder %v2378, 0.0
  %vm2389 = vcmp.gt.f32.partialorder %v2380, 0.0
  %vm2390 = vcmp.gt.f32.partialorder %v2339, 0.0
  %vm2391 = vcmp.gt.f32.partialorder %v2341, 0.0
  %vm2392 = vcmp.gt.f32.partialorder %v2382, 0.0
  %vm2393 = vcmp.gt.f32.partialorder %v2384, 0.0
  %v2394 = vmul.f32 %v2335, 0.01
  %v2395 = vmul.f32 %v2337, 0.01
  %v2396 = vmul.f32 %v2378, 0.01
  %v2397 = vmul.f32 %v2380, 0.01
  %v2398 = vmul.f32 %v2339, 0.01
  %v2399 = vmul.f32 %v2341, 0.01
  %v2400 = vmul.f32 %v2382, 0.01
  %v2401 = vmul.f32 %v2384, 0.01
  %v2402 = vsel %vm2386, %v2335, %v2394
  %v2403 = vsel %vm2387, %v2337, %v2395
  %v2404 = vsel %vm2388, %v2378, %v2396
  %v2405 = vsel %vm2389, %v2380, %v2397
  %v2406 = vsel %vm2390, %v2339, %v2398
  %v2407 = vsel %vm2391, %v2341, %v2399
  %v2408 = vsel %vm2392, %v2382, %v2400
  %v2409 = vsel %vm2393, %v2384, %v2401
  %v2410 = vpack.c.bf16 %v2406, %v2402
  %v2411 = vpack.c.bf16 %v2407, %v2403
  %v2412 = vpack.c.bf16 %v2408, %v2404
  %v2413 = vpack.c.bf16 %v2409, %v2405
  %v2414 = vld [vmem:[%s11] sm:$0xff]
  %v2415 = vld [vmem:[%s11 + $0x8] sm:$0xff]
  %v2416 = vld [vmem:[%s11 + $0x10] sm:$0xff]
  %v2417 = vld [vmem:[%s11 + $0x18] sm:$0xf]
  %v2418 = vld [vmem:[%s11 + $0x1c] sm:$0xff]
  %v2419 = vld [vmem:[%s11 + $0x24] sm:$0xff]
  %v2420 = vld [vmem:[%s11 + $0x2c] sm:$0xff]
  %v2421 = vld [vmem:[%s11 + $0x34] sm:$0xf]
  %v2422 = vld [vmem:[%s11 + $0x38] sm:$0xff]
  %v2423 = vld [vmem:[%s11 + $0x40] sm:$0xff]
  %v2424 = vld [vmem:[%s11 + $0x48] sm:$0xff]
  %v2425 = vld [vmem:[%s11 + $0x50] sm:$0xf]
  %v2426 = vld [vmem:[%s11 + $0x54] sm:$0xff]
  %v2427 = vld [vmem:[%s11 + $0x5c] sm:$0xff]
  %v2428 = vld [vmem:[%s11 + $0x64] sm:$0xff]
  %v2429 = vld [vmem:[%s11 + $0x6c] sm:$0xf]
  %v2430 = vld [vmem:[%s11 + $0x70] sm:$0xff]
  %v2431 = vld [vmem:[%s11 + $0x78] sm:$0xff]
  %v2432 = vld [vmem:[%s11 + $0x80] sm:$0xff]
  %v2433 = vld [vmem:[%s11 + $0x88] sm:$0xf]
  %v2434 = vld [vmem:[%s11 + $0x8c] sm:$0xff]
  %v2435 = vld [vmem:[%s11 + $0x94] sm:$0xff]
  %v2436 = vld [vmem:[%s11 + $0x9c] sm:$0xff]
  %v2437 = vld [vmem:[%s11 + $0xa4] sm:$0xf]
  %v2438 = vld [vmem:[%s11 + $0xa8] sm:$0xff]
  %v2439 = vld [vmem:[%s11 + $0xb0] sm:$0xff]
  %v2440 = vld [vmem:[%s11 + $0xb8] sm:$0xff]
  %v2441 = vld [vmem:[%s11 + $0xc0] sm:$0xf]
  %v2442 = vld [vmem:[%s11 + $0xc4] sm:$0xff]
  %v2443 = vld [vmem:[%s11 + $0xcc] sm:$0xff]
  %v2444 = vld [vmem:[%s11 + $0xd4] sm:$0xff]
  %v2445 = vld [vmem:[%s11 + $0xdc] sm:$0xf]
  %v2446 = vld [vmem:[%s11 + $0xe0] sm:$0xff]
  %v2447 = vld [vmem:[%s11 + $0xe8] sm:$0xff]
  %v2448 = vld [vmem:[%s11 + $0xf0] sm:$0xff]
  %v2449 = vld [vmem:[%s11 + $0xf8] sm:$0xf]
  %v2450 = vld [vmem:[%s11 + $0xfc] sm:$0xff]
  %v2451 = vld [vmem:[%s11 + $0x104] sm:$0xff]
  %v2452 = vld [vmem:[%s11 + $0x10c] sm:$0xff]
  %v2453 = vld [vmem:[%s11 + $0x114] sm:$0xf]
  %v2454 = vld [vmem:[%s11 + $0x118] sm:$0xff]
  %v2455 = vld [vmem:[%s11 + $0x120] sm:$0xff]
  %v2456 = vld [vmem:[%s11 + $0x128] sm:$0xff]
  %v2457 = vld [vmem:[%s11 + $0x130] sm:$0xf]
  %v2458 = vld [vmem:[%s11 + $0x134] sm:$0xff]
  %v2459 = vld [vmem:[%s11 + $0x13c] sm:$0xff]
  %v2460 = vld [vmem:[%s11 + $0x144] sm:$0xff]
  %v2461 = vld [vmem:[%s11 + $0x14c] sm:$0xf]
  %v2462 = vld [vmem:[%s11 + $0x150] sm:$0xff]
  %v2463 = vld [vmem:[%s11 + $0x158] sm:$0xff]
  %v2464 = vld [vmem:[%s11 + $0x160] sm:$0xff]
  %v2465 = vld [vmem:[%s11 + $0x168] sm:$0xf]
  %v2466 = vld [vmem:[%s11 + $0x16c] sm:$0xff]
  %v2467 = vld [vmem:[%s11 + $0x174] sm:$0xff]
  %v2468 = vld [vmem:[%s11 + $0x17c] sm:$0xff]
  %v2469 = vld [vmem:[%s11 + $0x184] sm:$0xf]
  %v2470 = vld [vmem:[%s11 + $0x188] sm:$0xff]
  %v2471 = vld [vmem:[%s11 + $0x190] sm:$0xff]
  %v2472 = vld [vmem:[%s11 + $0x198] sm:$0xff]
  %v2473 = vld [vmem:[%s11 + $0x1a0] sm:$0xf]
  %v2474 = vld [vmem:[%s11 + $0x1a4] sm:$0xff]
  %v2475 = vld [vmem:[%s11 + $0x1ac] sm:$0xff]
  %v2476 = vld [vmem:[%s11 + $0x1b4] sm:$0xff]
  %v2477 = vld [vmem:[%s11 + $0x1bc] sm:$0xf]
  %v2478 = vld [vmem:[%s11 + $0x1c0] sm:$0xff]
  %v2479 = vld [vmem:[%s11 + $0x1c8] sm:$0xff]
  %v2480 = vld [vmem:[%s11 + $0x1d0] sm:$0xff]
  %v2481 = vld [vmem:[%s11 + $0x1d8] sm:$0xf]
  %v2482 = vld [vmem:[%s11 + $0x1dc] sm:$0xff]
  %v2483 = vld [vmem:[%s11 + $0x1e4] sm:$0xff]
  %v2484 = vld [vmem:[%s11 + $0x1ec] sm:$0xff]
  %v2485 = vld [vmem:[%s11 + $0x1f4] sm:$0xf]
  %v2486 = vld [vmem:[%s11 + $0x1f8] sm:$0xff]
  %v2487 = vld [vmem:[%s11 + $0x200] sm:$0xff]
  %v2488 = vld [vmem:[%s11 + $0x208] sm:$0xff]
  %v2489 = vld [vmem:[%s11 + $0x210] sm:$0xf]
  %v2490 = vld [vmem:[%s11 + $0x214] sm:$0xff]
  %v2491 = vld [vmem:[%s11 + $0x21c] sm:$0xff]
  %v2492 = vld [vmem:[%s11 + $0x224] sm:$0xff]
  %v2493 = vld [vmem:[%s11 + $0x22c] sm:$0xf]
  %v2494 = vld [vmem:[%s11 + $0x230] sm:$0xff]
  %v2495 = vld [vmem:[%s11 + $0x238] sm:$0xff]
  %v2496 = vld [vmem:[%s11 + $0x240] sm:$0xff]
  %v2497 = vld [vmem:[%s11 + $0x248] sm:$0xf]
  %v2498 = vld [vmem:[%s11 + $0x24c] sm:$0xff]
  %v2499 = vld [vmem:[%s11 + $0x254] sm:$0xff]
  %v2500 = vld [vmem:[%s11 + $0x25c] sm:$0xff]
  %v2501 = vld [vmem:[%s11 + $0x264] sm:$0xf]
  %v2502 = vld [vmem:[%s11 + $0x268] sm:$0xff]
  %v2503 = vld [vmem:[%s11 + $0x270] sm:$0xff]
  %v2504 = vld [vmem:[%s11 + $0x278] sm:$0xff]
  %v2505 = vld [vmem:[%s11 + $0x280] sm:$0xf]
  %v2506 = vld [vmem:[%s11 + $0x284] sm:$0xff]
  %v2507 = vld [vmem:[%s11 + $0x28c] sm:$0xff]
  %v2508 = vld [vmem:[%s11 + $0x294] sm:$0xff]
  %v2509 = vld [vmem:[%s11 + $0x29c] sm:$0xf]
  %v2510 = vld [vmem:[%s11 + $0x2a0] sm:$0xff]
  %v2511 = vld [vmem:[%s11 + $0x2a8] sm:$0xff]
  %v2512 = vld [vmem:[%s11 + $0x2b0] sm:$0xff]
  %v2513 = vld [vmem:[%s11 + $0x2b8] sm:$0xf]
  %v2514 = vld [vmem:[%s11 + $0x2bc] sm:$0xff]
  %v2515 = vld [vmem:[%s11 + $0x2c4] sm:$0xff]
  %v2516 = vld [vmem:[%s11 + $0x2cc] sm:$0xff]
  %v2517 = vld [vmem:[%s11 + $0x2d4] sm:$0xf]
  %v2518 = vld [vmem:[%s11 + $0x2d8] sm:$0xff]
  %v2519 = vld [vmem:[%s11 + $0x2e0] sm:$0xff]
  %v2520 = vld [vmem:[%s11 + $0x2e8] sm:$0xff]
  %v2521 = vld [vmem:[%s11 + $0x2f0] sm:$0xf]
  %v2522 = vld [vmem:[%s11 + $0x2f4] sm:$0xff]
  %v2523 = vld [vmem:[%s11 + $0x2fc] sm:$0xff]
  %v2524 = vld [vmem:[%s11 + $0x304] sm:$0xff]
  %v2525 = vld [vmem:[%s11 + $0x30c] sm:$0xf]
  %v2526 = vld [vmem:[%s11 + $0x310] sm:$0xff]
  %v2527 = vld [vmem:[%s11 + $0x318] sm:$0xff]
  %v2528 = vld [vmem:[%s11 + $0x320] sm:$0xff]
  %v2529 = vld [vmem:[%s11 + $0x328] sm:$0xf]
  %v2530 = vld [vmem:[%s11 + $0x32c] sm:$0xff]
  %v2531 = vld [vmem:[%s11 + $0x334] sm:$0xff]
  %v2532 = vld [vmem:[%s11 + $0x33c] sm:$0xff]
  %v2533 = vld [vmem:[%s11 + $0x344] sm:$0xf]
  %v2534 = vld [vmem:[%s11 + $0x348] sm:$0xff]
  %v2535 = vld [vmem:[%s11 + $0x350] sm:$0xff]
  %v2536 = vld [vmem:[%s11 + $0x358] sm:$0xff]
  %v2537 = vld [vmem:[%s11 + $0x360] sm:$0xf]
  %v2538 = vld [vmem:[%s11 + $0x364] sm:$0xff]
  %v2539 = vld [vmem:[%s11 + $0x36c] sm:$0xff]
  %v2540 = vld [vmem:[%s11 + $0x374] sm:$0xff]
  %v2541 = vld [vmem:[%s11 + $0x37c] sm:$0xf]
  %v2542 = vld [vmem:[%s11 + $0x380] sm:$0xff]
  %v2543 = vld [vmem:[%s11 + $0x388] sm:$0xff]
  %v2544 = vld [vmem:[%s11 + $0x390] sm:$0xff]
  %v2545 = vld [vmem:[%s11 + $0x398] sm:$0xf]
  %v2546 = vld [vmem:[%s11 + $0x39c] sm:$0xff]
  %v2547 = vld [vmem:[%s11 + $0x3a4] sm:$0xff]
  %v2548 = vld [vmem:[%s11 + $0x3ac] sm:$0xff]
  %v2549 = vld [vmem:[%s11 + $0x3b4] sm:$0xf]
  %v2550 = vld [vmem:[%s11 + $0x3b8] sm:$0xff]
  %v2551 = vld [vmem:[%s11 + $0x3c0] sm:$0xff]
  %v2552 = vld [vmem:[%s11 + $0x3c8] sm:$0xff]
  %v2553 = vld [vmem:[%s11 + $0x3d0] sm:$0xf]
  %v2554 = vld [vmem:[%s11 + $0x3d4] sm:$0xff]
  %v2555 = vld [vmem:[%s11 + $0x3dc] sm:$0xff]
  %v2556 = vld [vmem:[%s11 + $0x3e4] sm:$0xff]
  %v2557 = vld [vmem:[%s11 + $0x3ec] sm:$0xf]
  %v2558 = vld [vmem:[%s11 + $0x3f0] sm:$0xff]
  %v2559 = vld [vmem:[%s11 + $0x3f8] sm:$0xff]
  %v2560 = vld [vmem:[%s11 + $0x400] sm:$0xff]
  %v2561 = vld [vmem:[%s11 + $0x408] sm:$0xf]
  %v2562 = vld [vmem:[%s11 + $0x40c] sm:$0xff]
  %v2563 = vld [vmem:[%s11 + $0x414] sm:$0xff]
  %v2564 = vld [vmem:[%s11 + $0x41c] sm:$0xff]
  %v2565 = vld [vmem:[%s11 + $0x424] sm:$0xf]
  %v2566 = vld [vmem:[%s11 + $0x428] sm:$0xff]
  %v2567 = vld [vmem:[%s11 + $0x430] sm:$0xff]
  %v2568 = vld [vmem:[%s11 + $0x438] sm:$0xff]
  %v2569 = vld [vmem:[%s11 + $0x440] sm:$0xf]
  %v2570 = vld [vmem:[%s11 + $0x444] sm:$0xff]
  %v2571 = vld [vmem:[%s11 + $0x44c] sm:$0xff]
  %v2572 = vld [vmem:[%s11 + $0x454] sm:$0xff]
  %v2573 = vld [vmem:[%s11 + $0x45c] sm:$0xf]
  %v2574 = vld [vmem:[%s11 + $0x460] sm:$0xff]
  %v2575 = vld [vmem:[%s11 + $0x468] sm:$0xff]
  %v2576 = vld [vmem:[%s11 + $0x470] sm:$0xff]
  %v2577 = vld [vmem:[%s11 + $0x478] sm:$0xf]
  %v2578 = vld [vmem:[%s11 + $0x47c] sm:$0xff]
  %v2579 = vld [vmem:[%s11 + $0x484] sm:$0xff]
  %v2580 = vld [vmem:[%s11 + $0x48c] sm:$0xff]
  %v2581 = vld [vmem:[%s11 + $0x494] sm:$0xf]
  %v2582 = vld [vmem:[%s11 + $0x498] sm:$0xff]
  %v2583 = vld [vmem:[%s11 + $0x4a0] sm:$0xff]
  %v2584 = vld [vmem:[%s11 + $0x4a8] sm:$0xff]
  %v2585 = vld [vmem:[%s11 + $0x4b0] sm:$0xf]
  %v2586 = vld [vmem:[%s11 + $0x4b4] sm:$0xff]
  %v2587 = vld [vmem:[%s11 + $0x4bc] sm:$0xff]
  %v2588 = vld [vmem:[%s11 + $0x4c4] sm:$0xff]
  %v2589 = vld [vmem:[%s11 + $0x4cc] sm:$0xf]
  %v2590 = vld [vmem:[%s11 + $0x4d0] sm:$0xff]
  %v2591 = vld [vmem:[%s11 + $0x4d8] sm:$0xff]
  %v2592 = vld [vmem:[%s11 + $0x4e0] sm:$0xff]
  %v2593 = vld [vmem:[%s11 + $0x4e8] sm:$0xf]
  %v2594 = vld [vmem:[%s11 + $0x4ec] sm:$0xff]
  %v2595 = vld [vmem:[%s11 + $0x4f4] sm:$0xff]
  %v2596 = vld [vmem:[%s11 + $0x4fc] sm:$0xff]
  %v2597 = vld [vmem:[%s11 + $0x504] sm:$0xf]
  %v2598 = vld [vmem:[%s11 + $0x508] sm:$0xff]
  %v2599 = vld [vmem:[%s11 + $0x510] sm:$0xff]
  %v2600 = vld [vmem:[%s11 + $0x518] sm:$0xff]
  %v2601 = vld [vmem:[%s11 + $0x520] sm:$0xf]
  %v2602 = vld [vmem:[%s11 + $0x524] sm:$0xff]
  %v2603 = vld [vmem:[%s11 + $0x52c] sm:$0xff]
  %v2604 = vld [vmem:[%s11 + $0x534] sm:$0xff]
  %v2605 = vld [vmem:[%s11 + $0x53c] sm:$0xf]
  %v2606 = vld [vmem:[%s11 + $0x540] sm:$0xff]
  %v2607 = vld [vmem:[%s11 + $0x548] sm:$0xff]
  %v2608 = vld [vmem:[%s11 + $0x550] sm:$0xff]
  %v2609 = vld [vmem:[%s11 + $0x558] sm:$0xf]
  %v2610 = vld [vmem:[%s11 + $0x55c] sm:$0xff]
  %v2611 = vld [vmem:[%s11 + $0x564] sm:$0xff]
  %v2612 = vld [vmem:[%s11 + $0x56c] sm:$0xff]
  %v2613 = vld [vmem:[%s11 + $0x574] sm:$0xf]
  %v2614 = vld [vmem:[%s12] sm:$0x7f]
  %v2616 = vlaneseq
  %v2617 = vshrl.u32 %v2616, 7
  %v2618 = vsub.s32 0, %v2617
  %v2619 = vrot.slane %v2614, %v2618
  %v2620 = vlaneseq
  %v2621 = vshrl.u32 %v2620, 7
  %v2622 = vsub.s32 1, %v2621
  %v2623 = vrot.slane %v2614, %v2622
  %v2624 = vlaneseq
  %v2625 = vshrl.u32 %v2624, 7
  %v2626 = vsub.s32 2, %v2625
  %v2627 = vrot.slane %v2614, %v2626
  %v2628 = vlaneseq
  %v2629 = vshrl.u32 %v2628, 7
  %v2630 = vsub.s32 3, %v2629
  %v2631 = vrot.slane %v2614, %v2630
  %v2632 = vlaneseq
  %v2633 = vshrl.u32 %v2632, 7
  %v2634 = vsub.s32 4, %v2633
  %v2635 = vrot.slane %v2614, %v2634
  %v2636 = vlaneseq
  %v2637 = vshrl.u32 %v2636, 7
  %v2638 = vsub.s32 5, %v2637
  %v2639 = vrot.slane %v2614, %v2638
  %v2640 = vlaneseq
  %v2641 = vshrl.u32 %v2640, 7
  %v2642 = vsub.s32 6, %v2641
  %v2643 = vrot.slane %v2614, %v2642
  %v2851 = vunpack.c.l.b16 %v2414
  %v2852 = vunpack.c.h.b16 %v2414
  %v2853 = vunpack.c.l.b16 %v2415
  %v2854 = vunpack.c.h.b16 %v2415
  %v2855 = vunpack.c.l.b16 %v2416
  %v2856 = vunpack.c.h.b16 %v2416
  %v2857 = vunpack.c.l.b16 %v2417
  %v2858 = vunpack.c.l.b16 %v2418
  %v2859 = vunpack.c.h.b16 %v2418
  %v2860 = vunpack.c.l.b16 %v2419
  %v2861 = vunpack.c.h.b16 %v2419
  %v2862 = vunpack.c.l.b16 %v2420
  %v2863 = vunpack.c.h.b16 %v2420
  %v2864 = vunpack.c.l.b16 %v2421
  %v2865 = vunpack.c.l.b16 %v2422
  %v2866 = vunpack.c.h.b16 %v2422
  %v2867 = vunpack.c.l.b16 %v2423
  %v2868 = vunpack.c.h.b16 %v2423
  %v2869 = vunpack.c.l.b16 %v2424
  %v2870 = vunpack.c.h.b16 %v2424
  %v2871 = vunpack.c.l.b16 %v2425
  %v2872 = vunpack.c.l.b16 %v2426
  %v2873 = vunpack.c.h.b16 %v2426
  %v2874 = vunpack.c.l.b16 %v2427
  %v2875 = vunpack.c.h.b16 %v2427
  %v2876 = vunpack.c.l.b16 %v2428
  %v2877 = vunpack.c.h.b16 %v2428
  %v2878 = vunpack.c.l.b16 %v2429
  %v2879 = vunpack.c.l.b16 %v2430
  %v2880 = vunpack.c.h.b16 %v2430
  %v2881 = vunpack.c.l.b16 %v2431
  %v2882 = vunpack.c.h.b16 %v2431
  %v2883 = vunpack.c.l.b16 %v2432
  %v2884 = vunpack.c.h.b16 %v2432
  %v2885 = vunpack.c.l.b16 %v2433
  %v2886 = vunpack.c.l.b16 %v2434
  %v2887 = vunpack.c.h.b16 %v2434
  %v2888 = vunpack.c.l.b16 %v2435
  %v2889 = vunpack.c.h.b16 %v2435
  %v2890 = vunpack.c.l.b16 %v2436
  %v2891 = vunpack.c.h.b16 %v2436
  %v2892 = vunpack.c.l.b16 %v2437
  %v2893 = vunpack.c.l.b16 %v2438
  %v2894 = vunpack.c.h.b16 %v2438
  %v2895 = vunpack.c.l.b16 %v2439
  %v2896 = vunpack.c.h.b16 %v2439
  %v2897 = vunpack.c.l.b16 %v2440
  %v2898 = vunpack.c.h.b16 %v2440
  %v2899 = vunpack.c.l.b16 %v2441
  %v2900 = vunpack.c.l.b16 %v2442
  %v2901 = vunpack.c.h.b16 %v2442
  %v2902 = vunpack.c.l.b16 %v2443
  %v2903 = vunpack.c.h.b16 %v2443
  %v2904 = vunpack.c.l.b16 %v2444
  %v2905 = vunpack.c.h.b16 %v2444
  %v2906 = vunpack.c.l.b16 %v2445
  %v2907 = vunpack.c.l.b16 %v2446
  %v2908 = vunpack.c.h.b16 %v2446
  %v2909 = vunpack.c.l.b16 %v2447
  %v2910 = vunpack.c.h.b16 %v2447
  %v2911 = vunpack.c.l.b16 %v2448
  %v2912 = vunpack.c.h.b16 %v2448
  %v2913 = vunpack.c.l.b16 %v2449
  %v2914 = vunpack.c.l.b16 %v2450
  %v2915 = vunpack.c.h.b16 %v2450
  %v2916 = vunpack.c.l.b16 %v2451
  %v2917 = vunpack.c.h.b16 %v2451
  %v2918 = vunpack.c.l.b16 %v2452
  %v2919 = vunpack.c.h.b16 %v2452
  %v2920 = vunpack.c.l.b16 %v2453
  %v2921 = vunpack.c.l.b16 %v2454
  %v2922 = vunpack.c.h.b16 %v2454
  %v2923 = vunpack.c.l.b16 %v2455
  %v2924 = vunpack.c.h.b16 %v2455
  %v2925 = vunpack.c.l.b16 %v2456
  %v2926 = vunpack.c.h.b16 %v2456
  %v2927 = vunpack.c.l.b16 %v2457
  %v2928 = vunpack.c.l.b16 %v2458
  %v2929 = vunpack.c.h.b16 %v2458
  %v2930 = vunpack.c.l.b16 %v2459
  %v2931 = vunpack.c.h.b16 %v2459
  %v2932 = vunpack.c.l.b16 %v2460
  %v2933 = vunpack.c.h.b16 %v2460
  %v2934 = vunpack.c.l.b16 %v2461
  %v2935 = vunpack.c.l.b16 %v2462
  %v2936 = vunpack.c.h.b16 %v2462
  %v2937 = vunpack.c.l.b16 %v2463
  %v2938 = vunpack.c.h.b16 %v2463
  %v2939 = vunpack.c.l.b16 %v2464
  %v2940 = vunpack.c.h.b16 %v2464
  %v2941 = vunpack.c.l.b16 %v2465
  %v2942 = vunpack.c.l.b16 %v2466
  %v2943 = vunpack.c.h.b16 %v2466
  %v2944 = vunpack.c.l.b16 %v2467
  %v2945 = vunpack.c.h.b16 %v2467
  %v2946 = vunpack.c.l.b16 %v2468
  %v2947 = vunpack.c.h.b16 %v2468
  %v2948 = vunpack.c.l.b16 %v2469
  %v2949 = vunpack.c.l.b16 %v2470
  %v2950 = vunpack.c.h.b16 %v2470
  %v2951 = vunpack.c.l.b16 %v2471
  %v2952 = vunpack.c.h.b16 %v2471
  %v2953 = vunpack.c.l.b16 %v2472
  %v2954 = vunpack.c.h.b16 %v2472
  %v2955 = vunpack.c.l.b16 %v2473
  %v2956 = vunpack.c.l.b16 %v2474
  %v2957 = vunpack.c.h.b16 %v2474
  %v2958 = vunpack.c.l.b16 %v2475
  %v2959 = vunpack.c.h.b16 %v2475
  %v2960 = vunpack.c.l.b16 %v2476
  %v2961 = vunpack.c.h.b16 %v2476
  %v2962 = vunpack.c.l.b16 %v2477
  %v2963 = vunpack.c.l.b16 %v2478
  %v2964 = vunpack.c.h.b16 %v2478
  %v2965 = vunpack.c.l.b16 %v2479
  %v2966 = vunpack.c.h.b16 %v2479
  %v2967 = vunpack.c.l.b16 %v2480
  %v2968 = vunpack.c.h.b16 %v2480
  %v2969 = vunpack.c.l.b16 %v2481
  %v2970 = vunpack.c.l.b16 %v2482
  %v2971 = vunpack.c.h.b16 %v2482
  %v2972 = vunpack.c.l.b16 %v2483
  %v2973 = vunpack.c.h.b16 %v2483
  %v2974 = vunpack.c.l.b16 %v2484
  %v2975 = vunpack.c.h.b16 %v2484
  %v2976 = vunpack.c.l.b16 %v2485
  %v2977 = vunpack.c.l.b16 %v2486
  %v2978 = vunpack.c.h.b16 %v2486
  %v2979 = vunpack.c.l.b16 %v2487
  %v2980 = vunpack.c.h.b16 %v2487
  %v2981 = vunpack.c.l.b16 %v2488
  %v2982 = vunpack.c.h.b16 %v2488
  %v2983 = vunpack.c.l.b16 %v2489
  %v2984 = vunpack.c.l.b16 %v2490
  %v2985 = vunpack.c.h.b16 %v2490
  %v2986 = vunpack.c.l.b16 %v2491
  %v2987 = vunpack.c.h.b16 %v2491
  %v2988 = vunpack.c.l.b16 %v2492
  %v2989 = vunpack.c.h.b16 %v2492
  %v2990 = vunpack.c.l.b16 %v2493
  %v2991 = vunpack.c.l.b16 %v2494
  %v2992 = vunpack.c.h.b16 %v2494
  %v2993 = vunpack.c.l.b16 %v2495
  %v2994 = vunpack.c.h.b16 %v2495
  %v2995 = vunpack.c.l.b16 %v2496
  %v2996 = vunpack.c.h.b16 %v2496
  %v2997 = vunpack.c.l.b16 %v2497
  %v2998 = vunpack.c.l.b16 %v2498
  %v2999 = vunpack.c.h.b16 %v2498
  %v3000 = vunpack.c.l.b16 %v2499
  %v3001 = vunpack.c.h.b16 %v2499
  %v3002 = vunpack.c.l.b16 %v2500
  %v3003 = vunpack.c.h.b16 %v2500
  %v3004 = vunpack.c.l.b16 %v2501
  %v3005 = vunpack.c.l.b16 %v2502
  %v3006 = vunpack.c.h.b16 %v2502
  %v3007 = vunpack.c.l.b16 %v2503
  %v3008 = vunpack.c.h.b16 %v2503
  %v3009 = vunpack.c.l.b16 %v2504
  %v3010 = vunpack.c.h.b16 %v2504
  %v3011 = vunpack.c.l.b16 %v2505
  %v3012 = vunpack.c.l.b16 %v2506
  %v3013 = vunpack.c.h.b16 %v2506
  %v3014 = vunpack.c.l.b16 %v2507
  %v3015 = vunpack.c.h.b16 %v2507
  %v3016 = vunpack.c.l.b16 %v2508
  %v3017 = vunpack.c.h.b16 %v2508
  %v3018 = vunpack.c.l.b16 %v2509
  %v3019 = vunpack.c.l.b16 %v2510
  %v3020 = vunpack.c.h.b16 %v2510
  %v3021 = vunpack.c.l.b16 %v2511
  %v3022 = vunpack.c.h.b16 %v2511
  %v3023 = vunpack.c.l.b16 %v2512
  %v3024 = vunpack.c.h.b16 %v2512
  %v3025 = vunpack.c.l.b16 %v2513
  %v3026 = vunpack.c.l.b16 %v2514
  %v3027 = vunpack.c.h.b16 %v2514
  %v3028 = vunpack.c.l.b16 %v2515
  %v3029 = vunpack.c.h.b16 %v2515
  %v3030 = vunpack.c.l.b16 %v2516
  %v3031 = vunpack.c.h.b16 %v2516
  %v3032 = vunpack.c.l.b16 %v2517
  %v3033 = vunpack.c.l.b16 %v2518
  %v3034 = vunpack.c.h.b16 %v2518
  %v3035 = vunpack.c.l.b16 %v2519
  %v3036 = vunpack.c.h.b16 %v2519
  %v3037 = vunpack.c.l.b16 %v2520
  %v3038 = vunpack.c.h.b16 %v2520
  %v3039 = vunpack.c.l.b16 %v2521
  %v3040 = vunpack.c.l.b16 %v2522
  %v3041 = vunpack.c.h.b16 %v2522
  %v3042 = vunpack.c.l.b16 %v2523
  %v3043 = vunpack.c.h.b16 %v2523
  %v3044 = vunpack.c.l.b16 %v2524
  %v3045 = vunpack.c.h.b16 %v2524
  %v3046 = vunpack.c.l.b16 %v2525
  %v3047 = vunpack.c.l.b16 %v2526
  %v3048 = vunpack.c.h.b16 %v2526
  %v3049 = vunpack.c.l.b16 %v2527
  %v3050 = vunpack.c.h.b16 %v2527
  %v3051 = vunpack.c.l.b16 %v2528
  %v3052 = vunpack.c.h.b16 %v2528
  %v3053 = vunpack.c.l.b16 %v2529
  %v3054 = vunpack.c.l.b16 %v2530
  %v3055 = vunpack.c.h.b16 %v2530
  %v3056 = vunpack.c.l.b16 %v2531
  %v3057 = vunpack.c.h.b16 %v2531
  %v3058 = vunpack.c.l.b16 %v2532
  %v3059 = vunpack.c.h.b16 %v2532
  %v3060 = vunpack.c.l.b16 %v2533
  %v3061 = vunpack.c.l.b16 %v2534
  %v3062 = vunpack.c.h.b16 %v2534
  %v3063 = vunpack.c.l.b16 %v2535
  %v3064 = vunpack.c.h.b16 %v2535
  %v3065 = vunpack.c.l.b16 %v2536
  %v3066 = vunpack.c.h.b16 %v2536
  %v3067 = vunpack.c.l.b16 %v2537
  %v3068 = vunpack.c.l.b16 %v2538
  %v3069 = vunpack.c.h.b16 %v2538
  %v3070 = vunpack.c.l.b16 %v2539
  %v3071 = vunpack.c.h.b16 %v2539
  %v3072 = vunpack.c.l.b16 %v2540
  %v3073 = vunpack.c.h.b16 %v2540
  %v3074 = vunpack.c.l.b16 %v2541
  %v3075 = vunpack.c.l.b16 %v2542
  %v3076 = vunpack.c.h.b16 %v2542
  %v3077 = vunpack.c.l.b16 %v2543
  %v3078 = vunpack.c.h.b16 %v2543
  %v3079 = vunpack.c.l.b16 %v2544
  %v3080 = vunpack.c.h.b16 %v2544
  %v3081 = vunpack.c.l.b16 %v2545
  %v3082 = vunpack.c.l.b16 %v2546
  %v3083 = vunpack.c.h.b16 %v2546
  %v3084 = vunpack.c.l.b16 %v2547
  %v3085 = vunpack.c.h.b16 %v2547
  %v3086 = vunpack.c.l.b16 %v2548
  %v3087 = vunpack.c.h.b16 %v2548
  %v3088 = vunpack.c.l.b16 %v2549
  %v3089 = vunpack.c.l.b16 %v2550
  %v3090 = vunpack.c.h.b16 %v2550
  %v3091 = vunpack.c.l.b16 %v2551
  %v3092 = vunpack.c.h.b16 %v2551
  %v3093 = vunpack.c.l.b16 %v2552
  %v3094 = vunpack.c.h.b16 %v2552
  %v3095 = vunpack.c.l.b16 %v2553
  %v3096 = vunpack.c.l.b16 %v2554
  %v3097 = vunpack.c.h.b16 %v2554
  %v3098 = vunpack.c.l.b16 %v2555
  %v3099 = vunpack.c.h.b16 %v2555
  %v3100 = vunpack.c.l.b16 %v2556
  %v3101 = vunpack.c.h.b16 %v2556
  %v3102 = vunpack.c.l.b16 %v2557
  %v3103 = vunpack.c.l.b16 %v2558
  %v3104 = vunpack.c.h.b16 %v2558
  %v3105 = vunpack.c.l.b16 %v2559
  %v3106 = vunpack.c.h.b16 %v2559
  %v3107 = vunpack.c.l.b16 %v2560
  %v3108 = vunpack.c.h.b16 %v2560
  %v3109 = vunpack.c.l.b16 %v2561
  %v3110 = vunpack.c.l.b16 %v2562
  %v3111 = vunpack.c.h.b16 %v2562
  %v3112 = vunpack.c.l.b16 %v2563
  %v3113 = vunpack.c.h.b16 %v2563
  %v3114 = vunpack.c.l.b16 %v2564
  %v3115 = vunpack.c.h.b16 %v2564
  %v3116 = vunpack.c.l.b16 %v2565
  %v3117 = vunpack.c.l.b16 %v2566
  %v3118 = vunpack.c.h.b16 %v2566
  %v3119 = vunpack.c.l.b16 %v2567
  %v3120 = vunpack.c.h.b16 %v2567
  %v3121 = vunpack.c.l.b16 %v2568
  %v3122 = vunpack.c.h.b16 %v2568
  %v3123 = vunpack.c.l.b16 %v2569
  %v3124 = vunpack.c.l.b16 %v2570
  %v3125 = vunpack.c.h.b16 %v2570
  %v3126 = vunpack.c.l.b16 %v2571
  %v3127 = vunpack.c.h.b16 %v2571
  %v3128 = vunpack.c.l.b16 %v2572
  %v3129 = vunpack.c.h.b16 %v2572
  %v3130 = vunpack.c.l.b16 %v2573
  %v3131 = vunpack.c.l.b16 %v2574
  %v3132 = vunpack.c.h.b16 %v2574
  %v3133 = vunpack.c.l.b16 %v2575
  %v3134 = vunpack.c.h.b16 %v2575
  %v3135 = vunpack.c.l.b16 %v2576
  %v3136 = vunpack.c.h.b16 %v2576
  %v3137 = vunpack.c.l.b16 %v2577
  %v3138 = vunpack.c.l.b16 %v2578
  %v3139 = vunpack.c.h.b16 %v2578
  %v3140 = vunpack.c.l.b16 %v2579
  %v3141 = vunpack.c.h.b16 %v2579
  %v3142 = vunpack.c.l.b16 %v2580
  %v3143 = vunpack.c.h.b16 %v2580
  %v3144 = vunpack.c.l.b16 %v2581
  %v3145 = vunpack.c.l.b16 %v2582
  %v3146 = vunpack.c.h.b16 %v2582
  %v3147 = vunpack.c.l.b16 %v2583
  %v3148 = vunpack.c.h.b16 %v2583
  %v3149 = vunpack.c.l.b16 %v2584
  %v3150 = vunpack.c.h.b16 %v2584
  %v3151 = vunpack.c.l.b16 %v2585
  %v3152 = vunpack.c.l.b16 %v2586
  %v3153 = vunpack.c.h.b16 %v2586
  %v3154 = vunpack.c.l.b16 %v2587
  %v3155 = vunpack.c.h.b16 %v2587
  %v3156 = vunpack.c.l.b16 %v2588
  %v3157 = vunpack.c.h.b16 %v2588
  %v3158 = vunpack.c.l.b16 %v2589
  %v3159 = vunpack.c.l.b16 %v2590
  %v3160 = vunpack.c.h.b16 %v2590
  %v3161 = vunpack.c.l.b16 %v2591
  %v3162 = vunpack.c.h.b16 %v2591
  %v3163 = vunpack.c.l.b16 %v2592
  %v3164 = vunpack.c.h.b16 %v2592
  %v3165 = vunpack.c.l.b16 %v2593
  %v3166 = vunpack.c.l.b16 %v2594
  %v3167 = vunpack.c.h.b16 %v2594
  %v3168 = vunpack.c.l.b16 %v2595
  %v3169 = vunpack.c.h.b16 %v2595
  %v3170 = vunpack.c.l.b16 %v2596
  %v3171 = vunpack.c.h.b16 %v2596
  %v3172 = vunpack.c.l.b16 %v2597
  %v3173 = vunpack.c.l.b16 %v2598
  %v3174 = vunpack.c.h.b16 %v2598
  %v3175 = vunpack.c.l.b16 %v2599
  %v3176 = vunpack.c.h.b16 %v2599
  %v3177 = vunpack.c.l.b16 %v2600
  %v3178 = vunpack.c.h.b16 %v2600
  %v3179 = vunpack.c.l.b16 %v2601
  %v3180 = vunpack.c.l.b16 %v2602
  %v3181 = vunpack.c.h.b16 %v2602
  %v3182 = vunpack.c.l.b16 %v2603
  %v3183 = vunpack.c.h.b16 %v2603
  %v3184 = vunpack.c.l.b16 %v2604
  %v3185 = vunpack.c.h.b16 %v2604
  %v3186 = vunpack.c.l.b16 %v2605
  %v3187 = vunpack.c.l.b16 %v2606
  %v3188 = vunpack.c.h.b16 %v2606
  %v3189 = vunpack.c.l.b16 %v2607
  %v3190 = vunpack.c.h.b16 %v2607
  %v3191 = vunpack.c.l.b16 %v2608
  %v3192 = vunpack.c.h.b16 %v2608
  %v3193 = vunpack.c.l.b16 %v2609
  %v3194 = vunpack.c.l.b16 %v2610
  %v3195 = vunpack.c.h.b16 %v2610
  %v3196 = vunpack.c.l.b16 %v2611
  %v3197 = vunpack.c.h.b16 %v2611
  %v3198 = vunpack.c.l.b16 %v2612
  %v3199 = vunpack.c.h.b16 %v2612
  %v3200 = vunpack.c.l.b16 %v2613
  %v3201 = vpack.c.b16 %v2858, %v2851
  %v3202 = vpack.c.b16 %v2859, %v2852
  %v3203 = vpack.c.b16 %v2860, %v2853
  %v3204 = vpack.c.b16 %v2861, %v2854
  %v3205 = vpack.c.b16 %v2862, %v2855
  %v3206 = vpack.c.b16 %v2863, %v2856
  %v3207 = vpack.c.b16 %v2864, %v2857
  %v3208 = vpack.c.b16 %v2872, %v2865
  %v3209 = vpack.c.b16 %v2873, %v2866
  %v3210 = vpack.c.b16 %v2874, %v2867
  %v3211 = vpack.c.b16 %v2875, %v2868
  %v3212 = vpack.c.b16 %v2876, %v2869
  %v3213 = vpack.c.b16 %v2877, %v2870
  %v3214 = vpack.c.b16 %v2878, %v2871
  %v3215 = vpack.c.b16 %v2886, %v2879
  %v3216 = vpack.c.b16 %v2887, %v2880
  %v3217 = vpack.c.b16 %v2888, %v2881
  %v3218 = vpack.c.b16 %v2889, %v2882
  %v3219 = vpack.c.b16 %v2890, %v2883
  %v3220 = vpack.c.b16 %v2891, %v2884
  %v3221 = vpack.c.b16 %v2892, %v2885
  %v3222 = vpack.c.b16 %v2900, %v2893
  %v3223 = vpack.c.b16 %v2901, %v2894
  %v3224 = vpack.c.b16 %v2902, %v2895
  %v3225 = vpack.c.b16 %v2903, %v2896
  %v3226 = vpack.c.b16 %v2904, %v2897
  %v3227 = vpack.c.b16 %v2905, %v2898
  %v3228 = vpack.c.b16 %v2906, %v2899
  %v3229 = vpack.c.b16 %v2914, %v2907
  %v3230 = vpack.c.b16 %v2915, %v2908
  %v3231 = vpack.c.b16 %v2916, %v2909
  %v3232 = vpack.c.b16 %v2917, %v2910
  %v3233 = vpack.c.b16 %v2918, %v2911
  %v3234 = vpack.c.b16 %v2919, %v2912
  %v3235 = vpack.c.b16 %v2920, %v2913
  %v3236 = vpack.c.b16 %v2928, %v2921
  %v3237 = vpack.c.b16 %v2929, %v2922
  %v3238 = vpack.c.b16 %v2930, %v2923
  %v3239 = vpack.c.b16 %v2931, %v2924
  %v3240 = vpack.c.b16 %v2932, %v2925
  %v3241 = vpack.c.b16 %v2933, %v2926
  %v3242 = vpack.c.b16 %v2934, %v2927
  %v3243 = vpack.c.b16 %v2942, %v2935
  %v3244 = vpack.c.b16 %v2943, %v2936
  %v3245 = vpack.c.b16 %v2944, %v2937
  %v3246 = vpack.c.b16 %v2945, %v2938
  %v3247 = vpack.c.b16 %v2946, %v2939
  %v3248 = vpack.c.b16 %v2947, %v2940
  %v3249 = vpack.c.b16 %v2948, %v2941
  %v3250 = vpack.c.b16 %v2956, %v2949
  %v3251 = vpack.c.b16 %v2957, %v2950
  %v3252 = vpack.c.b16 %v2958, %v2951
  %v3253 = vpack.c.b16 %v2959, %v2952
  %v3254 = vpack.c.b16 %v2960, %v2953
  %v3255 = vpack.c.b16 %v2961, %v2954
  %v3256 = vpack.c.b16 %v2962, %v2955
  %v3257 = vpack.c.b16 %v2970, %v2963
  %v3258 = vpack.c.b16 %v2971, %v2964
  %v3259 = vpack.c.b16 %v2972, %v2965
  %v3260 = vpack.c.b16 %v2973, %v2966
  %v3261 = vpack.c.b16 %v2974, %v2967
  %v3262 = vpack.c.b16 %v2975, %v2968
  %v3263 = vpack.c.b16 %v2976, %v2969
  %v3264 = vpack.c.b16 %v2984, %v2977
  %v3265 = vpack.c.b16 %v2985, %v2978
  %v3266 = vpack.c.b16 %v2986, %v2979
  %v3267 = vpack.c.b16 %v2987, %v2980
  %v3268 = vpack.c.b16 %v2988, %v2981
  %v3269 = vpack.c.b16 %v2989, %v2982
  %v3270 = vpack.c.b16 %v2990, %v2983
  %v3271 = vpack.c.b16 %v2998, %v2991
  %v3272 = vpack.c.b16 %v2999, %v2992
  %v3273 = vpack.c.b16 %v3000, %v2993
  %v3274 = vpack.c.b16 %v3001, %v2994
  %v3275 = vpack.c.b16 %v3002, %v2995
  %v3276 = vpack.c.b16 %v3003, %v2996
  %v3277 = vpack.c.b16 %v3004, %v2997
  %v3278 = vpack.c.b16 %v3012, %v3005
  %v3279 = vpack.c.b16 %v3013, %v3006
  %v3280 = vpack.c.b16 %v3014, %v3007
  %v3281 = vpack.c.b16 %v3015, %v3008
  %v3282 = vpack.c.b16 %v3016, %v3009
  %v3283 = vpack.c.b16 %v3017, %v3010
  %v3284 = vpack.c.b16 %v3018, %v3011
  %v3285 = vpack.c.b16 %v3026, %v3019
  %v3286 = vpack.c.b16 %v3027, %v3020
  %v3287 = vpack.c.b16 %v3028, %v3021
  %v3288 = vpack.c.b16 %v3029, %v3022
  %v3289 = vpack.c.b16 %v3030, %v3023
  %v3290 = vpack.c.b16 %v3031, %v3024
  %v3291 = vpack.c.b16 %v3032, %v3025
  %v3292 = vpack.c.b16 %v3040, %v3033
  %v3293 = vpack.c.b16 %v3041, %v3034
  %v3294 = vpack.c.b16 %v3042, %v3035
  %v3295 = vpack.c.b16 %v3043, %v3036
  %v3296 = vpack.c.b16 %v3044, %v3037
  %v3297 = vpack.c.b16 %v3045, %v3038
  %v3298 = vpack.c.b16 %v3046, %v3039
  %v3299 = vpack.c.b16 %v3054, %v3047
  %v3300 = vpack.c.b16 %v3055, %v3048
  %v3301 = vpack.c.b16 %v3056, %v3049
  %v3302 = vpack.c.b16 %v3057, %v3050
  %v3303 = vpack.c.b16 %v3058, %v3051
  %v3304 = vpack.c.b16 %v3059, %v3052
  %v3305 = vpack.c.b16 %v3060, %v3053
  %v3306 = vpack.c.b16 %v3068, %v3061
  %v3307 = vpack.c.b16 %v3069, %v3062
  %v3308 = vpack.c.b16 %v3070, %v3063
  %v3309 = vpack.c.b16 %v3071, %v3064
  %v3310 = vpack.c.b16 %v3072, %v3065
  %v3311 = vpack.c.b16 %v3073, %v3066
  %v3312 = vpack.c.b16 %v3074, %v3067
  %v3313 = vpack.c.b16 %v3082, %v3075
  %v3314 = vpack.c.b16 %v3083, %v3076
  %v3315 = vpack.c.b16 %v3084, %v3077
  %v3316 = vpack.c.b16 %v3085, %v3078
  %v3317 = vpack.c.b16 %v3086, %v3079
  %v3318 = vpack.c.b16 %v3087, %v3080
  %v3319 = vpack.c.b16 %v3088, %v3081
  %v3320 = vpack.c.b16 %v3096, %v3089
  %v3321 = vpack.c.b16 %v3097, %v3090
  %v3322 = vpack.c.b16 %v3098, %v3091
  %v3323 = vpack.c.b16 %v3099, %v3092
  %v3324 = vpack.c.b16 %v3100, %v3093
  %v3325 = vpack.c.b16 %v3101, %v3094
  %v3326 = vpack.c.b16 %v3102, %v3095
  %v3327 = vpack.c.b16 %v3110, %v3103
  %v3328 = vpack.c.b16 %v3111, %v3104
  %v3329 = vpack.c.b16 %v3112, %v3105
  %v3330 = vpack.c.b16 %v3113, %v3106
  %v3331 = vpack.c.b16 %v3114, %v3107
  %v3332 = vpack.c.b16 %v3115, %v3108
  %v3333 = vpack.c.b16 %v3116, %v3109
  %v3334 = vpack.c.b16 %v3124, %v3117
  %v3335 = vpack.c.b16 %v3125, %v3118
  %v3336 = vpack.c.b16 %v3126, %v3119
  %v3337 = vpack.c.b16 %v3127, %v3120
  %v3338 = vpack.c.b16 %v3128, %v3121
  %v3339 = vpack.c.b16 %v3129, %v3122
  %v3340 = vpack.c.b16 %v3130, %v3123
  %v3341 = vpack.c.b16 %v3138, %v3131
  %v3342 = vpack.c.b16 %v3139, %v3132
  %v3343 = vpack.c.b16 %v3140, %v3133
  %v3344 = vpack.c.b16 %v3141, %v3134
  %v3345 = vpack.c.b16 %v3142, %v3135
  %v3346 = vpack.c.b16 %v3143, %v3136
  %v3347 = vpack.c.b16 %v3144, %v3137
  %v3348 = vpack.c.b16 %v3152, %v3145
  %v3349 = vpack.c.b16 %v3153, %v3146
  %v3350 = vpack.c.b16 %v3154, %v3147
  %v3351 = vpack.c.b16 %v3155, %v3148
  %v3352 = vpack.c.b16 %v3156, %v3149
  %v3353 = vpack.c.b16 %v3157, %v3150
  %v3354 = vpack.c.b16 %v3158, %v3151
  %v3355 = vpack.c.b16 %v3166, %v3159
  %v3356 = vpack.c.b16 %v3167, %v3160
  %v3357 = vpack.c.b16 %v3168, %v3161
  %v3358 = vpack.c.b16 %v3169, %v3162
  %v3359 = vpack.c.b16 %v3170, %v3163
  %v3360 = vpack.c.b16 %v3171, %v3164
  %v3361 = vpack.c.b16 %v3172, %v3165
  %v3362 = vpack.c.b16 %v3180, %v3173
  %v3363 = vpack.c.b16 %v3181, %v3174
  %v3364 = vpack.c.b16 %v3182, %v3175
  %v3365 = vpack.c.b16 %v3183, %v3176
  %v3366 = vpack.c.b16 %v3184, %v3177
  %v3367 = vpack.c.b16 %v3185, %v3178
  %v3368 = vpack.c.b16 %v3186, %v3179
  %v3369 = vpack.c.b16 %v3194, %v3187
  %v3370 = vpack.c.b16 %v3195, %v3188
  %v3371 = vpack.c.b16 %v3196, %v3189
  %v3372 = vpack.c.b16 %v3197, %v3190
  %v3373 = vpack.c.b16 %v3198, %v3191
  %v3374 = vpack.c.b16 %v3199, %v3192
  %v3375 = vpack.c.b16 %v3200, %v3193
  %v3552 = vsel %vm1288, %v2413, 0
  %3554 = vmatprep.subr.bf16.mxu0 %v3202
  %3555 = vmatpush1.bf16.msra.mxu0 %v3201
  %3556 = vmatprep.subr.bf16.mxu0 %v3209
  %3557 = vmatpush1.bf16.msra.mxu0 %v3208
  %3558 = vmatprep.subr.bf16.mxu0 %v3216
  %3559 = vmatpush1.bf16.msra.mxu0 %v3215
  %3560 = vmatprep.subr.bf16.mxu0 %v3223
  %3561 = vmatpush1.bf16.msra.mxu0 %v3222
  %3562 = vmatprep.subr.bf16.mxu0 %v3230
  %3563 = vmatpush1.bf16.msra.mxu0 %v3229
  %3564 = vmatprep.subr.bf16.mxu0 %v3237
  %3565 = vmatpush1.bf16.msra.mxu0 %v3236
  %3566 = vmatprep.subr.bf16.mxu0 %v3244
  %3567 = vmatpush1.bf16.msra.mxu0 %v3243
  %3568 = vmatprep.subr.bf16.mxu0 %v3251
  %3569 = vmatpush1.bf16.msra.mxu0 %v3250
  %3570 = vmatprep.subr.bf16.mxu0 %v3258
  %3571 = vmatpush1.bf16.msra.mxu0 %v3257
  %3572 = vmatprep.subr.bf16.mxu0 %v3265
  %3573 = vmatpush1.bf16.msra.mxu0 %v3264
  %3574 = vmatprep.subr.bf16.mxu0 %v3272
  %3575 = vmatpush1.bf16.msra.mxu0 %v3271
  %3576 = vmatprep.subr.bf16.mxu0 %v3279
  %3577 = vmatpush1.bf16.msra.mxu0 %v3278
  %3578 = vmatprep.subr.bf16.mxu0 %v3286
  %3579 = vmatpush1.bf16.msra.mxu0 %v3285
  %3580 = vmatprep.subr.bf16.mxu0 %v3293
  %3581 = vmatpush1.bf16.msra.mxu0 %v3292
  %3582 = vmatprep.subr.bf16.mxu0 %v3300
  %3583 = vmatpush1.bf16.msra.mxu0 %v3299
  %3584 = vmatprep.subr.bf16.mxu0 %v3307
  %3585 = vmatpush1.bf16.msra.mxu0 %v3306
  %3586 = vmatprep.mubr.bf16.mxu0 %v2411
  %3587 = vmatmul.mubr.bf16.gmra.mrb[0].mxu0 %v2410
  %v3588 = vpop.f32.mrb[0].mxu0
  %v3589 = vadd.f32 %v2619, %v3588
  %v3590 = vpop.f32.mrb[0].mxu0
  %v3591 = vadd.f32 %v2623, %v3590
  %v3592 = vpop.f32.mrb[0].mxu0
  %v3593 = vadd.f32 %v2619, %v3592
  %v3594 = vpop.f32.mrb[0].mxu0
  %v3595 = vadd.f32 %v2623, %v3594
  %3596 = vdwg.mxu0
  %3597 = vmatprep.subr.bf16.mxu0 %v3314
  %3598 = vmatpush1.bf16.msra.mxu0 %v3313
  %3599 = vmatprep.subr.bf16.mxu0 %v3321
  %3600 = vmatpush1.bf16.msra.mxu0 %v3320
  %3601 = vmatprep.subr.bf16.mxu0 %v3328
  %3602 = vmatpush1.bf16.msra.mxu0 %v3327
  %3603 = vmatprep.subr.bf16.mxu0 %v3335
  %3604 = vmatpush1.bf16.msra.mxu0 %v3334
  %3605 = vmatprep.subr.bf16.mxu0 %v3342
  %3606 = vmatpush1.bf16.msra.mxu0 %v3341
  %3607 = vmatprep.subr.bf16.mxu0 %v3349
  %3608 = vmatpush1.bf16.msra.mxu0 %v3348
  %3609 = vmatprep.subr.bf16.mxu0 %v3356
  %3610 = vmatpush1.bf16.msra.mxu0 %v3355
  %3611 = vmatprep.subr.bf16.mxu0 %v3363
  %3612 = vmatpush1.bf16.msra.mxu0 %v3362
  %3613 = vmatprep.subr.bf16.mxu0 %v3370
  %3614 = vmatpush1.bf16.msra.mxu0 %v3369
  %3615 = vmatprep.subr.bf16.mxu0 0
  %3616 = vmatpush1.bf16.msra.mxu0 0
  %3617 = vmatprep.subr.bf16.mxu0 0
  %3618 = vmatpush1.bf16.msra.mxu0 0
  %3619 = vmatprep.subr.bf16.mxu0 0
  %3620 = vmatpush1.bf16.msra.mxu0 0
  %3621 = vmatprep.subr.bf16.mxu0 0
  %3622 = vmatpush1.bf16.msra.mxu0 0
  %3623 = vmatprep.subr.bf16.mxu0 0
  %3624 = vmatpush1.bf16.msra.mxu0 0
  %3625 = vmatprep.subr.bf16.mxu0 0
  %3626 = vmatpush1.bf16.msra.mxu0 0
  %3627 = vmatprep.subr.bf16.mxu0 0
  %3628 = vmatpush1.bf16.msra.mxu0 0
  %3629 = vmatprep.mubr.bf16.mxu0 %v3552
  %3630 = vmatmul.mubr.bf16.gmra.mrb[0].mxu0 %v2412
  %v3631 = vpop.f32.mrb[0].mxu0
  %v3632 = vadd.f32 %v3589, %v3631
  %v3633 = vpop.f32.mrb[0].mxu0
  %v3634 = vadd.f32 %v3591, %v3633
  %v3635 = vpop.f32.mrb[0].mxu0
  %v3636 = vadd.f32 %v3593, %v3635
  %v3637 = vpop.f32.mrb[0].mxu0
  %v3638 = vadd.f32 %v3595, %v3637
  %3639 = vdwg.mxu0
  %3640 = vmatprep.subr.bf16.mxu0 %v3204
  %3641 = vmatpush1.bf16.msra.mxu0 %v3203
  %3642 = vmatprep.subr.bf16.mxu0 %v3211
  %3643 = vmatpush1.bf16.msra.mxu0 %v3210
  %3644 = vmatprep.subr.bf16.mxu0 %v3218
  %3645 = vmatpush1.bf16.msra.mxu0 %v3217
  %3646 = vmatprep.subr.bf16.mxu0 %v3225
  %3647 = vmatpush1.bf16.msra.mxu0 %v3224
  %3648 = vmatprep.subr.bf16.mxu0 %v3232
  %3649 = vmatpush1.bf16.msra.mxu0 %v3231
  %3650 = vmatprep.subr.bf16.mxu0 %v3239
  %3651 = vmatpush1.bf16.msra.mxu0 %v3238
  %3652 = vmatprep.subr.bf16.mxu0 %v3246
  %3653 = vmatpush1.bf16.msra.mxu0 %v3245
  %3654 = vmatprep.subr.bf16.mxu0 %v3253
  %3655 = vmatpush1.bf16.msra.mxu0 %v3252
  %3656 = vmatprep.subr.bf16.mxu0 %v3260
  %3657 = vmatpush1.bf16.msra.mxu0 %v3259
  %3658 = vmatprep.subr.bf16.mxu0 %v3267
  %3659 = vmatpush1.bf16.msra.mxu0 %v3266
  %3660 = vmatprep.subr.bf16.mxu0 %v3274
  %3661 = vmatpush1.bf16.msra.mxu0 %v3273
  %3662 = vmatprep.subr.bf16.mxu0 %v3281
  %3663 = vmatpush1.bf16.msra.mxu0 %v3280
  %3664 = vmatprep.subr.bf16.mxu0 %v3288
  %3665 = vmatpush1.bf16.msra.mxu0 %v3287
  %3666 = vmatprep.subr.bf16.mxu0 %v3295
  %3667 = vmatpush1.bf16.msra.mxu0 %v3294
  %3668 = vmatprep.subr.bf16.mxu0 %v3302
  %3669 = vmatpush1.bf16.msra.mxu0 %v3301
  %3670 = vmatprep.subr.bf16.mxu0 %v3309
  %3671 = vmatpush1.bf16.msra.mxu0 %v3308
  %3672 = vmatprep.mubr.bf16.mxu0 %v2411
  %3673 = vmatmul.mubr.bf16.gmra.mrb[0].mxu0 %v2410
  %v3674 = vpop.f32.mrb[0].mxu0
  %v3675 = vadd.f32 %v2627, %v3674
  %v3676 = vpop.f32.mrb[0].mxu0
  %v3677 = vadd.f32 %v2631, %v3676
  %v3678 = vpop.f32.mrb[0].mxu0
  %v3679 = vadd.f32 %v2627, %v3678
  %v3680 = vpop.f32.mrb[0].mxu0
  %v3681 = vadd.f32 %v2631, %v3680
  %3682 = vdwg.mxu0
  %3683 = vmatprep.subr.bf16.mxu0 %v3316
  %3684 = vmatpush1.bf16.msra.mxu0 %v3315
  %3685 = vmatprep.subr.bf16.mxu0 %v3323
  %3686 = vmatpush1.bf16.msra.mxu0 %v3322
  %3687 = vmatprep.subr.bf16.mxu0 %v3330
  %3688 = vmatpush1.bf16.msra.mxu0 %v3329
  %3689 = vmatprep.subr.bf16.mxu0 %v3337
  %3690 = vmatpush1.bf16.msra.mxu0 %v3336
  %3691 = vmatprep.subr.bf16.mxu0 %v3344
  %3692 = vmatpush1.bf16.msra.mxu0 %v3343
  %3693 = vmatprep.subr.bf16.mxu0 %v3351
  %3694 = vmatpush1.bf16.msra.mxu0 %v3350
  %3695 = vmatprep.subr.bf16.mxu0 %v3358
  %3696 = vmatpush1.bf16.msra.mxu0 %v3357
  %3697 = vmatprep.subr.bf16.mxu0 %v3365
  %3698 = vmatpush1.bf16.msra.mxu0 %v3364
  %3699 = vmatprep.subr.bf16.mxu0 %v3372
  %3700 = vmatpush1.bf16.msra.mxu0 %v3371
  %3701 = vmatprep.subr.bf16.mxu0 0
  %3702 = vmatpush1.bf16.msra.mxu0 0
  %3703 = vmatprep.subr.bf16.mxu0 0
  %3704 = vmatpush1.bf16.msra.mxu0 0
  %3705 = vmatprep.subr.bf16.mxu0 0
  %3706 = vmatpush1.bf16.msra.mxu0 0
  %3707 = vmatprep.subr.bf16.mxu0 0
  %3708 = vmatpush1.bf16.msra.mxu0 0
  %3709 = vmatprep.subr.bf16.mxu0 0
  %3710 = vmatpush1.bf16.msra.mxu0 0
  %3711 = vmatprep.subr.bf16.mxu0 0
  %3712 = vmatpush1.bf16.msra.mxu0 0
  %3713 = vmatprep.subr.bf16.mxu0 0
  %3714 = vmatpush1.bf16.msra.mxu0 0
  %3715 = vmatprep.mubr.bf16.mxu0 %v3552
  %3716 = vmatmul.mubr.bf16.gmra.mrb[0].mxu0 %v2412
  %v3717 = vpop.f32.mrb[0].mxu0
  %v3718 = vadd.f32 %v3675, %v3717
  %v3719 = vpop.f32.mrb[0].mxu0
  %v3720 = vadd.f32 %v3677, %v3719
  %v3721 = vpop.f32.mrb[0].mxu0
  %v3722 = vadd.f32 %v3679, %v3721
  %v3723 = vpop.f32.mrb[0].mxu0
  %v3724 = vadd.f32 %v3681, %v3723
  %3725 = vdwg.mxu0
  %3726 = vmatprep.subr.bf16.mxu0 %v3206
  %3727 = vmatpush1.bf16.msra.mxu0 %v3205
  %3728 = vmatprep.subr.bf16.mxu0 %v3213
  %3729 = vmatpush1.bf16.msra.mxu0 %v3212
  %3730 = vmatprep.subr.bf16.mxu0 %v3220
  %3731 = vmatpush1.bf16.msra.mxu0 %v3219
  %3732 = vmatprep.subr.bf16.mxu0 %v3227
  %3733 = vmatpush1.bf16.msra.mxu0 %v3226
  %3734 = vmatprep.subr.bf16.mxu0 %v3234
  %3735 = vmatpush1.bf16.msra.mxu0 %v3233
  %3736 = vmatprep.subr.bf16.mxu0 %v3241
  %3737 = vmatpush1.bf16.msra.mxu0 %v3240
  %3738 = vmatprep.subr.bf16.mxu0 %v3248
  %3739 = vmatpush1.bf16.msra.mxu0 %v3247
  %3740 = vmatprep.subr.bf16.mxu0 %v3255
  %3741 = vmatpush1.bf16.msra.mxu0 %v3254
  %3742 = vmatprep.subr.bf16.mxu0 %v3262
  %3743 = vmatpush1.bf16.msra.mxu0 %v3261
  %3744 = vmatprep.subr.bf16.mxu0 %v3269
  %3745 = vmatpush1.bf16.msra.mxu0 %v3268
  %3746 = vmatprep.subr.bf16.mxu0 %v3276
  %3747 = vmatpush1.bf16.msra.mxu0 %v3275
  %3748 = vmatprep.subr.bf16.mxu0 %v3283
  %3749 = vmatpush1.bf16.msra.mxu0 %v3282
  %3750 = vmatprep.subr.bf16.mxu0 %v3290
  %3751 = vmatpush1.bf16.msra.mxu0 %v3289
  %3752 = vmatprep.subr.bf16.mxu0 %v3297
  %3753 = vmatpush1.bf16.msra.mxu0 %v3296
  %3754 = vmatprep.subr.bf16.mxu0 %v3304
  %3755 = vmatpush1.bf16.msra.mxu0 %v3303
  %3756 = vmatprep.subr.bf16.mxu0 %v3311
  %3757 = vmatpush1.bf16.msra.mxu0 %v3310
  %3758 = vmatprep.mubr.bf16.mxu0 %v2411
  %3759 = vmatmul.mubr.bf16.gmra.mrb[0].mxu0 %v2410
  %v3760 = vpop.f32.mrb[0].mxu0
  %v3761 = vadd.f32 %v2635, %v3760
  %v3762 = vpop.f32.mrb[0].mxu0
  %v3763 = vadd.f32 %v2639, %v3762
  %v3764 = vpop.f32.mrb[0].mxu0
  %v3765 = vadd.f32 %v2635, %v3764
  %v3766 = vpop.f32.mrb[0].mxu0
  %v3767 = vadd.f32 %v2639, %v3766
  %3768 = vdwg.mxu0
  %3769 = vmatprep.subr.bf16.mxu0 %v3318
  %3770 = vmatpush1.bf16.msra.mxu0 %v3317
  %3771 = vmatprep.subr.bf16.mxu0 %v3325
  %3772 = vmatpush1.bf16.msra.mxu0 %v3324
  %3773 = vmatprep.subr.bf16.mxu0 %v3332
  %3774 = vmatpush1.bf16.msra.mxu0 %v3331
  %3775 = vmatprep.subr.bf16.mxu0 %v3339
  %3776 = vmatpush1.bf16.msra.mxu0 %v3338
  %3777 = vmatprep.subr.bf16.mxu0 %v3346
  %3778 = vmatpush1.bf16.msra.mxu0 %v3345
  %3779 = vmatprep.subr.bf16.mxu0 %v3353
  %3780 = vmatpush1.bf16.msra.mxu0 %v3352
  %3781 = vmatprep.subr.bf16.mxu0 %v3360
  %3782 = vmatpush1.bf16.msra.mxu0 %v3359
  %3783 = vmatprep.subr.bf16.mxu0 %v3367
  %3784 = vmatpush1.bf16.msra.mxu0 %v3366
  %3785 = vmatprep.subr.bf16.mxu0 %v3374
  %3786 = vmatpush1.bf16.msra.mxu0 %v3373
  %3787 = vmatprep.subr.bf16.mxu0 0
  %3788 = vmatpush1.bf16.msra.mxu0 0
  %3789 = vmatprep.subr.bf16.mxu0 0
  %3790 = vmatpush1.bf16.msra.mxu0 0
  %3791 = vmatprep.subr.bf16.mxu0 0
  %3792 = vmatpush1.bf16.msra.mxu0 0
  %3793 = vmatprep.subr.bf16.mxu0 0
  %3794 = vmatpush1.bf16.msra.mxu0 0
  %3795 = vmatprep.subr.bf16.mxu0 0
  %3796 = vmatpush1.bf16.msra.mxu0 0
  %3797 = vmatprep.subr.bf16.mxu0 0
  %3798 = vmatpush1.bf16.msra.mxu0 0
  %3799 = vmatprep.subr.bf16.mxu0 0
  %3800 = vmatpush1.bf16.msra.mxu0 0
  %3801 = vmatprep.mubr.bf16.mxu0 %v3552
  %3802 = vmatmul.mubr.bf16.gmra.mrb[0].mxu0 %v2412
  %v3803 = vpop.f32.mrb[0].mxu0
  %v3804 = vadd.f32 %v3761, %v3803
  %v3805 = vpop.f32.mrb[0].mxu0
  %v3806 = vadd.f32 %v3763, %v3805
  %v3807 = vpop.f32.mrb[0].mxu0
  %v3808 = vadd.f32 %v3765, %v3807
  %v3809 = vpop.f32.mrb[0].mxu0
  %v3810 = vadd.f32 %v3767, %v3809
  %3811 = vdwg.mxu0
  %3812 = vmatprep.subr.bf16.mxu0 0
  %3813 = vmatpush1.bf16.msra.mxu0 %v3207
  %3814 = vmatprep.subr.bf16.mxu0 0
  %3815 = vmatpush1.bf16.msra.mxu0 %v3214
  %3816 = vmatprep.subr.bf16.mxu0 0
  %3817 = vmatpush1.bf16.msra.mxu0 %v3221
  %3818 = vmatprep.subr.bf16.mxu0 0
  %3819 = vmatpush1.bf16.msra.mxu0 %v3228
  %3820 = vmatprep.subr.bf16.mxu0 0
  %3821 = vmatpush1.bf16.msra.mxu0 %v3235
  %3822 = vmatprep.subr.bf16.mxu0 0
  %3823 = vmatpush1.bf16.msra.mxu0 %v3242
  %3824 = vmatprep.subr.bf16.mxu0 0
  %3825 = vmatpush1.bf16.msra.mxu0 %v3249
  %3826 = vmatprep.subr.bf16.mxu0 0
  %3827 = vmatpush1.bf16.msra.mxu0 %v3256
  %3828 = vmatprep.subr.bf16.mxu0 0
  %3829 = vmatpush1.bf16.msra.mxu0 %v3263
  %3830 = vmatprep.subr.bf16.mxu0 0
  %3831 = vmatpush1.bf16.msra.mxu0 %v3270
  %3832 = vmatprep.subr.bf16.mxu0 0
  %3833 = vmatpush1.bf16.msra.mxu0 %v3277
  %3834 = vmatprep.subr.bf16.mxu0 0
  %3835 = vmatpush1.bf16.msra.mxu0 %v3284
  %3836 = vmatprep.subr.bf16.mxu0 0
  %3837 = vmatpush1.bf16.msra.mxu0 %v3291
  %3838 = vmatprep.subr.bf16.mxu0 0
  %3839 = vmatpush1.bf16.msra.mxu0 %v3298
  %3840 = vmatprep.subr.bf16.mxu0 0
  %3841 = vmatpush1.bf16.msra.mxu0 %v3305
  %3842 = vmatprep.subr.bf16.mxu0 0
  %3843 = vmatpush1.bf16.msra.mxu0 %v3312
  %3844 = vmatprep.mubr.bf16.mxu0 %v2411
  %3845 = vmatmul.mubr.bf16.gmra.mrb[0].mxu0 %v2410
  %v3846 = vpop.f32.mrb[0].mxu0
  %v3847 = vadd.f32 %v2643, %v3846
  %v3848 = vpop.f32.mrb[0].mxu0
  %v3849 = vpop.f32.mrb[0].mxu0
  %v3850 = vadd.f32 %v2643, %v3849
  %v3851 = vpop.f32.mrb[0].mxu0
  %3852 = vdwg.mxu0
  %3853 = vmatprep.subr.bf16.mxu0 0
  %3854 = vmatpush1.bf16.msra.mxu0 %v3319
  %3855 = vmatprep.subr.bf16.mxu0 0
  %3856 = vmatpush1.bf16.msra.mxu0 %v3326
  %3857 = vmatprep.subr.bf16.mxu0 0
  %3858 = vmatpush1.bf16.msra.mxu0 %v3333
  %3859 = vmatprep.subr.bf16.mxu0 0
  %3860 = vmatpush1.bf16.msra.mxu0 %v3340
  %3861 = vmatprep.subr.bf16.mxu0 0
  %3862 = vmatpush1.bf16.msra.mxu0 %v3347
  %3863 = vmatprep.subr.bf16.mxu0 0
  %3864 = vmatpush1.bf16.msra.mxu0 %v3354
  %3865 = vmatprep.subr.bf16.mxu0 0
  %3866 = vmatpush1.bf16.msra.mxu0 %v3361
  %3867 = vmatprep.subr.bf16.mxu0 0
  %3868 = vmatpush1.bf16.msra.mxu0 %v3368
  %3869 = vmatprep.subr.bf16.mxu0 0
  %3870 = vmatpush1.bf16.msra.mxu0 %v3375
  %3871 = vmatprep.subr.bf16.mxu0 0
  %3872 = vmatpush1.bf16.msra.mxu0 0
  %3873 = vmatprep.subr.bf16.mxu0 0
  %3874 = vmatpush1.bf16.msra.mxu0 0
  %3875 = vmatprep.subr.bf16.mxu0 0
  %3876 = vmatpush1.bf16.msra.mxu0 0
  %3877 = vmatprep.subr.bf16.mxu0 0
  %3878 = vmatpush1.bf16.msra.mxu0 0
  %3879 = vmatprep.subr.bf16.mxu0 0
  %3880 = vmatpush1.bf16.msra.mxu0 0
  %3881 = vmatprep.subr.bf16.mxu0 0
  %3882 = vmatpush1.bf16.msra.mxu0 0
  %3883 = vmatprep.subr.bf16.mxu0 0
  %3884 = vmatpush1.bf16.msra.mxu0 0
  %3885 = vmatprep.mubr.bf16.mxu0 %v3552
  %3886 = vmatmul.mubr.bf16.gmra.mrb[0].mxu0 %v2412
  %v3887 = vpop.f32.mrb[0].mxu0
  %v3888 = vadd.f32 %v3847, %v3887
  %v3889 = vpop.f32.mrb[0].mxu0
  %v3890 = vpop.f32.mrb[0].mxu0
  %v3891 = vadd.f32 %v3850, %v3890
  %v3892 = vpop.f32.mrb[0].mxu0
  %3893 = vdwg.mxu0
  %v3894 = vxor.u32 %v3632, 2147483648
  %v3895 = vxor.u32 %v3634, 2147483648
  %v3896 = vxor.u32 %v3718, 2147483648
  %v3897 = vxor.u32 %v3720, 2147483648
  %v3898 = vxor.u32 %v3804, 2147483648
  %v3899 = vxor.u32 %v3806, 2147483648
  %v3900 = vxor.u32 %v3888, 2147483648
  %v3901 = vxor.u32 %v3636, 2147483648
  %v3902 = vxor.u32 %v3638, 2147483648
  %v3903 = vxor.u32 %v3722, 2147483648
  %v3904 = vxor.u32 %v3724, 2147483648
  %v3905 = vxor.u32 %v3808, 2147483648
  %v3906 = vxor.u32 %v3810, 2147483648
  %v3907 = vxor.u32 %v3891, 2147483648
  %v3908 = vmul.f32 %v3894, 1.442695
  %v3909 = vpow.pop %v3908
  %v3910 = vmul.f32 %v3895, 1.442695
  %v3911 = vpow.pop %v3910
  %v3912 = vmul.f32 %v3896, 1.442695
  %v3913 = vpow.pop %v3912
  %v3914 = vmul.f32 %v3897, 1.442695
  %v3915 = vpow.pop %v3914
  %v3916 = vmul.f32 %v3898, 1.442695
  %v3917 = vpow.pop %v3916
  %v3918 = vmul.f32 %v3899, 1.442695
  %v3919 = vpow.pop %v3918
  %v3920 = vmul.f32 %v3900, 1.442695
  %v3921 = vpow.pop %v3920
  %v3922 = vmul.f32 %v3901, 1.442695
  %v3923 = vpow.pop %v3922
  %v3924 = vmul.f32 %v3902, 1.442695
  %v3925 = vpow.pop %v3924
  %v3926 = vmul.f32 %v3903, 1.442695
  %v3927 = vpow.pop %v3926
  %v3928 = vmul.f32 %v3904, 1.442695
  %v3929 = vpow.pop %v3928
  %v3930 = vmul.f32 %v3905, 1.442695
  %v3931 = vpow.pop %v3930
  %v3932 = vmul.f32 %v3906, 1.442695
  %v3933 = vpow.pop %v3932
  %v3934 = vmul.f32 %v3907, 1.442695
  %v3935 = vpow.pop %v3934
  %v3936 = vadd.f32 %v3909, 1.0
  %v3937 = vadd.f32 %v3911, 1.0
  %v3938 = vadd.f32 %v3913, 1.0
  %v3939 = vadd.f32 %v3915, 1.0
  %v3940 = vadd.f32 %v3917, 1.0
  %v3941 = vadd.f32 %v3919, 1.0
  %v3942 = vadd.f32 %v3921, 1.0
  %v3943 = vadd.f32 %v3923, 1.0
  %v3944 = vadd.f32 %v3925, 1.0
  %v3945 = vadd.f32 %v3927, 1.0
  %v3946 = vadd.f32 %v3929, 1.0
  %v3947 = vadd.f32 %v3931, 1.0
  %v3948 = vadd.f32 %v3933, 1.0
  %v3949 = vadd.f32 %v3935, 1.0
  %v3950 = vrcp.pop %v3936
  %v3951 = vmul.f32 1.0, %v3950
  %v3952 = vrcp.pop %v3937
  %v3953 = vmul.f32 1.0, %v3952
  %v3954 = vrcp.pop %v3938
  %v3955 = vmul.f32 1.0, %v3954
  %v3956 = vrcp.pop %v3939
  %v3957 = vmul.f32 1.0, %v3956
  %v3958 = vrcp.pop %v3940
  %v3959 = vmul.f32 1.0, %v3958
  %v3960 = vrcp.pop %v3941
  %v3961 = vmul.f32 1.0, %v3960
  %v3962 = vrcp.pop %v3942
  %v3963 = vmul.f32 1.0, %v3962
  %v3964 = vrcp.pop %v3943
  %v3965 = vmul.f32 1.0, %v3964
  %v3966 = vrcp.pop %v3944
  %v3967 = vmul.f32 1.0, %v3966
  %v3968 = vrcp.pop %v3945
  %v3969 = vmul.f32 1.0, %v3968
  %v3970 = vrcp.pop %v3946
  %v3971 = vmul.f32 1.0, %v3970
  %v3972 = vrcp.pop %v3947
  %v3973 = vmul.f32 1.0, %v3972
  %v3974 = vrcp.pop %v3948
  %v3975 = vmul.f32 1.0, %v3974
  %v3976 = vrcp.pop %v3949
  %v3977 = vmul.f32 1.0, %v3976
  %v3978 = vpack.c.bf16 %v3965, %v3951
  %v3979 = vpack.c.bf16 %v3967, %v3953
  %v3980 = vpack.c.bf16 %v3969, %v3955
  %v3981 = vpack.c.bf16 %v3971, %v3957
  %v3982 = vpack.c.bf16 %v3973, %v3959
  %v3983 = vpack.c.bf16 %v3975, %v3961
  %v3984 = vpack.c.bf16 %v3977, %v3963
  %v3992 = vunpack.c.l.b16 %v3978
  %v3993 = vunpack.c.l.b16 %v3979
  %v3994 = vunpack.c.l.b16 %v3980
  %v3995 = vunpack.c.l.b16 %v3981
  %v3996 = vunpack.c.l.b16 %v3982
  %v3997 = vunpack.c.l.b16 %v3983
  %v3998 = vunpack.c.l.b16 %v3984
  %v3999 = vunpack.c.h.b16 %v3978
  %v4000 = vunpack.c.h.b16 %v3979
  %v4001 = vunpack.c.h.b16 %v3980
  %v4002 = vunpack.c.h.b16 %v3981
  %v4003 = vunpack.c.h.b16 %v3982
  %v4004 = vunpack.c.h.b16 %v3983
  %v4005 = vunpack.c.h.b16 %v3984
  %v4006 = vpack.c.b16 %v3993, %v3992
  %v4007 = vpack.c.b16 %v3995, %v3994
  %v4008 = vpack.c.b16 %v3997, %v3996
  %v4009 = vpack.c.b16 %v3998, %v3998
  %v4010 = vpack.c.b16 %v4000, %v3999
  %v4011 = vpack.c.b16 %v4002, %v4001
  %v4012 = vpack.c.b16 %v4004, %v4003
  %v4013 = vpack.c.b16 %v4005, %v4005
  %4022 = vst [vmem:[%s13] sm:$0xff] %v4006
  %4023 = vst [vmem:[%s13 + $0x8] sm:$0xff] %v4007
  %4024 = vst [vmem:[%s13 + $0x10] sm:$0xff] %v4008
  %vm4025 = vcmask 125952
  %4026 = vst.msk [vmem:[%s13 + $0x18] sm:$0xf] %vm4025, %v4009
  %4027 = vst [vmem:[%s13 + $0x1c] sm:$0xff] %v4010
  %4028 = vst [vmem:[%s13 + $0x24] sm:$0xff] %v4011
  %4029 = vst [vmem:[%s13 + $0x2c] sm:$0xff] %v4012
  %4030 = vst.msk [vmem:[%s13 + $0x34] sm:$0xf] %vm4025, %v4013
  // Predicated region
  $region54: #{ivae_forward.1} parent=0 // pred_check
    _
  $region55: #{ivae_forward.1} parent=0 // pred_check_branch
    %4032 = sbr.rel (0) target = $region57
  $region56: #{ivae_forward.1} parent=0 // pred_region
    _
  $region57: #{ivae_forward.1} parent=0 // pred_fallthru
    _
  // Predicated region
  $region58: #{ivae_forward.1} parent=0 // pred_check
    _
  $region59: #{ivae_forward.1} parent=0 // pred_check_branch
    %4034 = sbr.rel (0) target = $region61
  $region60: #{ivae_forward.1} parent=0 // pred_region
    _
  $region61: #{ivae_forward.1} parent=0 // pred_fallthru
    _
  // Predicated region
  $region62: #{ivae_forward.1} parent=0 // pred_check
    _
  $region63: #{ivae_forward.1} parent=0 // pred_check_branch
    %4036 = sbr.rel (0) target = $region65
  $region64: #{ivae_forward.1} parent=0 // pred_region
    _
  $region65: #{ivae_forward.1} parent=0 // pred_fallthru
    _
  // Predicated region
  $region66: #{ivae_forward.1} parent=0 // pred_check
    _
  $region67: #{ivae_forward.1} parent=0 // pred_check_branch
    %4038 = sbr.rel (0) target = $region69
  $region68: #{ivae_forward.1} parent=0 // pred_region
    _
  $region69: #{ivae_forward.1} parent=0 // pred_fallthru
    _

</llo_original>
